<compile_context>
chip_gen: v5e
topology: v5e:2x2
jax: 0.10.0
libtpu: 0.0.40
codegen_flags: <defaults>
</compile_context>

<pallas_src>
import jax
import jax.numpy as jnp
import numpy as np
from jax import lax
from jax.experimental import pallas as pl
from jax.experimental.pallas import tpu as pltpu

EPS = 1e-5  # torch.nn.InstanceNorm2d default eps, affine=False


def _residual_block_kernel(x_ref, w1_ref, w2_ref, o_ref, xpad_ref, cols_ref):
    # x_ref   : (1, H, W, C)        unpadded input tile for one batch element
    # w*_ref  : (9*C, C)            conv weights flattened as (ky, kx, C_in) x C_out
    # o_ref   : (1, H, W, C)        output tile
    # xpad_ref: (H+2, W+2, C) f32   halo scratch (borders kept at zero)
    # cols_ref: (H*W, 9*C)   f32    im2col staging buffer
    H = o_ref.shape[1]
    W = o_ref.shape[2]
    C = o_ref.shape[3]
    HW = H * W
    inv_hw = 1.0 / float(HW)

    # Refresh only the 1-element zero halo (4 thin strips, ~2(H+W)C elems)
    # instead of zero-filling the whole (H+2)(W+2)C scratch every step.
    # Done every step (not @pl.when(program_id==0)) so the invariant also holds
    # when the "parallel" batch axis is sharded across TensorCores, where each
    # core owns a private scratch buffer.
    zrow = jnp.zeros((1, W + 2, C), jnp.float32)
    zcol = jnp.zeros((H + 2, 1, C), jnp.float32)
    xpad_ref[0:1, :, :] = zrow
    xpad_ref[H + 1:H + 2, :, :] = zrow
    xpad_ref[:, 0:1, :] = zcol
    xpad_ref[:, W + 1:W + 2, :] = zcol

    def conv3x3(w_ref):
        # im2col: pack the 9 shifted (HW, C) patches side by side -> (HW, 9C),
        # then a single MXU matmul with contraction depth K = 9C.
        for dy in range(3):
            for dx in range(3):
                k = dy * 3 + dx
                patch = xpad_ref[dy:dy + H, dx:dx + W, :].reshape(HW, C)
                cols_ref[:, k * C:(k + 1) * C] = patch
        return jnp.dot(cols_ref[...], w_ref[...].astype(jnp.float32),
                       preferred_element_type=jnp.float32)  # (HW, C) f32
        # NOTE: conv bias intentionally omitted — it is cancelled exactly by the
        # InstanceNorm mean subtraction that immediately follows.

    def instance_norm(y):
        # One-pass per-channel stats over the spatial axis (biased variance),
        # matching torch.nn.InstanceNorm2d(affine=False).
        mean = jnp.sum(y, axis=0, keepdims=True) * inv_hw
        ex2 = jnp.sum(y * y, axis=0, keepdims=True) * inv_hw
        var = jnp.maximum(ex2 - mean * mean, 0.0)
        return (y - mean) * lax.rsqrt(var + EPS)

    # conv1 -> instance norm -> relu
    xpad_ref[1:H + 1, 1:W + 1, :] = x_ref[0].astype(jnp.float32)
    y1 = jnp.maximum(instance_norm(conv3x3(w1_ref)), 0.0)

    # re-pad the intermediate into the same scratch (halo is still zero)
    xpad_ref[1:H + 1, 1:W + 1, :] = y1.reshape(H, W, C)

    # conv2 -> instance norm
    y2 = instance_norm(conv3x3(w2_ref))

    # residual read late (from the still-resident input block) to keep it out
    # of the live set across both convs / norms.
    residual = x_ref[0].reshape(HW, C).astype(jnp.float32)
    out = jnp.maximum(y2 + residual, 0.0)
    o_ref[0] = out.reshape(H, W, C).astype(o_ref.dtype)


def residual_block(x_nchw, w1, b1, w2, b2):
    """x_nchw: (N, C, H, W); w*: (3, 3, C_in, C_out); b*: (C,). Returns (N, C, H, W).

    b1/b2 are accepted for API parity with the PyTorch module but are not used:
    a per-channel bias added uniformly over HxW is removed exactly by the
    InstanceNorm mean subtraction (the reference below keeps them and matches).
    """
    del b1, b2
    N, C, H, W = x_nchw.shape
    x = jnp.transpose(x_nchw, (0, 2, 3, 1))  # NHWC (no jnp.pad — fused into kernel)

    # (3, 3, C_in, C_out) -> (9*C_in, C_out), matching the im2col column order
    # (dy major, dx middle, c_in minor).
    w1cat = w1.reshape(9 * C, C)
    w2cat = w2.reshape(9 * C, C)

    # Scoped-VMEM budget: halo + im2col scratch, double-buffered in/out blocks
    # and weight blocks. Raise the default (16 MiB v5e / 32 MiB v6e) with some
    # headroom, but stay well under v7x's 64 MiB physical VMEM.
    scratch_bytes = ((H + 2) * (W + 2) * C + H * W * 9 * C) * 4
    io_bytes = 4 * H * W * C * x.dtype.itemsize            # 2x in + 2x out blocks
    w_bytes = 2 * 2 * 9 * C * C * w1.dtype.itemsize        # 2 weight mats, 2 buffers
    vmem_limit = int(min(56 * 2 ** 20,
                         max(32 * 2 ** 20, 2 * (scratch_bytes + io_bytes + w_bytes))))

    out_nhwc = pl.pallas_call(
        _residual_block_kernel,
        out_shape=jax.ShapeDtypeStruct((N, H, W, C), x.dtype),
        grid_spec=pltpu.PrefetchScalarGridSpec(
            num_scalar_prefetch=0,
            grid=(N,),
            in_specs=[
                pl.BlockSpec((1, H, W, C), lambda n: (n, 0, 0, 0)),
                pl.BlockSpec((9 * C, C), lambda n: (0, 0)),
                pl.BlockSpec((9 * C, C), lambda n: (0, 0)),
            ],
            out_specs=pl.BlockSpec((1, H, W, C), lambda n: (n, 0, 0, 0)),
            scratch_shapes=[
                pltpu.VMEM((H + 2, W + 2, C), jnp.float32),   # halo buffer
                pltpu.VMEM((H * W, 9 * C), jnp.float32),      # im2col staging
            ],
        ),
        compiler_params=pltpu.CompilerParams(
            dimension_semantics=("parallel",),   # batch axis; N even feeds both v7x TCs
            vmem_limit_bytes=vmem_limit,
        ),
    )(x, w1cat, w2cat)

    return jnp.transpose(out_nhwc, (0, 3, 1, 2))  # back to NCHW


def _reference(x_nchw, w1, b1, w2, b2):
    """Pure-JAX reference (NCHW, OIHW) matching the PyTorch forward, biases included."""
    def conv(x, w_khwc, b):
        w_oihw = jnp.transpose(w_khwc, (3, 2, 0, 1))  # (3,3,Cin,Cout) -> OIHW
        y = lax.conv_general_dilated(
            x, w_oihw, window_strides=(1, 1), padding=((1, 1), (1, 1)),
            dimension_numbers=("NCHW", "OIHW", "NCHW"))
        return y + b.reshape(1, -1, 1, 1)

    def inorm(y):
        mean = jnp.mean(y, axis=(2, 3), keepdims=True)
        var = jnp.mean((y - mean) ** 2, axis=(2, 3), keepdims=True)
        return (y - mean) * lax.rsqrt(var + EPS)

    residual = x_nchw
    y = jnp.maximum(inorm(conv(x_nchw, w1, b1)), 0.0)
    y = inorm(conv(y, w2, b2))
    return jnp.maximum(y + residual, 0.0)


if __name__ == "__main__":
    N, C, H, W = 2, 4, 16, 16
    key = jax.random.PRNGKey(0)
    kx, kw1, kb1, kw2, kb2 = jax.random.split(key, 5)

    x = jax.random.normal(kx, (N, C, H, W), dtype=jnp.float32)

    # deterministic "synthetic checkpoint" init (kaiming-ish scaling)
    fan_in = C * 3 * 3
    scale = 1.0 / np.sqrt(fan_in)
    w1 = jax.random.normal(kw1, (3, 3, C, C), dtype=jnp.float32) * scale
    b1 = jax.random.normal(kb1, (C,), dtype=jnp.float32) * scale
    w2 = jax.random.normal(kw2, (3, 3, C, C), dtype=jnp.float32) * scale
    b2 = jax.random.normal(kb2, (C,), dtype=jnp.float32) * scale

    out = jax.block_until_ready(residual_block(x, w1, b1, w2, b2))
    ref = jax.block_until_ready(_reference(x, w1, b1, w2, b2))

    np.testing.assert_allclose(np.asarray(out), np.asarray(ref), atol=1e-4, rtol=1e-4)
    print("KERNEL_OK")
</pallas_src>

<mosaic_0001>
module attributes {stable_mosaic.version = 11 : i64} {
  func.func @_residual_block_kernel(%arg0: i32, %arg1: memref<1x16x16x4xf32, #tpu.memory_space<vmem>>, %arg2: memref<36x4xf32, #tpu.memory_space<vmem>>, %arg3: memref<36x4xf32, #tpu.memory_space<vmem>>, %arg4: memref<1x16x16x4xf32, #tpu.memory_space<vmem>>, %arg5: memref<18x18x4xf32, #tpu.memory_space<vmem>>, %arg6: memref<256x36xf32, #tpu.memory_space<vmem>>) attributes {dimension_semantics = [#tpu.dimension_semantics<parallel>], iteration_bounds = array<i64: 2>, scalar_prefetch = 0 : i64, scratch_operands = 2 : i64, tpu.core_type = #tpu.core_type<tc>, window_params = [{transform_indices = @transform_0, window_bounds = array<i64: 1, 16, 16, 4>}, {pipeline_mode = #tpu.pipeline_mode<synchronous>, transform_indices = @transform_1, window_bounds = array<i64: 36, 4>}, {pipeline_mode = #tpu.pipeline_mode<synchronous>, transform_indices = @transform_2, window_bounds = array<i64: 36, 4>}, {transform_indices = @transform_3, window_bounds = array<i64: 1, 16, 16, 4>}]} {
    %cst = arith.constant 0.000000e+00 : f32
    %0 = vector.broadcast %cst : f32 to vector<1x18x4xf32>
    %cst_0 = arith.constant 0.000000e+00 : f32
    %1 = vector.broadcast %cst_0 : f32 to vector<18x1x4xf32>
    %c0 = arith.constant 0 : index
    %c0_1 = arith.constant 0 : index
    %c0_2 = arith.constant 0 : index
    %2 = vector.load %arg5[%c0, %c0_1, %c0_2] : memref<18x18x4xf32, #tpu.memory_space<vmem>>, vector<1x18x4xf32>
    tpu.vector_store %arg5[%c0, %c0_1, %c0_2], %0 {strides = array<i32>} : memref<18x18x4xf32, #tpu.memory_space<vmem>>, vector<1x18x4xf32>,
    %c17 = arith.constant 17 : index
    %c0_3 = arith.constant 0 : index
    %c0_4 = arith.constant 0 : index
    %3 = vector.load %arg5[%c17, %c0_3, %c0_4] : memref<18x18x4xf32, #tpu.memory_space<vmem>>, vector<1x18x4xf32>
    tpu.vector_store %arg5[%c17, %c0_3, %c0_4], %0 {strides = array<i32>} : memref<18x18x4xf32, #tpu.memory_space<vmem>>, vector<1x18x4xf32>,
    %c0_5 = arith.constant 0 : index
    %c0_6 = arith.constant 0 : index
    %c0_7 = arith.constant 0 : index
    %4 = vector.load %arg5[%c0_5, %c0_6, %c0_7] : memref<18x18x4xf32, #tpu.memory_space<vmem>>, vector<18x1x4xf32>
    tpu.vector_store %arg5[%c0_5, %c0_6, %c0_7], %1 {strides = array<i32>} : memref<18x18x4xf32, #tpu.memory_space<vmem>>, vector<18x1x4xf32>,
    %c0_8 = arith.constant 0 : index
    %c17_9 = arith.constant 17 : index
    %c0_10 = arith.constant 0 : index
    %5 = vector.load %arg5[%c0_8, %c17_9, %c0_10] : memref<18x18x4xf32, #tpu.memory_space<vmem>>, vector<18x1x4xf32>
    tpu.vector_store %arg5[%c0_8, %c17_9, %c0_10], %1 {strides = array<i32>} : memref<18x18x4xf32, #tpu.memory_space<vmem>>, vector<18x1x4xf32>,
    %c0_11 = arith.constant 0 : index
    %c0_12 = arith.constant 0 : index
    %c0_13 = arith.constant 0 : index
    %c0_14 = arith.constant 0 : index
    %6 = vector.load %arg1[%c0_11, %c0_12, %c0_13, %c0_14] : memref<1x16x16x4xf32, #tpu.memory_space<vmem>>, vector<1x16x16x4xf32>
    %7 = vector.shape_cast %6 : vector<1x16x16x4xf32> to vector<16x16x4xf32>
    %c1 = arith.constant 1 : index
    %c1_15 = arith.constant 1 : index
    %c0_16 = arith.constant 0 : index
    %8 = vector.load %arg5[%c1, %c1_15, %c0_16] : memref<18x18x4xf32, #tpu.memory_space<vmem>>, vector<16x16x4xf32>
    tpu.vector_store %arg5[%c1, %c1_15, %c0_16], %7 {strides = array<i32>} : memref<18x18x4xf32, #tpu.memory_space<vmem>>, vector<16x16x4xf32>,
    %c0_17 = arith.constant 0 : index
    %c0_18 = arith.constant 0 : index
    %c0_19 = arith.constant 0 : index
    %9 = vector.load %arg5[%c0_17, %c0_18, %c0_19] : memref<18x18x4xf32, #tpu.memory_space<vmem>>, vector<16x16x4xf32>
    %10 = vector.shape_cast %9 : vector<16x16x4xf32> to vector<256x4xf32>
    %c0_20 = arith.constant 0 : index
    %c0_21 = arith.constant 0 : index
    %11 = vector.load %arg6[%c0_20, %c0_21] : memref<256x36xf32, #tpu.memory_space<vmem>>, vector<256x4xf32>
    tpu.vector_store %arg6[%c0_20, %c0_21], %10 {strides = array<i32>} : memref<256x36xf32, #tpu.memory_space<vmem>>, vector<256x4xf32>,
    %c0_22 = arith.constant 0 : index
    %c1_23 = arith.constant 1 : index
    %c0_24 = arith.constant 0 : index
    %12 = vector.load %arg5[%c0_22, %c1_23, %c0_24] : memref<18x18x4xf32, #tpu.memory_space<vmem>>, vector<16x16x4xf32>
    %13 = vector.shape_cast %12 : vector<16x16x4xf32> to vector<256x4xf32>
    %c0_25 = arith.constant 0 : index
    %c4 = arith.constant 4 : index
    %14 = vector.load %arg6[%c0_25, %c4] : memref<256x36xf32, #tpu.memory_space<vmem>>, vector<256x4xf32>
    tpu.vector_store %arg6[%c0_25, %c4], %13 {strides = array<i32>} : memref<256x36xf32, #tpu.memory_space<vmem>>, vector<256x4xf32>,
    %c0_26 = arith.constant 0 : index
    %c2 = arith.constant 2 : index
    %c0_27 = arith.constant 0 : index
    %15 = vector.load %arg5[%c0_26, %c2, %c0_27] : memref<18x18x4xf32, #tpu.memory_space<vmem>>, vector<16x16x4xf32>
    %16 = vector.shape_cast %15 : vector<16x16x4xf32> to vector<256x4xf32>
    %c0_28 = arith.constant 0 : index
    %c8 = arith.constant 8 : index
    %17 = vector.load %arg6[%c0_28, %c8] : memref<256x36xf32, #tpu.memory_space<vmem>>, vector<256x4xf32>
    tpu.vector_store %arg6[%c0_28, %c8], %16 {strides = array<i32>} : memref<256x36xf32, #tpu.memory_space<vmem>>, vector<256x4xf32>,
    %c1_29 = arith.constant 1 : index
    %c0_30 = arith.constant 0 : index
    %c0_31 = arith.constant 0 : index
    %18 = vector.load %arg5[%c1_29, %c0_30, %c0_31] : memref<18x18x4xf32, #tpu.memory_space<vmem>>, vector<16x16x4xf32>
    %19 = vector.shape_cast %18 : vector<16x16x4xf32> to vector<256x4xf32>
    %c0_32 = arith.constant 0 : index
    %c12 = arith.constant 12 : index
    %20 = vector.load %arg6[%c0_32, %c12] : memref<256x36xf32, #tpu.memory_space<vmem>>, vector<256x4xf32>
    tpu.vector_store %arg6[%c0_32, %c12], %19 {strides = array<i32>} : memref<256x36xf32, #tpu.memory_space<vmem>>, vector<256x4xf32>,
    %c1_33 = arith.constant 1 : index
    %c1_34 = arith.constant 1 : index
    %c0_35 = arith.constant 0 : index
    %21 = vector.load %arg5[%c1_33, %c1_34, %c0_35] : memref<18x18x4xf32, #tpu.memory_space<vmem>>, vector<16x16x4xf32>
    %22 = vector.shape_cast %21 : vector<16x16x4xf32> to vector<256x4xf32>
    %c0_36 = arith.constant 0 : index
    %c16 = arith.constant 16 : index
    %23 = vector.load %arg6[%c0_36, %c16] : memref<256x36xf32, #tpu.memory_space<vmem>>, vector<256x4xf32>
    tpu.vector_store %arg6[%c0_36, %c16], %22 {strides = array<i32>} : memref<256x36xf32, #tpu.memory_space<vmem>>, vector<256x4xf32>,
    %c1_37 = arith.constant 1 : index
    %c2_38 = arith.constant 2 : index
    %c0_39 = arith.constant 0 : index
    %24 = vector.load %arg5[%c1_37, %c2_38, %c0_39] : memref<18x18x4xf32, #tpu.memory_space<vmem>>, vector<16x16x4xf32>
    %25 = vector.shape_cast %24 : vector<16x16x4xf32> to vector<256x4xf32>
    %c0_40 = arith.constant 0 : index
    %c20 = arith.constant 20 : index
    %26 = vector.load %arg6[%c0_40, %c20] : memref<256x36xf32, #tpu.memory_space<vmem>>, vector<256x4xf32>
    tpu.vector_store %arg6[%c0_40, %c20], %25 {strides = array<i32>} : memref<256x36xf32, #tpu.memory_space<vmem>>, vector<256x4xf32>,
    %c2_41 = arith.constant 2 : index
    %c0_42 = arith.constant 0 : index
    %c0_43 = arith.constant 0 : index
    %27 = vector.load %arg5[%c2_41, %c0_42, %c0_43] : memref<18x18x4xf32, #tpu.memory_space<vmem>>, vector<16x16x4xf32>
    %28 = vector.shape_cast %27 : vector<16x16x4xf32> to vector<256x4xf32>
    %c0_44 = arith.constant 0 : index
    %c24 = arith.constant 24 : index
    %29 = vector.load %arg6[%c0_44, %c24] : memref<256x36xf32, #tpu.memory_space<vmem>>, vector<256x4xf32>
    tpu.vector_store %arg6[%c0_44, %c24], %28 {strides = array<i32>} : memref<256x36xf32, #tpu.memory_space<vmem>>, vector<256x4xf32>,
    %c2_45 = arith.constant 2 : index
    %c1_46 = arith.constant 1 : index
    %c0_47 = arith.constant 0 : index
    %30 = vector.load %arg5[%c2_45, %c1_46, %c0_47] : memref<18x18x4xf32, #tpu.memory_space<vmem>>, vector<16x16x4xf32>
    %31 = vector.shape_cast %30 : vector<16x16x4xf32> to vector<256x4xf32>
    %c0_48 = arith.constant 0 : index
    %c28 = arith.constant 28 : index
    %32 = vector.load %arg6[%c0_48, %c28] : memref<256x36xf32, #tpu.memory_space<vmem>>, vector<256x4xf32>
    tpu.vector_store %arg6[%c0_48, %c28], %31 {strides = array<i32>} : memref<256x36xf32, #tpu.memory_space<vmem>>, vector<256x4xf32>,
    %c2_49 = arith.constant 2 : index
    %c2_50 = arith.constant 2 : index
    %c0_51 = arith.constant 0 : index
    %33 = vector.load %arg5[%c2_49, %c2_50, %c0_51] : memref<18x18x4xf32, #tpu.memory_space<vmem>>, vector<16x16x4xf32>
    %34 = vector.shape_cast %33 : vector<16x16x4xf32> to vector<256x4xf32>
    %c0_52 = arith.constant 0 : index
    %c32 = arith.constant 32 : index
    %35 = vector.load %arg6[%c0_52, %c32] : memref<256x36xf32, #tpu.memory_space<vmem>>, vector<256x4xf32>
    tpu.vector_store %arg6[%c0_52, %c32], %34 {strides = array<i32>} : memref<256x36xf32, #tpu.memory_space<vmem>>, vector<256x4xf32>,
    %c0_53 = arith.constant 0 : index
    %c0_54 = arith.constant 0 : index
    %36 = vector.load %arg6[%c0_53, %c0_54] : memref<256x36xf32, #tpu.memory_space<vmem>>, vector<256x36xf32>
    %c0_55 = arith.constant 0 : index
    %c0_56 = arith.constant 0 : index
    %37 = vector.load %arg2[%c0_55, %c0_56] : memref<36x4xf32, #tpu.memory_space<vmem>>, vector<36x4xf32>
    %cst_57 = arith.constant dense<0.000000e+00> : vector<256x4xf32>
    %38 = tpu.matmul %36, %37, %cst_57 {dimension_numbers = #tpu.dot_dimension_numbers<[1], [0], [0], [1], [0, 0, 1, 1], [], []>} : vector<256x36xf32>, vector<36x4xf32>, vector<256x4xf32> -> vector<256x4xf32>
    %cst_58 = arith.constant dense<0.000000e+00> : vector<4xf32>
    %39 = vector.multi_reduction <add>, %38, %cst_58 [0] : vector<256x4xf32> to vector<4xf32>
    %40 = vector.shape_cast %39 : vector<4xf32> to vector<1x4xf32>
    %cst_59 = arith.constant 3.906250e-03 : f32
    %41 = vector.broadcast %cst_59 : f32 to vector<1x4xf32>
    %42 = arith.mulf %40, %41 : vector<1x4xf32>
    %43 = arith.mulf %38, %38 : vector<256x4xf32>
    %cst_60 = arith.constant dense<0.000000e+00> : vector<4xf32>
    %44 = vector.multi_reduction <add>, %43, %cst_60 [0] : vector<256x4xf32> to vector<4xf32>
    %45 = vector.shape_cast %44 : vector<4xf32> to vector<1x4xf32>
    %cst_61 = arith.constant 3.906250e-03 : f32
    %46 = vector.broadcast %cst_61 : f32 to vector<1x4xf32>
    %47 = arith.mulf %45, %46 : vector<1x4xf32>
    %48 = arith.mulf %42, %42 : vector<1x4xf32>
    %49 = arith.subf %47, %48 : vector<1x4xf32>
    %cst_62 = arith.constant 0.000000e+00 : f32
    %50 = vector.broadcast %cst_62 : f32 to vector<1x4xf32>
    %51 = arith.maximumf %49, %50 : vector<1x4xf32>
    %52 = vector.broadcast %42 : vector<1x4xf32> to vector<256x4xf32>
    %53 = arith.subf %38, %52 : vector<256x4xf32>
    %cst_63 = arith.constant 9.99999974E-6 : f32
    %54 = vector.broadcast %cst_63 : f32 to vector<1x4xf32>
    %55 = arith.addf %51, %54 : vector<1x4xf32>
    %56 = math.rsqrt %55 : vector<1x4xf32>
    %57 = vector.broadcast %56 : vector<1x4xf32> to vector<256x4xf32>
    %58 = arith.mulf %53, %57 : vector<256x4xf32>
    %cst_64 = arith.constant 0.000000e+00 : f32
    %59 = vector.broadcast %cst_64 : f32 to vector<256x4xf32>
    %60 = arith.maximumf %58, %59 : vector<256x4xf32>
    %61 = vector.shape_cast %60 : vector<256x4xf32> to vector<16x16x4xf32>
    %c1_65 = arith.constant 1 : index
    %c1_66 = arith.constant 1 : index
    %c0_67 = arith.constant 0 : index
    %62 = vector.load %arg5[%c1_65, %c1_66, %c0_67] : memref<18x18x4xf32, #tpu.memory_space<vmem>>, vector<16x16x4xf32>
    tpu.vector_store %arg5[%c1_65, %c1_66, %c0_67], %61 {strides = array<i32>} : memref<18x18x4xf32, #tpu.memory_space<vmem>>, vector<16x16x4xf32>,
    %c0_68 = arith.constant 0 : index
    %c0_69 = arith.constant 0 : index
    %c0_70 = arith.constant 0 : index
    %63 = vector.load %arg5[%c0_68, %c0_69, %c0_70] : memref<18x18x4xf32, #tpu.memory_space<vmem>>, vector<16x16x4xf32>
    %64 = vector.shape_cast %63 : vector<16x16x4xf32> to vector<256x4xf32>
    %c0_71 = arith.constant 0 : index
    %c0_72 = arith.constant 0 : index
    %65 = vector.load %arg6[%c0_71, %c0_72] : memref<256x36xf32, #tpu.memory_space<vmem>>, vector<256x4xf32>
    tpu.vector_store %arg6[%c0_71, %c0_72], %64 {strides = array<i32>} : memref<256x36xf32, #tpu.memory_space<vmem>>, vector<256x4xf32>,
    %c0_73 = arith.constant 0 : index
    %c1_74 = arith.constant 1 : index
    %c0_75 = arith.constant 0 : index
    %66 = vector.load %arg5[%c0_73, %c1_74, %c0_75] : memref<18x18x4xf32, #tpu.memory_space<vmem>>, vector<16x16x4xf32>
    %67 = vector.shape_cast %66 : vector<16x16x4xf32> to vector<256x4xf32>
    %c0_76 = arith.constant 0 : index
    %c4_77 = arith.constant 4 : index
    %68 = vector.load %arg6[%c0_76, %c4_77] : memref<256x36xf32, #tpu.memory_space<vmem>>, vector<256x4xf32>
    tpu.vector_store %arg6[%c0_76, %c4_77], %67 {strides = array<i32>} : memref<256x36xf32, #tpu.memory_space<vmem>>, vector<256x4xf32>,
    %c0_78 = arith.constant 0 : index
    %c2_79 = arith.constant 2 : index
    %c0_80 = arith.constant 0 : index
    %69 = vector.load %arg5[%c0_78, %c2_79, %c0_80] : memref<18x18x4xf32, #tpu.memory_space<vmem>>, vector<16x16x4xf32>
    %70 = vector.shape_cast %69 : vector<16x16x4xf32> to vector<256x4xf32>
    %c0_81 = arith.constant 0 : index
    %c8_82 = arith.constant 8 : index
    %71 = vector.load %arg6[%c0_81, %c8_82] : memref<256x36xf32, #tpu.memory_space<vmem>>, vector<256x4xf32>
    tpu.vector_store %arg6[%c0_81, %c8_82], %70 {strides = array<i32>} : memref<256x36xf32, #tpu.memory_space<vmem>>, vector<256x4xf32>,
    %c1_83 = arith.constant 1 : index
    %c0_84 = arith.constant 0 : index
    %c0_85 = arith.constant 0 : index
    %72 = vector.load %arg5[%c1_83, %c0_84, %c0_85] : memref<18x18x4xf32, #tpu.memory_space<vmem>>, vector<16x16x4xf32>
    %73 = vector.shape_cast %72 : vector<16x16x4xf32> to vector<256x4xf32>
    %c0_86 = arith.constant 0 : index
    %c12_87 = arith.constant 12 : index
    %74 = vector.load %arg6[%c0_86, %c12_87] : memref<256x36xf32, #tpu.memory_space<vmem>>, vector<256x4xf32>
    tpu.vector_store %arg6[%c0_86, %c12_87], %73 {strides = array<i32>} : memref<256x36xf32, #tpu.memory_space<vmem>>, vector<256x4xf32>,
    %c1_88 = arith.constant 1 : index
    %c1_89 = arith.constant 1 : index
    %c0_90 = arith.constant 0 : index
    %75 = vector.load %arg5[%c1_88, %c1_89, %c0_90] : memref<18x18x4xf32, #tpu.memory_space<vmem>>, vector<16x16x4xf32>
    %76 = vector.shape_cast %75 : vector<16x16x4xf32> to vector<256x4xf32>
    %c0_91 = arith.constant 0 : index
    %c16_92 = arith.constant 16 : index
    %77 = vector.load %arg6[%c0_91, %c16_92] : memref<256x36xf32, #tpu.memory_space<vmem>>, vector<256x4xf32>
    tpu.vector_store %arg6[%c0_91, %c16_92], %76 {strides = array<i32>} : memref<256x36xf32, #tpu.memory_space<vmem>>, vector<256x4xf32>,
    %c1_93 = arith.constant 1 : index
    %c2_94 = arith.constant 2 : index
    %c0_95 = arith.constant 0 : index
    %78 = vector.load %arg5[%c1_93, %c2_94, %c0_95] : memref<18x18x4xf32, #tpu.memory_space<vmem>>, vector<16x16x4xf32>
    %79 = vector.shape_cast %78 : vector<16x16x4xf32> to vector<256x4xf32>
    %c0_96 = arith.constant 0 : index
    %c20_97 = arith.constant 20 : index
    %80 = vector.load %arg6[%c0_96, %c20_97] : memref<256x36xf32, #tpu.memory_space<vmem>>, vector<256x4xf32>
    tpu.vector_store %arg6[%c0_96, %c20_97], %79 {strides = array<i32>} : memref<256x36xf32, #tpu.memory_space<vmem>>, vector<256x4xf32>,
    %c2_98 = arith.constant 2 : index
    %c0_99 = arith.constant 0 : index
    %c0_100 = arith.constant 0 : index
    %81 = vector.load %arg5[%c2_98, %c0_99, %c0_100] : memref<18x18x4xf32, #tpu.memory_space<vmem>>, vector<16x16x4xf32>
    %82 = vector.shape_cast %81 : vector<16x16x4xf32> to vector<256x4xf32>
    %c0_101 = arith.constant 0 : index
    %c24_102 = arith.constant 24 : index
    %83 = vector.load %arg6[%c0_101, %c24_102] : memref<256x36xf32, #tpu.memory_space<vmem>>, vector<256x4xf32>
    tpu.vector_store %arg6[%c0_101, %c24_102], %82 {strides = array<i32>} : memref<256x36xf32, #tpu.memory_space<vmem>>, vector<256x4xf32>,
    %c2_103 = arith.constant 2 : index
    %c1_104 = arith.constant 1 : index
    %c0_105 = arith.constant 0 : index
    %84 = vector.load %arg5[%c2_103, %c1_104, %c0_105] : memref<18x18x4xf32, #tpu.memory_space<vmem>>, vector<16x16x4xf32>
    %85 = vector.shape_cast %84 : vector<16x16x4xf32> to vector<256x4xf32>
    %c0_106 = arith.constant 0 : index
    %c28_107 = arith.constant 28 : index
    %86 = vector.load %arg6[%c0_106, %c28_107] : memref<256x36xf32, #tpu.memory_space<vmem>>, vector<256x4xf32>
    tpu.vector_store %arg6[%c0_106, %c28_107], %85 {strides = array<i32>} : memref<256x36xf32, #tpu.memory_space<vmem>>, vector<256x4xf32>,
    %c2_108 = arith.constant 2 : index
    %c2_109 = arith.constant 2 : index
    %c0_110 = arith.constant 0 : index
    %87 = vector.load %arg5[%c2_108, %c2_109, %c0_110] : memref<18x18x4xf32, #tpu.memory_space<vmem>>, vector<16x16x4xf32>
    %88 = vector.shape_cast %87 : vector<16x16x4xf32> to vector<256x4xf32>
    %c0_111 = arith.constant 0 : index
    %c32_112 = arith.constant 32 : index
    %89 = vector.load %arg6[%c0_111, %c32_112] : memref<256x36xf32, #tpu.memory_space<vmem>>, vector<256x4xf32>
    tpu.vector_store %arg6[%c0_111, %c32_112], %88 {strides = array<i32>} : memref<256x36xf32, #tpu.memory_space<vmem>>, vector<256x4xf32>,
    %c0_113 = arith.constant 0 : index
    %c0_114 = arith.constant 0 : index
    %90 = vector.load %arg6[%c0_113, %c0_114] : memref<256x36xf32, #tpu.memory_space<vmem>>, vector<256x36xf32>
    %c0_115 = arith.constant 0 : index
    %c0_116 = arith.constant 0 : index
    %91 = vector.load %arg3[%c0_115, %c0_116] : memref<36x4xf32, #tpu.memory_space<vmem>>, vector<36x4xf32>
    %cst_117 = arith.constant dense<0.000000e+00> : vector<256x4xf32>
    %92 = tpu.matmul %90, %91, %cst_117 {dimension_numbers = #tpu.dot_dimension_numbers<[1], [0], [0], [1], [0, 0, 1, 1], [], []>} : vector<256x36xf32>, vector<36x4xf32>, vector<256x4xf32> -> vector<256x4xf32>
    %cst_118 = arith.constant dense<0.000000e+00> : vector<4xf32>
    %93 = vector.multi_reduction <add>, %92, %cst_118 [0] : vector<256x4xf32> to vector<4xf32>
    %94 = vector.shape_cast %93 : vector<4xf32> to vector<1x4xf32>
    %cst_119 = arith.constant 3.906250e-03 : f32
    %95 = vector.broadcast %cst_119 : f32 to vector<1x4xf32>
    %96 = arith.mulf %94, %95 : vector<1x4xf32>
    %97 = arith.mulf %92, %92 : vector<256x4xf32>
    %cst_120 = arith.constant dense<0.000000e+00> : vector<4xf32>
    %98 = vector.multi_reduction <add>, %97, %cst_120 [0] : vector<256x4xf32> to vector<4xf32>
    %99 = vector.shape_cast %98 : vector<4xf32> to vector<1x4xf32>
    %cst_121 = arith.constant 3.906250e-03 : f32
    %100 = vector.broadcast %cst_121 : f32 to vector<1x4xf32>
    %101 = arith.mulf %99, %100 : vector<1x4xf32>
    %102 = arith.mulf %96, %96 : vector<1x4xf32>
    %103 = arith.subf %101, %102 : vector<1x4xf32>
    %cst_122 = arith.constant 0.000000e+00 : f32
    %104 = vector.broadcast %cst_122 : f32 to vector<1x4xf32>
    %105 = arith.maximumf %103, %104 : vector<1x4xf32>
    %106 = vector.broadcast %96 : vector<1x4xf32> to vector<256x4xf32>
    %107 = arith.subf %92, %106 : vector<256x4xf32>
    %cst_123 = arith.constant 9.99999974E-6 : f32
    %108 = vector.broadcast %cst_123 : f32 to vector<1x4xf32>
    %109 = arith.addf %105, %108 : vector<1x4xf32>
    %110 = math.rsqrt %109 : vector<1x4xf32>
    %111 = vector.broadcast %110 : vector<1x4xf32> to vector<256x4xf32>
    %112 = arith.mulf %107, %111 : vector<256x4xf32>
    %c0_124 = arith.constant 0 : index
    %c0_125 = arith.constant 0 : index
    %c0_126 = arith.constant 0 : index
    %c0_127 = arith.constant 0 : index
    %113 = vector.load %arg1[%c0_124, %c0_125, %c0_126, %c0_127] : memref<1x16x16x4xf32, #tpu.memory_space<vmem>>, vector<1x16x16x4xf32>
    %114 = vector.shape_cast %113 : vector<1x16x16x4xf32> to vector<16x16x4xf32>
    %115 = vector.shape_cast %114 : vector<16x16x4xf32> to vector<256x4xf32>
    %116 = arith.addf %112, %115 : vector<256x4xf32>
    %cst_128 = arith.constant 0.000000e+00 : f32
    %117 = vector.broadcast %cst_128 : f32 to vector<256x4xf32>
    %118 = arith.maximumf %116, %117 : vector<256x4xf32>
    %119 = vector.shape_cast %118 : vector<256x4xf32> to vector<16x16x4xf32>
    %c0_129 = arith.constant 0 : index
    %c0_130 = arith.constant 0 : index
    %c0_131 = arith.constant 0 : index
    %c0_132 = arith.constant 0 : index
    %120 = vector.load %arg4[%c0_129, %c0_130, %c0_131, %c0_132] : memref<1x16x16x4xf32, #tpu.memory_space<vmem>>, vector<1x16x16x4xf32>
    %121 = vector.shape_cast %120 : vector<1x16x16x4xf32> to vector<16x16x4xf32>
    %122 = vector.shape_cast %119 : vector<16x16x4xf32> to vector<1x16x16x4xf32>
    tpu.vector_store %arg4[%c0_129, %c0_130, %c0_131, %c0_132], %122 {strides = array<i32>} : memref<1x16x16x4xf32, #tpu.memory_space<vmem>>, vector<1x16x16x4xf32>,
    return
  }
  func.func @transform_0(%arg0: i32) -> (i32, i32, i32, i32) {
    %c0_i32 = arith.constant 0 : i32
    %c0_i32_0 = arith.constant 0 : i32
    %c0_i32_1 = arith.constant 0 : i32
    %c0_i32_2 = arith.constant 0 : i32
    return %arg0, %c0_i32, %c0_i32_0, %c0_i32_1 : i32, i32, i32, i32
  }
  func.func @transform_1(%arg0: i32) -> (i32, i32) {
    %c0_i32 = arith.constant 0 : i32
    %c0_i32_0 = arith.constant 0 : i32
    %c0_i32_1 = arith.constant 0 : i32
    return %c0_i32, %c0_i32_0 : i32, i32
  }
  func.func @transform_2(%arg0: i32) -> (i32, i32) {
    %c0_i32 = arith.constant 0 : i32
    %c0_i32_0 = arith.constant 0 : i32
    %c0_i32_1 = arith.constant 0 : i32
    return %c0_i32, %c0_i32_0 : i32, i32
  }
  func.func @transform_3(%arg0: i32) -> (i32, i32, i32, i32) {
    %c0_i32 = arith.constant 0 : i32
    %c0_i32_0 = arith.constant 0 : i32
    %c0_i32_1 = arith.constant 0 : i32
    %c0_i32_2 = arith.constant 0 : i32
    return %arg0, %c0_i32, %c0_i32_0, %c0_i32_1 : i32, i32, i32, i32
  }
}

</mosaic_0001>

<llo_original>
// kernel: tpu_custom_call.1
$region0: #{tpu_custom_call.1}
  #allocation0 [shape = 'u32[]', space=smem, size = 0x4, offset = 0x4, fixed_abs, tag = 'smem constant byte address 0x4 - core index']
  #allocation1 [shape = 'u32[72,128]{1,0:T(1,128)}', space=vmem, size = 0x9000, scoped, tag = 'internal scratch']
  #allocation2 [shape = 'f32[18,18,4]{2,1,0:T(8,128)}', space=vmem, size = 0x36000, scoped, tag = 'scratch operand']
  #allocation3 [shape = 'f32[256,36]{1,0:T(8,128)}', space=vmem, size = 0x20000, scoped, tag = 'scratch operand']
  %s0 = inlined_call_operand.vmem [shape: f32[2,16,16,4], index: 0, kind: input, shape index: {}]
  %s1 = inlined_call_operand.vmem [shape: f32[36,4], index: 1, kind: input, shape index: {}]
  %s2 = inlined_call_operand.vmem [shape: f32[36,4], index: 2, kind: input, shape index: {}]
  %s3 = inlined_call_operand.vmem [shape: f32[2,16,16,4], index: 3, kind: output, shape index: {}]
  %s4 = sld [smem:[#allocation0]]
  $region45: #{tpu_custom_call.1} parent=0
    _
  %s6 = ssub.s32 1, %s4
  %s7 = scalar_select 0, %s6, %s4
  loop: start=0, step=1, limit=4
  $region2: #{tpu_custom_call.1} parent=0 // loop_pre_header
    _
  $region3: #{tpu_custom_call.1} parent=0 // loop_header
    %s9 = sphi 0, %s13
    %p10 = scmp.ge.s32.totalorder %s9, 4
    %s19 = sphi 0, %s21
    %s22 = sphi 0, %s19
    %s23 = sphi 0, %s22
    %s39 = sphi 0, %s23
    %s43 = sphi 0, %s43
    %s45 = sphi 0, %s43
    %s46 = sphi 0, %s45
    %s60 = sphi 0, %s46
    %s64 = sphi 0, %s64
    %s66 = sphi 0, %s64
    %s67 = sphi 0, %s66
    %s81 = sphi 0, %s67
    %s87 = sphi 0, %s89
    %s90 = sphi 0, %s87
    %s91 = sphi 0, %s90
    %s107 = sphi 0, %s91
  $region4: #{tpu_custom_call.1} parent=0 // loop_header_branch
    %12 = sbr.rel (%p10) target = $region8
  $region5: #{tpu_custom_call.1} parent=0 // loop_body
    %s14 = ssub.s32 %s9, 1
    %s15 = ssub.s32 %s9, 2
    %s16 = sadd.s32 %s9, 1
    %s17 = ssub.s32 %s9, %s16
    %p18 = scmp.eq.s32.totalorder %s17, 0
    %s20 = sadd.s32 %s19, 1
    %s21 = scalar_select %p18, %s19, %s20
    %p24 = pneg %p18
    %p25 = scmp.eq.s32.totalorder %s9, 1
    %p26 = por %p24, %p25
    %p27 = scmp.ne.s32.totalorder %s19, %s22
    %p28 = scmp.eq.s32.totalorder %s9, 0
    %p29 = por %p27, %p28
    %p30 = scmp.ne.s32.totalorder %s19, %s22
    %p31 = scmp.eq.s32.totalorder %s14, 1
    %p32 = por %p30, %p31
    %p33 = scmp.ne.s32.totalorder %s22, %s23
    %p34 = scmp.eq.s32.totalorder %s14, 0
    %p35 = por %p33, %p34
    %p36 = scmp.ne.s32.totalorder %s22, %s23
    %p37 = scmp.eq.s32.totalorder %s15, 1
    %p38 = por %p36, %p37
    %p40 = scmp.ne.s32.totalorder %s23, %s39
    %p41 = scmp.eq.s32.totalorder %s15, 0
    %p42 = por %p40, %p41
    %s44 = sadd.s32 %s43, 1
    %p47 = scmp.eq.s32.totalorder %s9, 1
    %p48 = scmp.ne.s32.totalorder %s43, %s45
    %p49 = scmp.eq.s32.totalorder %s9, 0
    %p50 = por %p48, %p49
    %p51 = scmp.ne.s32.totalorder %s43, %s45
    %p52 = scmp.eq.s32.totalorder %s14, 1
    %p53 = por %p51, %p52
    %p54 = scmp.ne.s32.totalorder %s45, %s46
    %p55 = scmp.eq.s32.totalorder %s14, 0
    %p56 = por %p54, %p55
    %p57 = scmp.ne.s32.totalorder %s45, %s46
    %p58 = scmp.eq.s32.totalorder %s15, 1
    %p59 = por %p57, %p58
    %p61 = scmp.ne.s32.totalorder %s46, %s60
    %p62 = scmp.eq.s32.totalorder %s15, 0
    %p63 = por %p61, %p62
    %s65 = sadd.s32 %s64, 1
    %p68 = scmp.eq.s32.totalorder %s9, 1
    %p69 = scmp.ne.s32.totalorder %s64, %s66
    %p70 = scmp.eq.s32.totalorder %s9, 0
    %p71 = por %p69, %p70
    %p72 = scmp.ne.s32.totalorder %s64, %s66
    %p73 = scmp.eq.s32.totalorder %s14, 1
    %p74 = por %p72, %p73
    %p75 = scmp.ne.s32.totalorder %s66, %s67
    %p76 = scmp.eq.s32.totalorder %s14, 0
    %p77 = por %p75, %p76
    %p78 = scmp.ne.s32.totalorder %s66, %s67
    %p79 = scmp.eq.s32.totalorder %s15, 1
    %p80 = por %p78, %p79
    %p82 = scmp.ne.s32.totalorder %s67, %s81
    %p83 = scmp.eq.s32.totalorder %s15, 0
    %p84 = por %p82, %p83
    %s85 = ssub.s32 %s9, %s16
    %p86 = scmp.eq.s32.totalorder %s85, 0
    %s88 = sadd.s32 %s87, 1
    %s89 = scalar_select %p86, %s87, %s88
    %p92 = pneg %p86
    %p93 = scmp.eq.s32.totalorder %s9, 1
    %p94 = por %p92, %p93
    %p95 = scmp.ne.s32.totalorder %s87, %s90
    %p96 = scmp.eq.s32.totalorder %s9, 0
    %p97 = por %p95, %p96
    %p98 = scmp.ne.s32.totalorder %s87, %s90
    %p99 = scmp.eq.s32.totalorder %s14, 1
    %p100 = por %p98, %p99
    %p101 = scmp.ne.s32.totalorder %s90, %s91
    %p102 = scmp.eq.s32.totalorder %s14, 0
    %p103 = por %p101, %p102
    %p104 = scmp.ne.s32.totalorder %s90, %s91
    %p105 = scmp.eq.s32.totalorder %s15, 1
    %p106 = por %p104, %p105
    %p108 = scmp.ne.s32.totalorder %s91, %s107
    %p109 = scmp.eq.s32.totalorder %s15, 0
    %p110 = por %p108, %p109
    %p111 = scmp.le.s32.totalorder 1, %s9
    %p112 = scmp.lt.s32.totalorder %s9, 3
    %p113 = pnand %p111, %p112
    %p114 = pneg %p113
    // Predicated region
    $region9: #{tpu_custom_call.1} parent=5 // pred_check
      _
    $region10: #{tpu_custom_call.1} parent=5 // pred_check_branch
      %116 = sbr.rel (%p113) target = $region12
    $region11: #{tpu_custom_call.1} parent=5 // pred_region
      %s117 = ssub.s32 %s9, 1
      // Predicated region
      $region13: #{tpu_custom_call.1} parent=11 // pred_check
        %p118 = pneg %p56
      $region14: #{tpu_custom_call.1} parent=11 // pred_check_branch
        %120 = sbr.rel (%p118) target = $region16
      $region15: #{tpu_custom_call.1} parent=11 // pred_region
        _
      $region16: #{tpu_custom_call.1} parent=11 // pred_fallthru
        _
      // Predicated region
      $region17: #{tpu_custom_call.1} parent=11 // pred_check
        %p121 = pneg %p77
      $region18: #{tpu_custom_call.1} parent=11 // pred_check_branch
        %123 = sbr.rel (%p121) target = $region20
      $region19: #{tpu_custom_call.1} parent=11 // pred_region
        _
      $region20: #{tpu_custom_call.1} parent=11 // pred_fallthru
        _
    $region12: #{tpu_custom_call.1} parent=5 // pred_fallthru
      _
    %p124 = scmp.lt.s32.totalorder %s9, 2
    // Predicated region
    $region21: #{tpu_custom_call.1} parent=5 // pred_check
      %p125 = pneg %p124
    $region22: #{tpu_custom_call.1} parent=5 // pred_check_branch
      %127 = sbr.rel (%p125) target = $region24
    $region23: #{tpu_custom_call.1} parent=5 // pred_region
      // Predicated region
      $region25: #{tpu_custom_call.1} parent=23 // pred_check
        %p128 = pneg %p29
      $region26: #{tpu_custom_call.1} parent=23 // pred_check_branch
        %130 = sbr.rel (%p128) target = $region28
      $region27: #{tpu_custom_call.1} parent=23 // pred_region
        %p131 = scmp.lt.s32.totalorder %s9, 1
        %s132 = scalar_select %p131, %s9, 1
        %s133 = smul.addr %s132, 32
        %s134 = smul.addr %s133, 8
        %s135 = scalar_lea.vmem %s0, %s134
      $region28: #{tpu_custom_call.1} parent=23 // pred_fallthru
        _
    $region24: #{tpu_custom_call.1} parent=5 // pred_fallthru
      _
    %p136 = scmp.le.s32.totalorder 1, %s9
    %p137 = scmp.lt.s32.totalorder %s9, 3
    %p138 = pnand %p136, %p137
    %p139 = pneg %p138
    // Predicated region
    $region29: #{tpu_custom_call.1} parent=5 // pred_check
      _
    $region30: #{tpu_custom_call.1} parent=5 // pred_check_branch
      %141 = sbr.rel (%p138) target = $region32
    $region31: #{tpu_custom_call.1} parent=5 // pred_region
      %s142 = ssub.s32 %s9, 1
      %p143 = scmp.lt.s32.totalorder %s14, 1
      %s144 = scalar_select %p143, %s14, 1
      %s145 = smul.addr %s144, 32
      %s146 = smul.addr %s145, 8
      %s147 = scalar_lea.vmem %s0, %s146
      %p148 = pneg %p35
      %p149 = pneg %p32
      %p150 = pneg %p56
      %p151 = pneg %p53
      %p152 = pneg %p77
      %p153 = pneg %p74
      %p154 = pneg %p103
      %p155 = pneg %p100
      %p156 = scmp.lt.s32.totalorder %s14, 1
      %s157 = scalar_select %p156, %s14, 1
      %s158 = smul.addr %s157, 32
      %s159 = smul.addr %s158, 8
      %s160 = scalar_lea.vmem %s3, %s159
      %p161 = scmp.lt.s32.totalorder %s14, 1
      %s162 = scalar_select %p161, %s14, 1
      %s163 = smul.addr %s162, 32
      %s164 = smul.addr %s163, 8
      %s165 = scalar_lea.vmem %s0, %s164
      %p166 = scmp.lt.s32.totalorder %s14, 1
      %s167 = scalar_select %p166, %s14, 1
      %s168 = smul.addr %s167, 32
      %s169 = smul.addr %s168, 8
      %s170 = scalar_lea.vmem %s3, %s169
      %vm171 = vcmask 31744
      %172 = vst.msk [vmem:[#allocation2] sm:$0xff] %vm171, 0.0
      %173 = vst.msk [vmem:[#allocation2 + $0x8] sm:$0xff] %vm171, 0.0
      %vm174 = vcmask 25600
      %175 = vst.msk [vmem:[#allocation2 + $0x10] sm:$0x3] %vm174, 0.0
      %s176 = scalar_lea.vmem [#allocation2], 408
      %177 = vst.msk [vmem:[%s176] sm:$0xff] %vm171, 0.0
      %178 = vst.msk [vmem:[%s176 + $0x8] sm:$0xff] %vm171, 0.0
      %179 = vst.msk [vmem:[%s176 + $0x10] sm:$0x3] %vm174, 0.0
      %vm180 = vcmask 24576
      %181 = vst.msk [vmem:[#allocation2] sm:$0x1] %vm180, 0.0
      %182 = vst.msk [vmem:[#allocation2 + $0x18] sm:$0x1] %vm180, 0.0
      %183 = vst.msk [vmem:[#allocation2 + $0x30] sm:$0x1] %vm180, 0.0
      %184 = vst.msk [vmem:[#allocation2 + $0x48] sm:$0x1] %vm180, 0.0
      %185 = vst.msk [vmem:[#allocation2 + $0x60] sm:$0x1] %vm180, 0.0
      %186 = vst.msk [vmem:[#allocation2 + $0x78] sm:$0x1] %vm180, 0.0
      %187 = vst.msk [vmem:[#allocation2 + $0x90] sm:$0x1] %vm180, 0.0
      %188 = vst.msk [vmem:[#allocation2 + $0xa8] sm:$0x1] %vm180, 0.0
      %189 = vst.msk [vmem:[#allocation2 + $0xc0] sm:$0x1] %vm180, 0.0
      %190 = vst.msk [vmem:[#allocation2 + $0xd8] sm:$0x1] %vm180, 0.0
      %191 = vst.msk [vmem:[#allocation2 + $0xf0] sm:$0x1] %vm180, 0.0
      %192 = vst.msk [vmem:[#allocation2 + $0x108] sm:$0x1] %vm180, 0.0
      %193 = vst.msk [vmem:[#allocation2 + $0x120] sm:$0x1] %vm180, 0.0
      %194 = vst.msk [vmem:[#allocation2 + $0x138] sm:$0x1] %vm180, 0.0
      %195 = vst.msk [vmem:[#allocation2 + $0x150] sm:$0x1] %vm180, 0.0
      %196 = vst.msk [vmem:[#allocation2 + $0x168] sm:$0x1] %vm180, 0.0
      %197 = vst.msk [vmem:[#allocation2 + $0x180] sm:$0x1] %vm180, 0.0
      %198 = vst.msk [vmem:[#allocation2 + $0x198] sm:$0x1] %vm180, 0.0
      %199 = vst.msk [vmem:[#allocation2 + $0x11] sm:$0x1] %vm180, 0.0
      %200 = vst.msk [vmem:[#allocation2 + $0x29] sm:$0x1] %vm180, 0.0
      %201 = vst.msk [vmem:[#allocation2 + $0x41] sm:$0x1] %vm180, 0.0
      %202 = vst.msk [vmem:[#allocation2 + $0x59] sm:$0x1] %vm180, 0.0
      %203 = vst.msk [vmem:[#allocation2 + $0x71] sm:$0x1] %vm180, 0.0
      %204 = vst.msk [vmem:[#allocation2 + $0x89] sm:$0x1] %vm180, 0.0
      %205 = vst.msk [vmem:[#allocation2 + $0xa1] sm:$0x1] %vm180, 0.0
      %206 = vst.msk [vmem:[#allocation2 + $0xb9] sm:$0x1] %vm180, 0.0
      %207 = vst.msk [vmem:[#allocation2 + $0xd1] sm:$0x1] %vm180, 0.0
      %208 = vst.msk [vmem:[#allocation2 + $0xe9] sm:$0x1] %vm180, 0.0
      %209 = vst.msk [vmem:[#allocation2 + $0x101] sm:$0x1] %vm180, 0.0
      %210 = vst.msk [vmem:[#allocation2 + $0x119] sm:$0x1] %vm180, 0.0
      %211 = vst.msk [vmem:[#allocation2 + $0x131] sm:$0x1] %vm180, 0.0
      %212 = vst.msk [vmem:[#allocation2 + $0x149] sm:$0x1] %vm180, 0.0
      %213 = vst.msk [vmem:[#allocation2 + $0x161] sm:$0x1] %vm180, 0.0
      %214 = vst.msk [vmem:[#allocation2 + $0x179] sm:$0x1] %vm180, 0.0
      %215 = vst.msk [vmem:[#allocation2 + $0x191] sm:$0x1] %vm180, 0.0
      %216 = vst.msk [vmem:[#allocation2 + $0x1a9] sm:$0x1] %vm180, 0.0
      %v217 = vld [vmem:[%s165] sm:$0xff]
      %v218 = vld [vmem:[%s165 + $0x8] sm:$0xff]
      %v219 = vld [vmem:[%s165 + $0x10] sm:$0xff]
      %v220 = vld [vmem:[%s165 + $0x18] sm:$0xff]
      %v221 = vld [vmem:[%s165 + $0x20] sm:$0xff]
      %v222 = vld [vmem:[%s165 + $0x28] sm:$0xff]
      %v223 = vld [vmem:[%s165 + $0x30] sm:$0xff]
      %v224 = vld [vmem:[%s165 + $0x38] sm:$0xff]
      %v225 = vld [vmem:[%s165 + $0x40] sm:$0xff]
      %v226 = vld [vmem:[%s165 + $0x48] sm:$0xff]
      %v227 = vld [vmem:[%s165 + $0x50] sm:$0xff]
      %v228 = vld [vmem:[%s165 + $0x58] sm:$0xff]
      %v229 = vld [vmem:[%s165 + $0x60] sm:$0xff]
      %v230 = vld [vmem:[%s165 + $0x68] sm:$0xff]
      %v231 = vld [vmem:[%s165 + $0x70] sm:$0xff]
      %v232 = vld [vmem:[%s165 + $0x78] sm:$0xff]
      %v233 = vld [vmem:[%s165 + $0x80] sm:$0xff]
      %v234 = vld [vmem:[%s165 + $0x88] sm:$0xff]
      %v235 = vld [vmem:[%s165 + $0x90] sm:$0xff]
      %v236 = vld [vmem:[%s165 + $0x98] sm:$0xff]
      %v237 = vld [vmem:[%s165 + $0xa0] sm:$0xff]
      %v238 = vld [vmem:[%s165 + $0xa8] sm:$0xff]
      %v239 = vld [vmem:[%s165 + $0xb0] sm:$0xff]
      %v240 = vld [vmem:[%s165 + $0xb8] sm:$0xff]
      %v241 = vld [vmem:[%s165 + $0xc0] sm:$0xff]
      %v242 = vld [vmem:[%s165 + $0xc8] sm:$0xff]
      %v243 = vld [vmem:[%s165 + $0xd0] sm:$0xff]
      %v244 = vld [vmem:[%s165 + $0xd8] sm:$0xff]
      %v245 = vld [vmem:[%s165 + $0xe0] sm:$0xff]
      %v246 = vld [vmem:[%s165 + $0xe8] sm:$0xff]
      %v247 = vld [vmem:[%s165 + $0xf0] sm:$0xff]
      %v248 = vld [vmem:[%s165 + $0xf8] sm:$0xff]
      %s249 = scalar_lea.vmem [#allocation2], 24
      %250 = vst.msk [vmem:[%s249 + $0x1] sm:$0xff] %vm171, %v217
      %251 = vst.msk [vmem:[%s249 + $0x9] sm:$0xff] %vm171, %v218
      %252 = vst.msk [vmem:[%s249 + $0x19] sm:$0xff] %vm171, %v219
      %253 = vst.msk [vmem:[%s249 + $0x21] sm:$0xff] %vm171, %v220
      %254 = vst.msk [vmem:[%s249 + $0x31] sm:$0xff] %vm171, %v221
      %255 = vst.msk [vmem:[%s249 + $0x39] sm:$0xff] %vm171, %v222
      %256 = vst.msk [vmem:[%s249 + $0x49] sm:$0xff] %vm171, %v223
      %257 = vst.msk [vmem:[%s249 + $0x51] sm:$0xff] %vm171, %v224
      %258 = vst.msk [vmem:[%s249 + $0x61] sm:$0xff] %vm171, %v225
      %259 = vst.msk [vmem:[%s249 + $0x69] sm:$0xff] %vm171, %v226
      %260 = vst.msk [vmem:[%s249 + $0x79] sm:$0xff] %vm171, %v227
      %261 = vst.msk [vmem:[%s249 + $0x81] sm:$0xff] %vm171, %v228
      %262 = vst.msk [vmem:[%s249 + $0x91] sm:$0xff] %vm171, %v229
      %263 = vst.msk [vmem:[%s249 + $0x99] sm:$0xff] %vm171, %v230
      %264 = vst.msk [vmem:[%s249 + $0xa9] sm:$0xff] %vm171, %v231
      %265 = vst.msk [vmem:[%s249 + $0xb1] sm:$0xff] %vm171, %v232
      %266 = vst.msk [vmem:[%s249 + $0xc1] sm:$0xff] %vm171, %v233
      %267 = vst.msk [vmem:[%s249 + $0xc9] sm:$0xff] %vm171, %v234
      %268 = vst.msk [vmem:[%s249 + $0xd9] sm:$0xff] %vm171, %v235
      %269 = vst.msk [vmem:[%s249 + $0xe1] sm:$0xff] %vm171, %v236
      %270 = vst.msk [vmem:[%s249 + $0xf1] sm:$0xff] %vm171, %v237
      %271 = vst.msk [vmem:[%s249 + $0xf9] sm:$0xff] %vm171, %v238
      %272 = vst.msk [vmem:[%s249 + $0x109] sm:$0xff] %vm171, %v239
      %273 = vst.msk [vmem:[%s249 + $0x111] sm:$0xff] %vm171, %v240
      %274 = vst.msk [vmem:[%s249 + $0x121] sm:$0xff] %vm171, %v241
      %275 = vst.msk [vmem:[%s249 + $0x129] sm:$0xff] %vm171, %v242
      %276 = vst.msk [vmem:[%s249 + $0x139] sm:$0xff] %vm171, %v243
      %277 = vst.msk [vmem:[%s249 + $0x141] sm:$0xff] %vm171, %v244
      %278 = vst.msk [vmem:[%s249 + $0x151] sm:$0xff] %vm171, %v245
      %279 = vst.msk [vmem:[%s249 + $0x159] sm:$0xff] %vm171, %v246
      %280 = vst.msk [vmem:[%s249 + $0x169] sm:$0xff] %vm171, %v247
      %281 = vst.msk [vmem:[%s249 + $0x171] sm:$0xff] %vm171, %v248
      %v282 = vld [vmem:[#allocation2] sm:$0xff]
      %v283 = vld [vmem:[#allocation2 + $0x8] sm:$0xff]
      %v284 = vld [vmem:[#allocation2 + $0x18] sm:$0xff]
      %v285 = vld [vmem:[#allocation2 + $0x20] sm:$0xff]
      %v286 = vld [vmem:[#allocation2 + $0x30] sm:$0xff]
      %v287 = vld [vmem:[#allocation2 + $0x38] sm:$0xff]
      %v288 = vld [vmem:[#allocation2 + $0x48] sm:$0xff]
      %v289 = vld [vmem:[#allocation2 + $0x50] sm:$0xff]
      %v290 = vld [vmem:[#allocation2 + $0x60] sm:$0xff]
      %v291 = vld [vmem:[#allocation2 + $0x68] sm:$0xff]
      %v292 = vld [vmem:[#allocation2 + $0x78] sm:$0xff]
      %v293 = vld [vmem:[#allocation2 + $0x80] sm:$0xff]
      %v294 = vld [vmem:[#allocation2 + $0x90] sm:$0xff]
      %v295 = vld [vmem:[#allocation2 + $0x98] sm:$0xff]
      %v296 = vld [vmem:[#allocation2 + $0xa8] sm:$0xff]
      %v297 = vld [vmem:[#allocation2 + $0xb0] sm:$0xff]
      %v298 = vld [vmem:[#allocation2 + $0xc0] sm:$0xff]
      %v299 = vld [vmem:[#allocation2 + $0xc8] sm:$0xff]
      %v300 = vld [vmem:[#allocation2 + $0xd8] sm:$0xff]
      %v301 = vld [vmem:[#allocation2 + $0xe0] sm:$0xff]
      %v302 = vld [vmem:[#allocation2 + $0xf0] sm:$0xff]
      %v303 = vld [vmem:[#allocation2 + $0xf8] sm:$0xff]
      %v304 = vld [vmem:[#allocation2 + $0x108] sm:$0xff]
      %v305 = vld [vmem:[#allocation2 + $0x110] sm:$0xff]
      %v306 = vld [vmem:[#allocation2 + $0x120] sm:$0xff]
      %v307 = vld [vmem:[#allocation2 + $0x128] sm:$0xff]
      %v308 = vld [vmem:[#allocation2 + $0x138] sm:$0xff]
      %v309 = vld [vmem:[#allocation2 + $0x140] sm:$0xff]
      %v310 = vld [vmem:[#allocation2 + $0x150] sm:$0xff]
      %v311 = vld [vmem:[#allocation2 + $0x158] sm:$0xff]
      %v312 = vld [vmem:[#allocation2 + $0x168] sm:$0xff]
      %v313 = vld [vmem:[#allocation2 + $0x170] sm:$0xff]
      %314 = vst.msk [vmem:[#allocation3] sm:$0xff] %vm171, %v282
      %315 = vst.msk [vmem:[#allocation3 + $0x8] sm:$0xff] %vm171, %v283
      %316 = vst.msk [vmem:[#allocation3 + $0x10] sm:$0xff] %vm171, %v284
      %317 = vst.msk [vmem:[#allocation3 + $0x18] sm:$0xff] %vm171, %v285
      %318 = vst.msk [vmem:[#allocation3 + $0x20] sm:$0xff] %vm171, %v286
      %319 = vst.msk [vmem:[#allocation3 + $0x28] sm:$0xff] %vm171, %v287
      %320 = vst.msk [vmem:[#allocation3 + $0x30] sm:$0xff] %vm171, %v288
      %321 = vst.msk [vmem:[#allocation3 + $0x38] sm:$0xff] %vm171, %v289
      %322 = vst.msk [vmem:[#allocation3 + $0x40] sm:$0xff] %vm171, %v290
      %323 = vst.msk [vmem:[#allocation3 + $0x48] sm:$0xff] %vm171, %v291
      %324 = vst.msk [vmem:[#allocation3 + $0x50] sm:$0xff] %vm171, %v292
      %325 = vst.msk [vmem:[#allocation3 + $0x58] sm:$0xff] %vm171, %v293
      %326 = vst.msk [vmem:[#allocation3 + $0x60] sm:$0xff] %vm171, %v294
      %327 = vst.msk [vmem:[#allocation3 + $0x68] sm:$0xff] %vm171, %v295
      %328 = vst.msk [vmem:[#allocation3 + $0x70] sm:$0xff] %vm171, %v296
      %329 = vst.msk [vmem:[#allocation3 + $0x78] sm:$0xff] %vm171, %v297
      %330 = vst.msk [vmem:[#allocation3 + $0x80] sm:$0xff] %vm171, %v298
      %331 = vst.msk [vmem:[#allocation3 + $0x88] sm:$0xff] %vm171, %v299
      %332 = vst.msk [vmem:[#allocation3 + $0x90] sm:$0xff] %vm171, %v300
      %333 = vst.msk [vmem:[#allocation3 + $0x98] sm:$0xff] %vm171, %v301
      %334 = vst.msk [vmem:[#allocation3 + $0xa0] sm:$0xff] %vm171, %v302
      %335 = vst.msk [vmem:[#allocation3 + $0xa8] sm:$0xff] %vm171, %v303
      %336 = vst.msk [vmem:[#allocation3 + $0xb0] sm:$0xff] %vm171, %v304
      %337 = vst.msk [vmem:[#allocation3 + $0xb8] sm:$0xff] %vm171, %v305
      %338 = vst.msk [vmem:[#allocation3 + $0xc0] sm:$0xff] %vm171, %v306
      %339 = vst.msk [vmem:[#allocation3 + $0xc8] sm:$0xff] %vm171, %v307
      %340 = vst.msk [vmem:[#allocation3 + $0xd0] sm:$0xff] %vm171, %v308
      %341 = vst.msk [vmem:[#allocation3 + $0xd8] sm:$0xff] %vm171, %v309
      %342 = vst.msk [vmem:[#allocation3 + $0xe0] sm:$0xff] %vm171, %v310
      %343 = vst.msk [vmem:[#allocation3 + $0xe8] sm:$0xff] %vm171, %v311
      %344 = vst.msk [vmem:[#allocation3 + $0xf0] sm:$0xff] %vm171, %v312
      %345 = vst.msk [vmem:[#allocation3 + $0xf8] sm:$0xff] %vm171, %v313
      %v346 = vld [vmem:[#allocation2 + $0x1] sm:$0xff]
      %v347 = vld [vmem:[#allocation2 + $0x9] sm:$0xff]
      %v348 = vld [vmem:[#allocation2 + $0x19] sm:$0xff]
      %v349 = vld [vmem:[#allocation2 + $0x21] sm:$0xff]
      %v350 = vld [vmem:[#allocation2 + $0x31] sm:$0xff]
      %v351 = vld [vmem:[#allocation2 + $0x39] sm:$0xff]
      %v352 = vld [vmem:[#allocation2 + $0x49] sm:$0xff]
      %v353 = vld [vmem:[#allocation2 + $0x51] sm:$0xff]
      %v354 = vld [vmem:[#allocation2 + $0x61] sm:$0xff]
      %v355 = vld [vmem:[#allocation2 + $0x69] sm:$0xff]
      %v356 = vld [vmem:[#allocation2 + $0x79] sm:$0xff]
      %v357 = vld [vmem:[#allocation2 + $0x81] sm:$0xff]
      %v358 = vld [vmem:[#allocation2 + $0x91] sm:$0xff]
      %v359 = vld [vmem:[#allocation2 + $0x99] sm:$0xff]
      %v360 = vld [vmem:[#allocation2 + $0xa9] sm:$0xff]
      %v361 = vld [vmem:[#allocation2 + $0xb1] sm:$0xff]
      %v362 = vld [vmem:[#allocation2 + $0xc1] sm:$0xff]
      %v363 = vld [vmem:[#allocation2 + $0xc9] sm:$0xff]
      %v364 = vld [vmem:[#allocation2 + $0xd9] sm:$0xff]
      %v365 = vld [vmem:[#allocation2 + $0xe1] sm:$0xff]
      %v366 = vld [vmem:[#allocation2 + $0xf1] sm:$0xff]
      %v367 = vld [vmem:[#allocation2 + $0xf9] sm:$0xff]
      %v368 = vld [vmem:[#allocation2 + $0x109] sm:$0xff]
      %v369 = vld [vmem:[#allocation2 + $0x111] sm:$0xff]
      %v370 = vld [vmem:[#allocation2 + $0x121] sm:$0xff]
      %v371 = vld [vmem:[#allocation2 + $0x129] sm:$0xff]
      %v372 = vld [vmem:[#allocation2 + $0x139] sm:$0xff]
      %v373 = vld [vmem:[#allocation2 + $0x141] sm:$0xff]
      %v374 = vld [vmem:[#allocation2 + $0x151] sm:$0xff]
      %v375 = vld [vmem:[#allocation2 + $0x159] sm:$0xff]
      %v376 = vld [vmem:[#allocation2 + $0x169] sm:$0xff]
      %v377 = vld [vmem:[#allocation2 + $0x171] sm:$0xff]
      %410 = vrot.lane.b32.xlu0 %v346, 4
      %v411 = vpop.permute.xlu0 %410
      %412 = vrot.lane.b32.xlu0 %v347, 4
      %v413 = vpop.permute.xlu0 %412
      %414 = vrot.lane.b32.xlu0 %v348, 4
      %v415 = vpop.permute.xlu0 %414
      %416 = vrot.lane.b32.xlu0 %v349, 4
      %v417 = vpop.permute.xlu0 %416
      %418 = vrot.lane.b32.xlu0 %v350, 4
      %v419 = vpop.permute.xlu0 %418
      %420 = vrot.lane.b32.xlu0 %v351, 4
      %v421 = vpop.permute.xlu0 %420
      %422 = vrot.lane.b32.xlu0 %v352, 4
      %v423 = vpop.permute.xlu0 %422
      %424 = vrot.lane.b32.xlu0 %v353, 4
      %v425 = vpop.permute.xlu0 %424
      %426 = vrot.lane.b32.xlu0 %v354, 4
      %v427 = vpop.permute.xlu0 %426
      %428 = vrot.lane.b32.xlu0 %v355, 4
      %v429 = vpop.permute.xlu0 %428
      %430 = vrot.lane.b32.xlu0 %v356, 4
      %v431 = vpop.permute.xlu0 %430
      %432 = vrot.lane.b32.xlu0 %v357, 4
      %v433 = vpop.permute.xlu0 %432
      %434 = vrot.lane.b32.xlu0 %v358, 4
      %v435 = vpop.permute.xlu0 %434
      %436 = vrot.lane.b32.xlu0 %v359, 4
      %v437 = vpop.permute.xlu0 %436
      %438 = vrot.lane.b32.xlu0 %v360, 4
      %v439 = vpop.permute.xlu0 %438
      %440 = vrot.lane.b32.xlu0 %v361, 4
      %v441 = vpop.permute.xlu0 %440
      %442 = vrot.lane.b32.xlu0 %v362, 4
      %v443 = vpop.permute.xlu0 %442
      %444 = vrot.lane.b32.xlu0 %v363, 4
      %v445 = vpop.permute.xlu0 %444
      %446 = vrot.lane.b32.xlu0 %v364, 4
      %v447 = vpop.permute.xlu0 %446
      %448 = vrot.lane.b32.xlu0 %v365, 4
      %v449 = vpop.permute.xlu0 %448
      %450 = vrot.lane.b32.xlu0 %v366, 4
      %v451 = vpop.permute.xlu0 %450
      %452 = vrot.lane.b32.xlu0 %v367, 4
      %v453 = vpop.permute.xlu0 %452
      %454 = vrot.lane.b32.xlu0 %v368, 4
      %v455 = vpop.permute.xlu0 %454
      %456 = vrot.lane.b32.xlu0 %v369, 4
      %v457 = vpop.permute.xlu0 %456
      %458 = vrot.lane.b32.xlu0 %v370, 4
      %v459 = vpop.permute.xlu0 %458
      %460 = vrot.lane.b32.xlu0 %v371, 4
      %v461 = vpop.permute.xlu0 %460
      %462 = vrot.lane.b32.xlu0 %v372, 4
      %v463 = vpop.permute.xlu0 %462
      %464 = vrot.lane.b32.xlu0 %v373, 4
      %v465 = vpop.permute.xlu0 %464
      %466 = vrot.lane.b32.xlu0 %v374, 4
      %v467 = vpop.permute.xlu0 %466
      %468 = vrot.lane.b32.xlu0 %v375, 4
      %v469 = vpop.permute.xlu0 %468
      %470 = vrot.lane.b32.xlu0 %v376, 4
      %v471 = vpop.permute.xlu0 %470
      %472 = vrot.lane.b32.xlu0 %v377, 4
      %v473 = vpop.permute.xlu0 %472
      %vm506 = vcmask 64544
      %507 = vst.msk [vmem:[#allocation3] sm:$0xff] %vm506, %v411
      %508 = vst.msk [vmem:[#allocation3 + $0x8] sm:$0xff] %vm506, %v413
      %509 = vst.msk [vmem:[#allocation3 + $0x10] sm:$0xff] %vm506, %v415
      %510 = vst.msk [vmem:[#allocation3 + $0x18] sm:$0xff] %vm506, %v417
      %511 = vst.msk [vmem:[#allocation3 + $0x20] sm:$0xff] %vm506, %v419
      %512 = vst.msk [vmem:[#allocation3 + $0x28] sm:$0xff] %vm506, %v421
      %513 = vst.msk [vmem:[#allocation3 + $0x30] sm:$0xff] %vm506, %v423
      %514 = vst.msk [vmem:[#allocation3 + $0x38] sm:$0xff] %vm506, %v425
      %515 = vst.msk [vmem:[#allocation3 + $0x40] sm:$0xff] %vm506, %v427
      %516 = vst.msk [vmem:[#allocation3 + $0x48] sm:$0xff] %vm506, %v429
      %517 = vst.msk [vmem:[#allocation3 + $0x50] sm:$0xff] %vm506, %v431
      %518 = vst.msk [vmem:[#allocation3 + $0x58] sm:$0xff] %vm506, %v433
      %519 = vst.msk [vmem:[#allocation3 + $0x60] sm:$0xff] %vm506, %v435
      %520 = vst.msk [vmem:[#allocation3 + $0x68] sm:$0xff] %vm506, %v437
      %521 = vst.msk [vmem:[#allocation3 + $0x70] sm:$0xff] %vm506, %v439
      %522 = vst.msk [vmem:[#allocation3 + $0x78] sm:$0xff] %vm506, %v441
      %523 = vst.msk [vmem:[#allocation3 + $0x80] sm:$0xff] %vm506, %v443
      %524 = vst.msk [vmem:[#allocation3 + $0x88] sm:$0xff] %vm506, %v445
      %525 = vst.msk [vmem:[#allocation3 + $0x90] sm:$0xff] %vm506, %v447
      %526 = vst.msk [vmem:[#allocation3 + $0x98] sm:$0xff] %vm506, %v449
      %527 = vst.msk [vmem:[#allocation3 + $0xa0] sm:$0xff] %vm506, %v451
      %528 = vst.msk [vmem:[#allocation3 + $0xa8] sm:$0xff] %vm506, %v453
      %529 = vst.msk [vmem:[#allocation3 + $0xb0] sm:$0xff] %vm506, %v455
      %530 = vst.msk [vmem:[#allocation3 + $0xb8] sm:$0xff] %vm506, %v457
      %531 = vst.msk [vmem:[#allocation3 + $0xc0] sm:$0xff] %vm506, %v459
      %532 = vst.msk [vmem:[#allocation3 + $0xc8] sm:$0xff] %vm506, %v461
      %533 = vst.msk [vmem:[#allocation3 + $0xd0] sm:$0xff] %vm506, %v463
      %534 = vst.msk [vmem:[#allocation3 + $0xd8] sm:$0xff] %vm506, %v465
      %535 = vst.msk [vmem:[#allocation3 + $0xe0] sm:$0xff] %vm506, %v467
      %536 = vst.msk [vmem:[#allocation3 + $0xe8] sm:$0xff] %vm506, %v469
      %537 = vst.msk [vmem:[#allocation3 + $0xf0] sm:$0xff] %vm506, %v471
      %538 = vst.msk [vmem:[#allocation3 + $0xf8] sm:$0xff] %vm506, %v473
      %v539 = vld [vmem:[#allocation2 + $0x2] sm:$0xff]
      %v540 = vld [vmem:[#allocation2 + $0xa] sm:$0xff]
      %v541 = vld [vmem:[#allocation2 + $0x1a] sm:$0xff]
      %v542 = vld [vmem:[#allocation2 + $0x22] sm:$0xff]
      %v543 = vld [vmem:[#allocation2 + $0x32] sm:$0xff]
      %v544 = vld [vmem:[#allocation2 + $0x3a] sm:$0xff]
      %v545 = vld [vmem:[#allocation2 + $0x4a] sm:$0xff]
      %v546 = vld [vmem:[#allocation2 + $0x52] sm:$0xff]
      %v547 = vld [vmem:[#allocation2 + $0x62] sm:$0xff]
      %v548 = vld [vmem:[#allocation2 + $0x6a] sm:$0xff]
      %v549 = vld [vmem:[#allocation2 + $0x7a] sm:$0xff]
      %v550 = vld [vmem:[#allocation2 + $0x82] sm:$0xff]
      %v551 = vld [vmem:[#allocation2 + $0x92] sm:$0xff]
      %v552 = vld [vmem:[#allocation2 + $0x9a] sm:$0xff]
      %v553 = vld [vmem:[#allocation2 + $0xaa] sm:$0xff]
      %v554 = vld [vmem:[#allocation2 + $0xb2] sm:$0xff]
      %v555 = vld [vmem:[#allocation2 + $0xc2] sm:$0xff]
      %v556 = vld [vmem:[#allocation2 + $0xca] sm:$0xff]
      %v557 = vld [vmem:[#allocation2 + $0xda] sm:$0xff]
      %v558 = vld [vmem:[#allocation2 + $0xe2] sm:$0xff]
      %v559 = vld [vmem:[#allocation2 + $0xf2] sm:$0xff]
      %v560 = vld [vmem:[#allocation2 + $0xfa] sm:$0xff]
      %v561 = vld [vmem:[#allocation2 + $0x10a] sm:$0xff]
      %v562 = vld [vmem:[#allocation2 + $0x112] sm:$0xff]
      %v563 = vld [vmem:[#allocation2 + $0x122] sm:$0xff]
      %v564 = vld [vmem:[#allocation2 + $0x12a] sm:$0xff]
      %v565 = vld [vmem:[#allocation2 + $0x13a] sm:$0xff]
      %v566 = vld [vmem:[#allocation2 + $0x142] sm:$0xff]
      %v567 = vld [vmem:[#allocation2 + $0x152] sm:$0xff]
      %v568 = vld [vmem:[#allocation2 + $0x15a] sm:$0xff]
      %v569 = vld [vmem:[#allocation2 + $0x16a] sm:$0xff]
      %v570 = vld [vmem:[#allocation2 + $0x172] sm:$0xff]
      %603 = vrot.lane.b32.xlu0 %v539, 8
      %v604 = vpop.permute.xlu0 %603
      %605 = vrot.lane.b32.xlu0 %v540, 8
      %v606 = vpop.permute.xlu0 %605
      %607 = vrot.lane.b32.xlu0 %v541, 8
      %v608 = vpop.permute.xlu0 %607
      %609 = vrot.lane.b32.xlu0 %v542, 8
      %v610 = vpop.permute.xlu0 %609
      %611 = vrot.lane.b32.xlu0 %v543, 8
      %v612 = vpop.permute.xlu0 %611
      %613 = vrot.lane.b32.xlu0 %v544, 8
      %v614 = vpop.permute.xlu0 %613
      %615 = vrot.lane.b32.xlu0 %v545, 8
      %v616 = vpop.permute.xlu0 %615
      %617 = vrot.lane.b32.xlu0 %v546, 8
      %v618 = vpop.permute.xlu0 %617
      %619 = vrot.lane.b32.xlu0 %v547, 8
      %v620 = vpop.permute.xlu0 %619
      %621 = vrot.lane.b32.xlu0 %v548, 8
      %v622 = vpop.permute.xlu0 %621
      %623 = vrot.lane.b32.xlu0 %v549, 8
      %v624 = vpop.permute.xlu0 %623
      %625 = vrot.lane.b32.xlu0 %v550, 8
      %v626 = vpop.permute.xlu0 %625
      %627 = vrot.lane.b32.xlu0 %v551, 8
      %v628 = vpop.permute.xlu0 %627
      %629 = vrot.lane.b32.xlu0 %v552, 8
      %v630 = vpop.permute.xlu0 %629
      %631 = vrot.lane.b32.xlu0 %v553, 8
      %v632 = vpop.permute.xlu0 %631
      %633 = vrot.lane.b32.xlu0 %v554, 8
      %v634 = vpop.permute.xlu0 %633
      %635 = vrot.lane.b32.xlu0 %v555, 8
      %v636 = vpop.permute.xlu0 %635
      %637 = vrot.lane.b32.xlu0 %v556, 8
      %v638 = vpop.permute.xlu0 %637
      %639 = vrot.lane.b32.xlu0 %v557, 8
      %v640 = vpop.permute.xlu0 %639
      %641 = vrot.lane.b32.xlu0 %v558, 8
      %v642 = vpop.permute.xlu0 %641
      %643 = vrot.lane.b32.xlu0 %v559, 8
      %v644 = vpop.permute.xlu0 %643
      %645 = vrot.lane.b32.xlu0 %v560, 8
      %v646 = vpop.permute.xlu0 %645
      %647 = vrot.lane.b32.xlu0 %v561, 8
      %v648 = vpop.permute.xlu0 %647
      %649 = vrot.lane.b32.xlu0 %v562, 8
      %v650 = vpop.permute.xlu0 %649
      %651 = vrot.lane.b32.xlu0 %v563, 8
      %v652 = vpop.permute.xlu0 %651
      %653 = vrot.lane.b32.xlu0 %v564, 8
      %v654 = vpop.permute.xlu0 %653
      %655 = vrot.lane.b32.xlu0 %v565, 8
      %v656 = vpop.permute.xlu0 %655
      %657 = vrot.lane.b32.xlu0 %v566, 8
      %v658 = vpop.permute.xlu0 %657
      %659 = vrot.lane.b32.xlu0 %v567, 8
      %v660 = vpop.permute.xlu0 %659
      %661 = vrot.lane.b32.xlu0 %v568, 8
      %v662 = vpop.permute.xlu0 %661
      %663 = vrot.lane.b32.xlu0 %v569, 8
      %v664 = vpop.permute.xlu0 %663
      %665 = vrot.lane.b32.xlu0 %v570, 8
      %v666 = vpop.permute.xlu0 %665
      %vm699 = vcmask 97344
      %700 = vst.msk [vmem:[#allocation3] sm:$0xff] %vm699, %v604
      %701 = vst.msk [vmem:[#allocation3 + $0x8] sm:$0xff] %vm699, %v606
      %702 = vst.msk [vmem:[#allocation3 + $0x10] sm:$0xff] %vm699, %v608
      %703 = vst.msk [vmem:[#allocation3 + $0x18] sm:$0xff] %vm699, %v610
      %704 = vst.msk [vmem:[#allocation3 + $0x20] sm:$0xff] %vm699, %v612
      %705 = vst.msk [vmem:[#allocation3 + $0x28] sm:$0xff] %vm699, %v614
      %706 = vst.msk [vmem:[#allocation3 + $0x30] sm:$0xff] %vm699, %v616
      %707 = vst.msk [vmem:[#allocation3 + $0x38] sm:$0xff] %vm699, %v618
      %708 = vst.msk [vmem:[#allocation3 + $0x40] sm:$0xff] %vm699, %v620
      %709 = vst.msk [vmem:[#allocation3 + $0x48] sm:$0xff] %vm699, %v622
      %710 = vst.msk [vmem:[#allocation3 + $0x50] sm:$0xff] %vm699, %v624
      %711 = vst.msk [vmem:[#allocation3 + $0x58] sm:$0xff] %vm699, %v626
      %712 = vst.msk [vmem:[#allocation3 + $0x60] sm:$0xff] %vm699, %v628
      %713 = vst.msk [vmem:[#allocation3 + $0x68] sm:$0xff] %vm699, %v630
      %714 = vst.msk [vmem:[#allocation3 + $0x70] sm:$0xff] %vm699, %v632
      %715 = vst.msk [vmem:[#allocation3 + $0x78] sm:$0xff] %vm699, %v634
      %716 = vst.msk [vmem:[#allocation3 + $0x80] sm:$0xff] %vm699, %v636
      %717 = vst.msk [vmem:[#allocation3 + $0x88] sm:$0xff] %vm699, %v638
      %718 = vst.msk [vmem:[#allocation3 + $0x90] sm:$0xff] %vm699, %v640
      %719 = vst.msk [vmem:[#allocation3 + $0x98] sm:$0xff] %vm699, %v642
      %720 = vst.msk [vmem:[#allocation3 + $0xa0] sm:$0xff] %vm699, %v644
      %721 = vst.msk [vmem:[#allocation3 + $0xa8] sm:$0xff] %vm699, %v646
      %722 = vst.msk [vmem:[#allocation3 + $0xb0] sm:$0xff] %vm699, %v648
      %723 = vst.msk [vmem:[#allocation3 + $0xb8] sm:$0xff] %vm699, %v650
      %724 = vst.msk [vmem:[#allocation3 + $0xc0] sm:$0xff] %vm699, %v652
      %725 = vst.msk [vmem:[#allocation3 + $0xc8] sm:$0xff] %vm699, %v654
      %726 = vst.msk [vmem:[#allocation3 + $0xd0] sm:$0xff] %vm699, %v656
      %727 = vst.msk [vmem:[#allocation3 + $0xd8] sm:$0xff] %vm699, %v658
      %728 = vst.msk [vmem:[#allocation3 + $0xe0] sm:$0xff] %vm699, %v660
      %729 = vst.msk [vmem:[#allocation3 + $0xe8] sm:$0xff] %vm699, %v662
      %730 = vst.msk [vmem:[#allocation3 + $0xf0] sm:$0xff] %vm699, %v664
      %731 = vst.msk [vmem:[#allocation3 + $0xf8] sm:$0xff] %vm699, %v666
      %v732 = vld [vmem:[%s249] sm:$0xff]
      %v733 = vld [vmem:[%s249 + $0x8] sm:$0xff]
      %v734 = vld [vmem:[%s249 + $0x18] sm:$0xff]
      %v735 = vld [vmem:[%s249 + $0x20] sm:$0xff]
      %v736 = vld [vmem:[%s249 + $0x30] sm:$0xff]
      %v737 = vld [vmem:[%s249 + $0x38] sm:$0xff]
      %v738 = vld [vmem:[%s249 + $0x48] sm:$0xff]
      %v739 = vld [vmem:[%s249 + $0x50] sm:$0xff]
      %v740 = vld [vmem:[%s249 + $0x60] sm:$0xff]
      %v741 = vld [vmem:[%s249 + $0x68] sm:$0xff]
      %v742 = vld [vmem:[%s249 + $0x78] sm:$0xff]
      %v743 = vld [vmem:[%s249 + $0x80] sm:$0xff]
      %v744 = vld [vmem:[%s249 + $0x90] sm:$0xff]
      %v745 = vld [vmem:[%s249 + $0x98] sm:$0xff]
      %v746 = vld [vmem:[%s249 + $0xa8] sm:$0xff]
      %v747 = vld [vmem:[%s249 + $0xb0] sm:$0xff]
      %v748 = vld [vmem:[%s249 + $0xc0] sm:$0xff]
      %v749 = vld [vmem:[%s249 + $0xc8] sm:$0xff]
      %v750 = vld [vmem:[%s249 + $0xd8] sm:$0xff]
      %v751 = vld [vmem:[%s249 + $0xe0] sm:$0xff]
      %v752 = vld [vmem:[%s249 + $0xf0] sm:$0xff]
      %v753 = vld [vmem:[%s249 + $0xf8] sm:$0xff]
      %v754 = vld [vmem:[%s249 + $0x108] sm:$0xff]
      %v755 = vld [vmem:[%s249 + $0x110] sm:$0xff]
      %v756 = vld [vmem:[%s249 + $0x120] sm:$0xff]
      %v757 = vld [vmem:[%s249 + $0x128] sm:$0xff]
      %v758 = vld [vmem:[%s249 + $0x138] sm:$0xff]
      %v759 = vld [vmem:[%s249 + $0x140] sm:$0xff]
      %v760 = vld [vmem:[%s249 + $0x150] sm:$0xff]
      %v761 = vld [vmem:[%s249 + $0x158] sm:$0xff]
      %v762 = vld [vmem:[%s249 + $0x168] sm:$0xff]
      %v763 = vld [vmem:[%s249 + $0x170] sm:$0xff]
      %796 = vrot.lane.b32.xlu0 %v732, 12
      %v797 = vpop.permute.xlu0 %796
      %798 = vrot.lane.b32.xlu0 %v733, 12
      %v799 = vpop.permute.xlu0 %798
      %800 = vrot.lane.b32.xlu0 %v734, 12
      %v801 = vpop.permute.xlu0 %800
      %802 = vrot.lane.b32.xlu0 %v735, 12
      %v803 = vpop.permute.xlu0 %802
      %804 = vrot.lane.b32.xlu0 %v736, 12
      %v805 = vpop.permute.xlu0 %804
      %806 = vrot.lane.b32.xlu0 %v737, 12
      %v807 = vpop.permute.xlu0 %806
      %808 = vrot.lane.b32.xlu0 %v738, 12
      %v809 = vpop.permute.xlu0 %808
      %810 = vrot.lane.b32.xlu0 %v739, 12
      %v811 = vpop.permute.xlu0 %810
      %812 = vrot.lane.b32.xlu0 %v740, 12
      %v813 = vpop.permute.xlu0 %812
      %814 = vrot.lane.b32.xlu0 %v741, 12
      %v815 = vpop.permute.xlu0 %814
      %816 = vrot.lane.b32.xlu0 %v742, 12
      %v817 = vpop.permute.xlu0 %816
      %818 = vrot.lane.b32.xlu0 %v743, 12
      %v819 = vpop.permute.xlu0 %818
      %820 = vrot.lane.b32.xlu0 %v744, 12
      %v821 = vpop.permute.xlu0 %820
      %822 = vrot.lane.b32.xlu0 %v745, 12
      %v823 = vpop.permute.xlu0 %822
      %824 = vrot.lane.b32.xlu0 %v746, 12
      %v825 = vpop.permute.xlu0 %824
      %826 = vrot.lane.b32.xlu0 %v747, 12
      %v827 = vpop.permute.xlu0 %826
      %828 = vrot.lane.b32.xlu0 %v748, 12
      %v829 = vpop.permute.xlu0 %828
      %830 = vrot.lane.b32.xlu0 %v749, 12
      %v831 = vpop.permute.xlu0 %830
      %832 = vrot.lane.b32.xlu0 %v750, 12
      %v833 = vpop.permute.xlu0 %832
      %834 = vrot.lane.b32.xlu0 %v751, 12
      %v835 = vpop.permute.xlu0 %834
      %836 = vrot.lane.b32.xlu0 %v752, 12
      %v837 = vpop.permute.xlu0 %836
      %838 = vrot.lane.b32.xlu0 %v753, 12
      %v839 = vpop.permute.xlu0 %838
      %840 = vrot.lane.b32.xlu0 %v754, 12
      %v841 = vpop.permute.xlu0 %840
      %842 = vrot.lane.b32.xlu0 %v755, 12
      %v843 = vpop.permute.xlu0 %842
      %844 = vrot.lane.b32.xlu0 %v756, 12
      %v845 = vpop.permute.xlu0 %844
      %846 = vrot.lane.b32.xlu0 %v757, 12
      %v847 = vpop.permute.xlu0 %846
      %848 = vrot.lane.b32.xlu0 %v758, 12
      %v849 = vpop.permute.xlu0 %848
      %850 = vrot.lane.b32.xlu0 %v759, 12
      %v851 = vpop.permute.xlu0 %850
      %852 = vrot.lane.b32.xlu0 %v760, 12
      %v853 = vpop.permute.xlu0 %852
      %854 = vrot.lane.b32.xlu0 %v761, 12
      %v855 = vpop.permute.xlu0 %854
      %856 = vrot.lane.b32.xlu0 %v762, 12
      %v857 = vpop.permute.xlu0 %856
      %858 = vrot.lane.b32.xlu0 %v763, 12
      %v859 = vpop.permute.xlu0 %858
      %vm892 = vcmask 130144
      %893 = vst.msk [vmem:[#allocation3] sm:$0xff] %vm892, %v797
      %894 = vst.msk [vmem:[#allocation3 + $0x8] sm:$0xff] %vm892, %v799
      %895 = vst.msk [vmem:[#allocation3 + $0x10] sm:$0xff] %vm892, %v801
      %896 = vst.msk [vmem:[#allocation3 + $0x18] sm:$0xff] %vm892, %v803
      %897 = vst.msk [vmem:[#allocation3 + $0x20] sm:$0xff] %vm892, %v805
      %898 = vst.msk [vmem:[#allocation3 + $0x28] sm:$0xff] %vm892, %v807
      %899 = vst.msk [vmem:[#allocation3 + $0x30] sm:$0xff] %vm892, %v809
      %900 = vst.msk [vmem:[#allocation3 + $0x38] sm:$0xff] %vm892, %v811
      %901 = vst.msk [vmem:[#allocation3 + $0x40] sm:$0xff] %vm892, %v813
      %902 = vst.msk [vmem:[#allocation3 + $0x48] sm:$0xff] %vm892, %v815
      %903 = vst.msk [vmem:[#allocation3 + $0x50] sm:$0xff] %vm892, %v817
      %904 = vst.msk [vmem:[#allocation3 + $0x58] sm:$0xff] %vm892, %v819
      %905 = vst.msk [vmem:[#allocation3 + $0x60] sm:$0xff] %vm892, %v821
      %906 = vst.msk [vmem:[#allocation3 + $0x68] sm:$0xff] %vm892, %v823
      %907 = vst.msk [vmem:[#allocation3 + $0x70] sm:$0xff] %vm892, %v825
      %908 = vst.msk [vmem:[#allocation3 + $0x78] sm:$0xff] %vm892, %v827
      %909 = vst.msk [vmem:[#allocation3 + $0x80] sm:$0xff] %vm892, %v829
      %910 = vst.msk [vmem:[#allocation3 + $0x88] sm:$0xff] %vm892, %v831
      %911 = vst.msk [vmem:[#allocation3 + $0x90] sm:$0xff] %vm892, %v833
      %912 = vst.msk [vmem:[#allocation3 + $0x98] sm:$0xff] %vm892, %v835
      %913 = vst.msk [vmem:[#allocation3 + $0xa0] sm:$0xff] %vm892, %v837
      %914 = vst.msk [vmem:[#allocation3 + $0xa8] sm:$0xff] %vm892, %v839
      %915 = vst.msk [vmem:[#allocation3 + $0xb0] sm:$0xff] %vm892, %v841
      %916 = vst.msk [vmem:[#allocation3 + $0xb8] sm:$0xff] %vm892, %v843
      %917 = vst.msk [vmem:[#allocation3 + $0xc0] sm:$0xff] %vm892, %v845
      %918 = vst.msk [vmem:[#allocation3 + $0xc8] sm:$0xff] %vm892, %v847
      %919 = vst.msk [vmem:[#allocation3 + $0xd0] sm:$0xff] %vm892, %v849
      %920 = vst.msk [vmem:[#allocation3 + $0xd8] sm:$0xff] %vm892, %v851
      %921 = vst.msk [vmem:[#allocation3 + $0xe0] sm:$0xff] %vm892, %v853
      %922 = vst.msk [vmem:[#allocation3 + $0xe8] sm:$0xff] %vm892, %v855
      %923 = vst.msk [vmem:[#allocation3 + $0xf0] sm:$0xff] %vm892, %v857
      %924 = vst.msk [vmem:[#allocation3 + $0xf8] sm:$0xff] %vm892, %v859
      %v925 = vld [vmem:[%s249 + $0x1] sm:$0xff]
      %v926 = vld [vmem:[%s249 + $0x9] sm:$0xff]
      %v927 = vld [vmem:[%s249 + $0x19] sm:$0xff]
      %v928 = vld [vmem:[%s249 + $0x21] sm:$0xff]
      %v929 = vld [vmem:[%s249 + $0x31] sm:$0xff]
      %v930 = vld [vmem:[%s249 + $0x39] sm:$0xff]
      %v931 = vld [vmem:[%s249 + $0x49] sm:$0xff]
      %v932 = vld [vmem:[%s249 + $0x51] sm:$0xff]
      %v933 = vld [vmem:[%s249 + $0x61] sm:$0xff]
      %v934 = vld [vmem:[%s249 + $0x69] sm:$0xff]
      %v935 = vld [vmem:[%s249 + $0x79] sm:$0xff]
      %v936 = vld [vmem:[%s249 + $0x81] sm:$0xff]
      %v937 = vld [vmem:[%s249 + $0x91] sm:$0xff]
      %v938 = vld [vmem:[%s249 + $0x99] sm:$0xff]
      %v939 = vld [vmem:[%s249 + $0xa9] sm:$0xff]
      %v940 = vld [vmem:[%s249 + $0xb1] sm:$0xff]
      %v941 = vld [vmem:[%s249 + $0xc1] sm:$0xff]
      %v942 = vld [vmem:[%s249 + $0xc9] sm:$0xff]
      %v943 = vld [vmem:[%s249 + $0xd9] sm:$0xff]
      %v944 = vld [vmem:[%s249 + $0xe1] sm:$0xff]
      %v945 = vld [vmem:[%s249 + $0xf1] sm:$0xff]
      %v946 = vld [vmem:[%s249 + $0xf9] sm:$0xff]
      %v947 = vld [vmem:[%s249 + $0x109] sm:$0xff]
      %v948 = vld [vmem:[%s249 + $0x111] sm:$0xff]
      %v949 = vld [vmem:[%s249 + $0x121] sm:$0xff]
      %v950 = vld [vmem:[%s249 + $0x129] sm:$0xff]
      %v951 = vld [vmem:[%s249 + $0x139] sm:$0xff]
      %v952 = vld [vmem:[%s249 + $0x141] sm:$0xff]
      %v953 = vld [vmem:[%s249 + $0x151] sm:$0xff]
      %v954 = vld [vmem:[%s249 + $0x159] sm:$0xff]
      %v955 = vld [vmem:[%s249 + $0x169] sm:$0xff]
      %v956 = vld [vmem:[%s249 + $0x171] sm:$0xff]
      %989 = vrot.lane.b32.xlu0 %v925, 16
      %v990 = vpop.permute.xlu0 %989
      %991 = vrot.lane.b32.xlu0 %v926, 16
      %v992 = vpop.permute.xlu0 %991
      %993 = vrot.lane.b32.xlu0 %v927, 16
      %v994 = vpop.permute.xlu0 %993
      %995 = vrot.lane.b32.xlu0 %v928, 16
      %v996 = vpop.permute.xlu0 %995
      %997 = vrot.lane.b32.xlu0 %v929, 16
      %v998 = vpop.permute.xlu0 %997
      %999 = vrot.lane.b32.xlu0 %v930, 16
      %v1000 = vpop.permute.xlu0 %999
      %1001 = vrot.lane.b32.xlu0 %v931, 16
      %v1002 = vpop.permute.xlu0 %1001
      %1003 = vrot.lane.b32.xlu0 %v932, 16
      %v1004 = vpop.permute.xlu0 %1003
      %1005 = vrot.lane.b32.xlu0 %v933, 16
      %v1006 = vpop.permute.xlu0 %1005
      %1007 = vrot.lane.b32.xlu0 %v934, 16
      %v1008 = vpop.permute.xlu0 %1007
      %1009 = vrot.lane.b32.xlu0 %v935, 16
      %v1010 = vpop.permute.xlu0 %1009
      %1011 = vrot.lane.b32.xlu0 %v936, 16
      %v1012 = vpop.permute.xlu0 %1011
      %1013 = vrot.lane.b32.xlu0 %v937, 16
      %v1014 = vpop.permute.xlu0 %1013
      %1015 = vrot.lane.b32.xlu0 %v938, 16
      %v1016 = vpop.permute.xlu0 %1015
      %1017 = vrot.lane.b32.xlu0 %v939, 16
      %v1018 = vpop.permute.xlu0 %1017
      %1019 = vrot.lane.b32.xlu0 %v940, 16
      %v1020 = vpop.permute.xlu0 %1019
      %1021 = vrot.lane.b32.xlu0 %v941, 16
      %v1022 = vpop.permute.xlu0 %1021
      %1023 = vrot.lane.b32.xlu0 %v942, 16
      %v1024 = vpop.permute.xlu0 %1023
      %1025 = vrot.lane.b32.xlu0 %v943, 16
      %v1026 = vpop.permute.xlu0 %1025
      %1027 = vrot.lane.b32.xlu0 %v944, 16
      %v1028 = vpop.permute.xlu0 %1027
      %1029 = vrot.lane.b32.xlu0 %v945, 16
      %v1030 = vpop.permute.xlu0 %1029
      %1031 = vrot.lane.b32.xlu0 %v946, 16
      %v1032 = vpop.permute.xlu0 %1031
      %1033 = vrot.lane.b32.xlu0 %v947, 16
      %v1034 = vpop.permute.xlu0 %1033
      %1035 = vrot.lane.b32.xlu0 %v948, 16
      %v1036 = vpop.permute.xlu0 %1035
      %1037 = vrot.lane.b32.xlu0 %v949, 16
      %v1038 = vpop.permute.xlu0 %1037
      %1039 = vrot.lane.b32.xlu0 %v950, 16
      %v1040 = vpop.permute.xlu0 %1039
      %1041 = vrot.lane.b32.xlu0 %v951, 16
      %v1042 = vpop.permute.xlu0 %1041
      %1043 = vrot.lane.b32.xlu0 %v952, 16
      %v1044 = vpop.permute.xlu0 %1043
      %1045 = vrot.lane.b32.xlu0 %v953, 16
      %v1046 = vpop.permute.xlu0 %1045
      %1047 = vrot.lane.b32.xlu0 %v954, 16
      %v1048 = vpop.permute.xlu0 %1047
      %1049 = vrot.lane.b32.xlu0 %v955, 16
      %v1050 = vpop.permute.xlu0 %1049
      %1051 = vrot.lane.b32.xlu0 %v956, 16
      %v1052 = vpop.permute.xlu0 %1051
      %vm1085 = vcmask 162944
      %1086 = vst.msk [vmem:[#allocation3] sm:$0xff] %vm1085, %v990
      %1087 = vst.msk [vmem:[#allocation3 + $0x8] sm:$0xff] %vm1085, %v992
      %1088 = vst.msk [vmem:[#allocation3 + $0x10] sm:$0xff] %vm1085, %v994
      %1089 = vst.msk [vmem:[#allocation3 + $0x18] sm:$0xff] %vm1085, %v996
      %1090 = vst.msk [vmem:[#allocation3 + $0x20] sm:$0xff] %vm1085, %v998
      %1091 = vst.msk [vmem:[#allocation3 + $0x28] sm:$0xff] %vm1085, %v1000
      %1092 = vst.msk [vmem:[#allocation3 + $0x30] sm:$0xff] %vm1085, %v1002
      %1093 = vst.msk [vmem:[#allocation3 + $0x38] sm:$0xff] %vm1085, %v1004
      %1094 = vst.msk [vmem:[#allocation3 + $0x40] sm:$0xff] %vm1085, %v1006
      %1095 = vst.msk [vmem:[#allocation3 + $0x48] sm:$0xff] %vm1085, %v1008
      %1096 = vst.msk [vmem:[#allocation3 + $0x50] sm:$0xff] %vm1085, %v1010
      %1097 = vst.msk [vmem:[#allocation3 + $0x58] sm:$0xff] %vm1085, %v1012
      %1098 = vst.msk [vmem:[#allocation3 + $0x60] sm:$0xff] %vm1085, %v1014
      %1099 = vst.msk [vmem:[#allocation3 + $0x68] sm:$0xff] %vm1085, %v1016
      %1100 = vst.msk [vmem:[#allocation3 + $0x70] sm:$0xff] %vm1085, %v1018
      %1101 = vst.msk [vmem:[#allocation3 + $0x78] sm:$0xff] %vm1085, %v1020
      %1102 = vst.msk [vmem:[#allocation3 + $0x80] sm:$0xff] %vm1085, %v1022
      %1103 = vst.msk [vmem:[#allocation3 + $0x88] sm:$0xff] %vm1085, %v1024
      %1104 = vst.msk [vmem:[#allocation3 + $0x90] sm:$0xff] %vm1085, %v1026
      %1105 = vst.msk [vmem:[#allocation3 + $0x98] sm:$0xff] %vm1085, %v1028
      %1106 = vst.msk [vmem:[#allocation3 + $0xa0] sm:$0xff] %vm1085, %v1030
      %1107 = vst.msk [vmem:[#allocation3 + $0xa8] sm:$0xff] %vm1085, %v1032
      %1108 = vst.msk [vmem:[#allocation3 + $0xb0] sm:$0xff] %vm1085, %v1034
      %1109 = vst.msk [vmem:[#allocation3 + $0xb8] sm:$0xff] %vm1085, %v1036
      %1110 = vst.msk [vmem:[#allocation3 + $0xc0] sm:$0xff] %vm1085, %v1038
      %1111 = vst.msk [vmem:[#allocation3 + $0xc8] sm:$0xff] %vm1085, %v1040
      %1112 = vst.msk [vmem:[#allocation3 + $0xd0] sm:$0xff] %vm1085, %v1042
      %1113 = vst.msk [vmem:[#allocation3 + $0xd8] sm:$0xff] %vm1085, %v1044
      %1114 = vst.msk [vmem:[#allocation3 + $0xe0] sm:$0xff] %vm1085, %v1046
      %1115 = vst.msk [vmem:[#allocation3 + $0xe8] sm:$0xff] %vm1085, %v1048
      %1116 = vst.msk [vmem:[#allocation3 + $0xf0] sm:$0xff] %vm1085, %v1050
      %1117 = vst.msk [vmem:[#allocation3 + $0xf8] sm:$0xff] %vm1085, %v1052
      %v1118 = vld [vmem:[%s249 + $0x2] sm:$0xff]
      %v1119 = vld [vmem:[%s249 + $0xa] sm:$0xff]
      %v1120 = vld [vmem:[%s249 + $0x1a] sm:$0xff]
      %v1121 = vld [vmem:[%s249 + $0x22] sm:$0xff]
      %v1122 = vld [vmem:[%s249 + $0x32] sm:$0xff]
      %v1123 = vld [vmem:[%s249 + $0x3a] sm:$0xff]
      %v1124 = vld [vmem:[%s249 + $0x4a] sm:$0xff]
      %v1125 = vld [vmem:[%s249 + $0x52] sm:$0xff]
      %v1126 = vld [vmem:[%s249 + $0x62] sm:$0xff]
      %v1127 = vld [vmem:[%s249 + $0x6a] sm:$0xff]
      %v1128 = vld [vmem:[%s249 + $0x7a] sm:$0xff]
      %v1129 = vld [vmem:[%s249 + $0x82] sm:$0xff]
      %v1130 = vld [vmem:[%s249 + $0x92] sm:$0xff]
      %v1131 = vld [vmem:[%s249 + $0x9a] sm:$0xff]
      %v1132 = vld [vmem:[%s249 + $0xaa] sm:$0xff]
      %v1133 = vld [vmem:[%s249 + $0xb2] sm:$0xff]
      %v1134 = vld [vmem:[%s249 + $0xc2] sm:$0xff]
      %v1135 = vld [vmem:[%s249 + $0xca] sm:$0xff]
      %v1136 = vld [vmem:[%s249 + $0xda] sm:$0xff]
      %v1137 = vld [vmem:[%s249 + $0xe2] sm:$0xff]
      %v1138 = vld [vmem:[%s249 + $0xf2] sm:$0xff]
      %v1139 = vld [vmem:[%s249 + $0xfa] sm:$0xff]
      %v1140 = vld [vmem:[%s249 + $0x10a] sm:$0xff]
      %v1141 = vld [vmem:[%s249 + $0x112] sm:$0xff]
      %v1142 = vld [vmem:[%s249 + $0x122] sm:$0xff]
      %v1143 = vld [vmem:[%s249 + $0x12a] sm:$0xff]
      %v1144 = vld [vmem:[%s249 + $0x13a] sm:$0xff]
      %v1145 = vld [vmem:[%s249 + $0x142] sm:$0xff]
      %v1146 = vld [vmem:[%s249 + $0x152] sm:$0xff]
      %v1147 = vld [vmem:[%s249 + $0x15a] sm:$0xff]
      %v1148 = vld [vmem:[%s249 + $0x16a] sm:$0xff]
      %v1149 = vld [vmem:[%s249 + $0x172] sm:$0xff]
      %1182 = vrot.lane.b32.xlu0 %v1118, 20
      %v1183 = vpop.permute.xlu0 %1182
      %1184 = vrot.lane.b32.xlu0 %v1119, 20
      %v1185 = vpop.permute.xlu0 %1184
      %1186 = vrot.lane.b32.xlu0 %v1120, 20
      %v1187 = vpop.permute.xlu0 %1186
      %1188 = vrot.lane.b32.xlu0 %v1121, 20
      %v1189 = vpop.permute.xlu0 %1188
      %1190 = vrot.lane.b32.xlu0 %v1122, 20
      %v1191 = vpop.permute.xlu0 %1190
      %1192 = vrot.lane.b32.xlu0 %v1123, 20
      %v1193 = vpop.permute.xlu0 %1192
      %1194 = vrot.lane.b32.xlu0 %v1124, 20
      %v1195 = vpop.permute.xlu0 %1194
      %1196 = vrot.lane.b32.xlu0 %v1125, 20
      %v1197 = vpop.permute.xlu0 %1196
      %1198 = vrot.lane.b32.xlu0 %v1126, 20
      %v1199 = vpop.permute.xlu0 %1198
      %1200 = vrot.lane.b32.xlu0 %v1127, 20
      %v1201 = vpop.permute.xlu0 %1200
      %1202 = vrot.lane.b32.xlu0 %v1128, 20
      %v1203 = vpop.permute.xlu0 %1202
      %1204 = vrot.lane.b32.xlu0 %v1129, 20
      %v1205 = vpop.permute.xlu0 %1204
      %1206 = vrot.lane.b32.xlu0 %v1130, 20
      %v1207 = vpop.permute.xlu0 %1206
      %1208 = vrot.lane.b32.xlu0 %v1131, 20
      %v1209 = vpop.permute.xlu0 %1208
      %1210 = vrot.lane.b32.xlu0 %v1132, 20
      %v1211 = vpop.permute.xlu0 %1210
      %1212 = vrot.lane.b32.xlu0 %v1133, 20
      %v1213 = vpop.permute.xlu0 %1212
      %1214 = vrot.lane.b32.xlu0 %v1134, 20
      %v1215 = vpop.permute.xlu0 %1214
      %1216 = vrot.lane.b32.xlu0 %v1135, 20
      %v1217 = vpop.permute.xlu0 %1216
      %1218 = vrot.lane.b32.xlu0 %v1136, 20
      %v1219 = vpop.permute.xlu0 %1218
      %1220 = vrot.lane.b32.xlu0 %v1137, 20
      %v1221 = vpop.permute.xlu0 %1220
      %1222 = vrot.lane.b32.xlu0 %v1138, 20
      %v1223 = vpop.permute.xlu0 %1222
      %1224 = vrot.lane.b32.xlu0 %v1139, 20
      %v1225 = vpop.permute.xlu0 %1224
      %1226 = vrot.lane.b32.xlu0 %v1140, 20
      %v1227 = vpop.permute.xlu0 %1226
      %1228 = vrot.lane.b32.xlu0 %v1141, 20
      %v1229 = vpop.permute.xlu0 %1228
      %1230 = vrot.lane.b32.xlu0 %v1142, 20
      %v1231 = vpop.permute.xlu0 %1230
      %1232 = vrot.lane.b32.xlu0 %v1143, 20
      %v1233 = vpop.permute.xlu0 %1232
      %1234 = vrot.lane.b32.xlu0 %v1144, 20
      %v1235 = vpop.permute.xlu0 %1234
      %1236 = vrot.lane.b32.xlu0 %v1145, 20
      %v1237 = vpop.permute.xlu0 %1236
      %1238 = vrot.lane.b32.xlu0 %v1146, 20
      %v1239 = vpop.permute.xlu0 %1238
      %1240 = vrot.lane.b32.xlu0 %v1147, 20
      %v1241 = vpop.permute.xlu0 %1240
      %1242 = vrot.lane.b32.xlu0 %v1148, 20
      %v1243 = vpop.permute.xlu0 %1242
      %1244 = vrot.lane.b32.xlu0 %v1149, 20
      %v1245 = vpop.permute.xlu0 %1244
      %vm1278 = vcmask 195744
      %1279 = vst.msk [vmem:[#allocation3] sm:$0xff] %vm1278, %v1183
      %1280 = vst.msk [vmem:[#allocation3 + $0x8] sm:$0xff] %vm1278, %v1185
      %1281 = vst.msk [vmem:[#allocation3 + $0x10] sm:$0xff] %vm1278, %v1187
      %1282 = vst.msk [vmem:[#allocation3 + $0x18] sm:$0xff] %vm1278, %v1189
      %1283 = vst.msk [vmem:[#allocation3 + $0x20] sm:$0xff] %vm1278, %v1191
      %1284 = vst.msk [vmem:[#allocation3 + $0x28] sm:$0xff] %vm1278, %v1193
      %1285 = vst.msk [vmem:[#allocation3 + $0x30] sm:$0xff] %vm1278, %v1195
      %1286 = vst.msk [vmem:[#allocation3 + $0x38] sm:$0xff] %vm1278, %v1197
      %1287 = vst.msk [vmem:[#allocation3 + $0x40] sm:$0xff] %vm1278, %v1199
      %1288 = vst.msk [vmem:[#allocation3 + $0x48] sm:$0xff] %vm1278, %v1201
      %1289 = vst.msk [vmem:[#allocation3 + $0x50] sm:$0xff] %vm1278, %v1203
      %1290 = vst.msk [vmem:[#allocation3 + $0x58] sm:$0xff] %vm1278, %v1205
      %1291 = vst.msk [vmem:[#allocation3 + $0x60] sm:$0xff] %vm1278, %v1207
      %1292 = vst.msk [vmem:[#allocation3 + $0x68] sm:$0xff] %vm1278, %v1209
      %1293 = vst.msk [vmem:[#allocation3 + $0x70] sm:$0xff] %vm1278, %v1211
      %1294 = vst.msk [vmem:[#allocation3 + $0x78] sm:$0xff] %vm1278, %v1213
      %1295 = vst.msk [vmem:[#allocation3 + $0x80] sm:$0xff] %vm1278, %v1215
      %1296 = vst.msk [vmem:[#allocation3 + $0x88] sm:$0xff] %vm1278, %v1217
      %1297 = vst.msk [vmem:[#allocation3 + $0x90] sm:$0xff] %vm1278, %v1219
      %1298 = vst.msk [vmem:[#allocation3 + $0x98] sm:$0xff] %vm1278, %v1221
      %1299 = vst.msk [vmem:[#allocation3 + $0xa0] sm:$0xff] %vm1278, %v1223
      %1300 = vst.msk [vmem:[#allocation3 + $0xa8] sm:$0xff] %vm1278, %v1225
      %1301 = vst.msk [vmem:[#allocation3 + $0xb0] sm:$0xff] %vm1278, %v1227
      %1302 = vst.msk [vmem:[#allocation3 + $0xb8] sm:$0xff] %vm1278, %v1229
      %1303 = vst.msk [vmem:[#allocation3 + $0xc0] sm:$0xff] %vm1278, %v1231
      %1304 = vst.msk [vmem:[#allocation3 + $0xc8] sm:$0xff] %vm1278, %v1233
      %1305 = vst.msk [vmem:[#allocation3 + $0xd0] sm:$0xff] %vm1278, %v1235
      %1306 = vst.msk [vmem:[#allocation3 + $0xd8] sm:$0xff] %vm1278, %v1237
      %1307 = vst.msk [vmem:[#allocation3 + $0xe0] sm:$0xff] %vm1278, %v1239
      %1308 = vst.msk [vmem:[#allocation3 + $0xe8] sm:$0xff] %vm1278, %v1241
      %1309 = vst.msk [vmem:[#allocation3 + $0xf0] sm:$0xff] %vm1278, %v1243
      %1310 = vst.msk [vmem:[#allocation3 + $0xf8] sm:$0xff] %vm1278, %v1245
      %s1311 = scalar_lea.vmem [#allocation2], 48
      %v1312 = vld [vmem:[%s1311] sm:$0xff]
      %v1313 = vld [vmem:[%s1311 + $0x8] sm:$0xff]
      %v1314 = vld [vmem:[%s1311 + $0x18] sm:$0xff]
      %v1315 = vld [vmem:[%s1311 + $0x20] sm:$0xff]
      %v1316 = vld [vmem:[%s1311 + $0x30] sm:$0xff]
      %v1317 = vld [vmem:[%s1311 + $0x38] sm:$0xff]
      %v1318 = vld [vmem:[%s1311 + $0x48] sm:$0xff]
      %v1319 = vld [vmem:[%s1311 + $0x50] sm:$0xff]
      %v1320 = vld [vmem:[%s1311 + $0x60] sm:$0xff]
      %v1321 = vld [vmem:[%s1311 + $0x68] sm:$0xff]
      %v1322 = vld [vmem:[%s1311 + $0x78] sm:$0xff]
      %v1323 = vld [vmem:[%s1311 + $0x80] sm:$0xff]
      %v1324 = vld [vmem:[%s1311 + $0x90] sm:$0xff]
      %v1325 = vld [vmem:[%s1311 + $0x98] sm:$0xff]
      %v1326 = vld [vmem:[%s1311 + $0xa8] sm:$0xff]
      %v1327 = vld [vmem:[%s1311 + $0xb0] sm:$0xff]
      %v1328 = vld [vmem:[%s1311 + $0xc0] sm:$0xff]
      %v1329 = vld [vmem:[%s1311 + $0xc8] sm:$0xff]
      %v1330 = vld [vmem:[%s1311 + $0xd8] sm:$0xff]
      %v1331 = vld [vmem:[%s1311 + $0xe0] sm:$0xff]
      %v1332 = vld [vmem:[%s1311 + $0xf0] sm:$0xff]
      %v1333 = vld [vmem:[%s1311 + $0xf8] sm:$0xff]
      %v1334 = vld [vmem:[%s1311 + $0x108] sm:$0xff]
      %v1335 = vld [vmem:[%s1311 + $0x110] sm:$0xff]
      %v1336 = vld [vmem:[%s1311 + $0x120] sm:$0xff]
      %v1337 = vld [vmem:[%s1311 + $0x128] sm:$0xff]
      %v1338 = vld [vmem:[%s1311 + $0x138] sm:$0xff]
      %v1339 = vld [vmem:[%s1311 + $0x140] sm:$0xff]
      %v1340 = vld [vmem:[%s1311 + $0x150] sm:$0xff]
      %v1341 = vld [vmem:[%s1311 + $0x158] sm:$0xff]
      %v1342 = vld [vmem:[%s1311 + $0x168] sm:$0xff]
      %v1343 = vld [vmem:[%s1311 + $0x170] sm:$0xff]
      %1376 = vrot.lane.b32.xlu0 %v1312, 24
      %v1377 = vpop.permute.xlu0 %1376
      %1378 = vrot.lane.b32.xlu0 %v1313, 24
      %v1379 = vpop.permute.xlu0 %1378
      %1380 = vrot.lane.b32.xlu0 %v1314, 24
      %v1381 = vpop.permute.xlu0 %1380
      %1382 = vrot.lane.b32.xlu0 %v1315, 24
      %v1383 = vpop.permute.xlu0 %1382
      %1384 = vrot.lane.b32.xlu0 %v1316, 24
      %v1385 = vpop.permute.xlu0 %1384
      %1386 = vrot.lane.b32.xlu0 %v1317, 24
      %v1387 = vpop.permute.xlu0 %1386
      %1388 = vrot.lane.b32.xlu0 %v1318, 24
      %v1389 = vpop.permute.xlu0 %1388
      %1390 = vrot.lane.b32.xlu0 %v1319, 24
      %v1391 = vpop.permute.xlu0 %1390
      %1392 = vrot.lane.b32.xlu0 %v1320, 24
      %v1393 = vpop.permute.xlu0 %1392
      %1394 = vrot.lane.b32.xlu0 %v1321, 24
      %v1395 = vpop.permute.xlu0 %1394
      %1396 = vrot.lane.b32.xlu0 %v1322, 24
      %v1397 = vpop.permute.xlu0 %1396
      %1398 = vrot.lane.b32.xlu0 %v1323, 24
      %v1399 = vpop.permute.xlu0 %1398
      %1400 = vrot.lane.b32.xlu0 %v1324, 24
      %v1401 = vpop.permute.xlu0 %1400
      %1402 = vrot.lane.b32.xlu0 %v1325, 24
      %v1403 = vpop.permute.xlu0 %1402
      %1404 = vrot.lane.b32.xlu0 %v1326, 24
      %v1405 = vpop.permute.xlu0 %1404
      %1406 = vrot.lane.b32.xlu0 %v1327, 24
      %v1407 = vpop.permute.xlu0 %1406
      %1408 = vrot.lane.b32.xlu0 %v1328, 24
      %v1409 = vpop.permute.xlu0 %1408
      %1410 = vrot.lane.b32.xlu0 %v1329, 24
      %v1411 = vpop.permute.xlu0 %1410
      %1412 = vrot.lane.b32.xlu0 %v1330, 24
      %v1413 = vpop.permute.xlu0 %1412
      %1414 = vrot.lane.b32.xlu0 %v1331, 24
      %v1415 = vpop.permute.xlu0 %1414
      %1416 = vrot.lane.b32.xlu0 %v1332, 24
      %v1417 = vpop.permute.xlu0 %1416
      %1418 = vrot.lane.b32.xlu0 %v1333, 24
      %v1419 = vpop.permute.xlu0 %1418
      %1420 = vrot.lane.b32.xlu0 %v1334, 24
      %v1421 = vpop.permute.xlu0 %1420
      %1422 = vrot.lane.b32.xlu0 %v1335, 24
      %v1423 = vpop.permute.xlu0 %1422
      %1424 = vrot.lane.b32.xlu0 %v1336, 24
      %v1425 = vpop.permute.xlu0 %1424
      %1426 = vrot.lane.b32.xlu0 %v1337, 24
      %v1427 = vpop.permute.xlu0 %1426
      %1428 = vrot.lane.b32.xlu0 %v1338, 24
      %v1429 = vpop.permute.xlu0 %1428
      %1430 = vrot.lane.b32.xlu0 %v1339, 24
      %v1431 = vpop.permute.xlu0 %1430
      %1432 = vrot.lane.b32.xlu0 %v1340, 24
      %v1433 = vpop.permute.xlu0 %1432
      %1434 = vrot.lane.b32.xlu0 %v1341, 24
      %v1435 = vpop.permute.xlu0 %1434
      %1436 = vrot.lane.b32.xlu0 %v1342, 24
      %v1437 = vpop.permute.xlu0 %1436
      %1438 = vrot.lane.b32.xlu0 %v1343, 24
      %v1439 = vpop.permute.xlu0 %1438
      %vm1472 = vcmask 228544
      %1473 = vst.msk [vmem:[#allocation3] sm:$0xff] %vm1472, %v1377
      %1474 = vst.msk [vmem:[#allocation3 + $0x8] sm:$0xff] %vm1472, %v1379
      %1475 = vst.msk [vmem:[#allocation3 + $0x10] sm:$0xff] %vm1472, %v1381
      %1476 = vst.msk [vmem:[#allocation3 + $0x18] sm:$0xff] %vm1472, %v1383
      %1477 = vst.msk [vmem:[#allocation3 + $0x20] sm:$0xff] %vm1472, %v1385
      %1478 = vst.msk [vmem:[#allocation3 + $0x28] sm:$0xff] %vm1472, %v1387
      %1479 = vst.msk [vmem:[#allocation3 + $0x30] sm:$0xff] %vm1472, %v1389
      %1480 = vst.msk [vmem:[#allocation3 + $0x38] sm:$0xff] %vm1472, %v1391
      %1481 = vst.msk [vmem:[#allocation3 + $0x40] sm:$0xff] %vm1472, %v1393
      %1482 = vst.msk [vmem:[#allocation3 + $0x48] sm:$0xff] %vm1472, %v1395
      %1483 = vst.msk [vmem:[#allocation3 + $0x50] sm:$0xff] %vm1472, %v1397
      %1484 = vst.msk [vmem:[#allocation3 + $0x58] sm:$0xff] %vm1472, %v1399
      %1485 = vst.msk [vmem:[#allocation3 + $0x60] sm:$0xff] %vm1472, %v1401
      %1486 = vst.msk [vmem:[#allocation3 + $0x68] sm:$0xff] %vm1472, %v1403
      %1487 = vst.msk [vmem:[#allocation3 + $0x70] sm:$0xff] %vm1472, %v1405
      %1488 = vst.msk [vmem:[#allocation3 + $0x78] sm:$0xff] %vm1472, %v1407
      %1489 = vst.msk [vmem:[#allocation3 + $0x80] sm:$0xff] %vm1472, %v1409
      %1490 = vst.msk [vmem:[#allocation3 + $0x88] sm:$0xff] %vm1472, %v1411
      %1491 = vst.msk [vmem:[#allocation3 + $0x90] sm:$0xff] %vm1472, %v1413
      %1492 = vst.msk [vmem:[#allocation3 + $0x98] sm:$0xff] %vm1472, %v1415
      %1493 = vst.msk [vmem:[#allocation3 + $0xa0] sm:$0xff] %vm1472, %v1417
      %1494 = vst.msk [vmem:[#allocation3 + $0xa8] sm:$0xff] %vm1472, %v1419
      %1495 = vst.msk [vmem:[#allocation3 + $0xb0] sm:$0xff] %vm1472, %v1421
      %1496 = vst.msk [vmem:[#allocation3 + $0xb8] sm:$0xff] %vm1472, %v1423
      %1497 = vst.msk [vmem:[#allocation3 + $0xc0] sm:$0xff] %vm1472, %v1425
      %1498 = vst.msk [vmem:[#allocation3 + $0xc8] sm:$0xff] %vm1472, %v1427
      %1499 = vst.msk [vmem:[#allocation3 + $0xd0] sm:$0xff] %vm1472, %v1429
      %1500 = vst.msk [vmem:[#allocation3 + $0xd8] sm:$0xff] %vm1472, %v1431
      %1501 = vst.msk [vmem:[#allocation3 + $0xe0] sm:$0xff] %vm1472, %v1433
      %1502 = vst.msk [vmem:[#allocation3 + $0xe8] sm:$0xff] %vm1472, %v1435
      %1503 = vst.msk [vmem:[#allocation3 + $0xf0] sm:$0xff] %vm1472, %v1437
      %1504 = vst.msk [vmem:[#allocation3 + $0xf8] sm:$0xff] %vm1472, %v1439
      %v1505 = vld [vmem:[%s1311 + $0x1] sm:$0xff]
      %v1506 = vld [vmem:[%s1311 + $0x9] sm:$0xff]
      %v1507 = vld [vmem:[%s1311 + $0x19] sm:$0xff]
      %v1508 = vld [vmem:[%s1311 + $0x21] sm:$0xff]
      %v1509 = vld [vmem:[%s1311 + $0x31] sm:$0xff]
      %v1510 = vld [vmem:[%s1311 + $0x39] sm:$0xff]
      %v1511 = vld [vmem:[%s1311 + $0x49] sm:$0xff]
      %v1512 = vld [vmem:[%s1311 + $0x51] sm:$0xff]
      %v1513 = vld [vmem:[%s1311 + $0x61] sm:$0xff]
      %v1514 = vld [vmem:[%s1311 + $0x69] sm:$0xff]
      %v1515 = vld [vmem:[%s1311 + $0x79] sm:$0xff]
      %v1516 = vld [vmem:[%s1311 + $0x81] sm:$0xff]
      %v1517 = vld [vmem:[%s1311 + $0x91] sm:$0xff]
      %v1518 = vld [vmem:[%s1311 + $0x99] sm:$0xff]
      %v1519 = vld [vmem:[%s1311 + $0xa9] sm:$0xff]
      %v1520 = vld [vmem:[%s1311 + $0xb1] sm:$0xff]
      %v1521 = vld [vmem:[%s1311 + $0xc1] sm:$0xff]
      %v1522 = vld [vmem:[%s1311 + $0xc9] sm:$0xff]
      %v1523 = vld [vmem:[%s1311 + $0xd9] sm:$0xff]
      %v1524 = vld [vmem:[%s1311 + $0xe1] sm:$0xff]
      %v1525 = vld [vmem:[%s1311 + $0xf1] sm:$0xff]
      %v1526 = vld [vmem:[%s1311 + $0xf9] sm:$0xff]
      %v1527 = vld [vmem:[%s1311 + $0x109] sm:$0xff]
      %v1528 = vld [vmem:[%s1311 + $0x111] sm:$0xff]
      %v1529 = vld [vmem:[%s1311 + $0x121] sm:$0xff]
      %v1530 = vld [vmem:[%s1311 + $0x129] sm:$0xff]
      %v1531 = vld [vmem:[%s1311 + $0x139] sm:$0xff]
      %v1532 = vld [vmem:[%s1311 + $0x141] sm:$0xff]
      %v1533 = vld [vmem:[%s1311 + $0x151] sm:$0xff]
      %v1534 = vld [vmem:[%s1311 + $0x159] sm:$0xff]
      %v1535 = vld [vmem:[%s1311 + $0x169] sm:$0xff]
      %v1536 = vld [vmem:[%s1311 + $0x171] sm:$0xff]
      %1569 = vrot.lane.b32.xlu0 %v1505, 28
      %v1570 = vpop.permute.xlu0 %1569
      %1571 = vrot.lane.b32.xlu0 %v1506, 28
      %v1572 = vpop.permute.xlu0 %1571
      %1573 = vrot.lane.b32.xlu0 %v1507, 28
      %v1574 = vpop.permute.xlu0 %1573
      %1575 = vrot.lane.b32.xlu0 %v1508, 28
      %v1576 = vpop.permute.xlu0 %1575
      %1577 = vrot.lane.b32.xlu0 %v1509, 28
      %v1578 = vpop.permute.xlu0 %1577
      %1579 = vrot.lane.b32.xlu0 %v1510, 28
      %v1580 = vpop.permute.xlu0 %1579
      %1581 = vrot.lane.b32.xlu0 %v1511, 28
      %v1582 = vpop.permute.xlu0 %1581
      %1583 = vrot.lane.b32.xlu0 %v1512, 28
      %v1584 = vpop.permute.xlu0 %1583
      %1585 = vrot.lane.b32.xlu0 %v1513, 28
      %v1586 = vpop.permute.xlu0 %1585
      %1587 = vrot.lane.b32.xlu0 %v1514, 28
      %v1588 = vpop.permute.xlu0 %1587
      %1589 = vrot.lane.b32.xlu0 %v1515, 28
      %v1590 = vpop.permute.xlu0 %1589
      %1591 = vrot.lane.b32.xlu0 %v1516, 28
      %v1592 = vpop.permute.xlu0 %1591
      %1593 = vrot.lane.b32.xlu0 %v1517, 28
      %v1594 = vpop.permute.xlu0 %1593
      %1595 = vrot.lane.b32.xlu0 %v1518, 28
      %v1596 = vpop.permute.xlu0 %1595
      %1597 = vrot.lane.b32.xlu0 %v1519, 28
      %v1598 = vpop.permute.xlu0 %1597
      %1599 = vrot.lane.b32.xlu0 %v1520, 28
      %v1600 = vpop.permute.xlu0 %1599
      %1601 = vrot.lane.b32.xlu0 %v1521, 28
      %v1602 = vpop.permute.xlu0 %1601
      %1603 = vrot.lane.b32.xlu0 %v1522, 28
      %v1604 = vpop.permute.xlu0 %1603
      %1605 = vrot.lane.b32.xlu0 %v1523, 28
      %v1606 = vpop.permute.xlu0 %1605
      %1607 = vrot.lane.b32.xlu0 %v1524, 28
      %v1608 = vpop.permute.xlu0 %1607
      %1609 = vrot.lane.b32.xlu0 %v1525, 28
      %v1610 = vpop.permute.xlu0 %1609
      %1611 = vrot.lane.b32.xlu0 %v1526, 28
      %v1612 = vpop.permute.xlu0 %1611
      %1613 = vrot.lane.b32.xlu0 %v1527, 28
      %v1614 = vpop.permute.xlu0 %1613
      %1615 = vrot.lane.b32.xlu0 %v1528, 28
      %v1616 = vpop.permute.xlu0 %1615
      %1617 = vrot.lane.b32.xlu0 %v1529, 28
      %v1618 = vpop.permute.xlu0 %1617
      %1619 = vrot.lane.b32.xlu0 %v1530, 28
      %v1620 = vpop.permute.xlu0 %1619
      %1621 = vrot.lane.b32.xlu0 %v1531, 28
      %v1622 = vpop.permute.xlu0 %1621
      %1623 = vrot.lane.b32.xlu0 %v1532, 28
      %v1624 = vpop.permute.xlu0 %1623
      %1625 = vrot.lane.b32.xlu0 %v1533, 28
      %v1626 = vpop.permute.xlu0 %1625
      %1627 = vrot.lane.b32.xlu0 %v1534, 28
      %v1628 = vpop.permute.xlu0 %1627
      %1629 = vrot.lane.b32.xlu0 %v1535, 28
      %v1630 = vpop.permute.xlu0 %1629
      %1631 = vrot.lane.b32.xlu0 %v1536, 28
      %v1632 = vpop.permute.xlu0 %1631
      %vm1665 = vcmask 261344
      %1666 = vst.msk [vmem:[#allocation3] sm:$0xff] %vm1665, %v1570
      %1667 = vst.msk [vmem:[#allocation3 + $0x8] sm:$0xff] %vm1665, %v1572
      %1668 = vst.msk [vmem:[#allocation3 + $0x10] sm:$0xff] %vm1665, %v1574
      %1669 = vst.msk [vmem:[#allocation3 + $0x18] sm:$0xff] %vm1665, %v1576
      %1670 = vst.msk [vmem:[#allocation3 + $0x20] sm:$0xff] %vm1665, %v1578
      %1671 = vst.msk [vmem:[#allocation3 + $0x28] sm:$0xff] %vm1665, %v1580
      %1672 = vst.msk [vmem:[#allocation3 + $0x30] sm:$0xff] %vm1665, %v1582
      %1673 = vst.msk [vmem:[#allocation3 + $0x38] sm:$0xff] %vm1665, %v1584
      %1674 = vst.msk [vmem:[#allocation3 + $0x40] sm:$0xff] %vm1665, %v1586
      %1675 = vst.msk [vmem:[#allocation3 + $0x48] sm:$0xff] %vm1665, %v1588
      %1676 = vst.msk [vmem:[#allocation3 + $0x50] sm:$0xff] %vm1665, %v1590
      %1677 = vst.msk [vmem:[#allocation3 + $0x58] sm:$0xff] %vm1665, %v1592
      %1678 = vst.msk [vmem:[#allocation3 + $0x60] sm:$0xff] %vm1665, %v1594
      %1679 = vst.msk [vmem:[#allocation3 + $0x68] sm:$0xff] %vm1665, %v1596
      %1680 = vst.msk [vmem:[#allocation3 + $0x70] sm:$0xff] %vm1665, %v1598
      %1681 = vst.msk [vmem:[#allocation3 + $0x78] sm:$0xff] %vm1665, %v1600
      %1682 = vst.msk [vmem:[#allocation3 + $0x80] sm:$0xff] %vm1665, %v1602
      %1683 = vst.msk [vmem:[#allocation3 + $0x88] sm:$0xff] %vm1665, %v1604
      %1684 = vst.msk [vmem:[#allocation3 + $0x90] sm:$0xff] %vm1665, %v1606
      %1685 = vst.msk [vmem:[#allocation3 + $0x98] sm:$0xff] %vm1665, %v1608
      %1686 = vst.msk [vmem:[#allocation3 + $0xa0] sm:$0xff] %vm1665, %v1610
      %1687 = vst.msk [vmem:[#allocation3 + $0xa8] sm:$0xff] %vm1665, %v1612
      %1688 = vst.msk [vmem:[#allocation3 + $0xb0] sm:$0xff] %vm1665, %v1614
      %1689 = vst.msk [vmem:[#allocation3 + $0xb8] sm:$0xff] %vm1665, %v1616
      %1690 = vst.msk [vmem:[#allocation3 + $0xc0] sm:$0xff] %vm1665, %v1618
      %1691 = vst.msk [vmem:[#allocation3 + $0xc8] sm:$0xff] %vm1665, %v1620
      %1692 = vst.msk [vmem:[#allocation3 + $0xd0] sm:$0xff] %vm1665, %v1622
      %1693 = vst.msk [vmem:[#allocation3 + $0xd8] sm:$0xff] %vm1665, %v1624
      %1694 = vst.msk [vmem:[#allocation3 + $0xe0] sm:$0xff] %vm1665, %v1626
      %1695 = vst.msk [vmem:[#allocation3 + $0xe8] sm:$0xff] %vm1665, %v1628
      %1696 = vst.msk [vmem:[#allocation3 + $0xf0] sm:$0xff] %vm1665, %v1630
      %1697 = vst.msk [vmem:[#allocation3 + $0xf8] sm:$0xff] %vm1665, %v1632
      %v1698 = vld [vmem:[%s1311 + $0x2] sm:$0xff]
      %v1699 = vld [vmem:[%s1311 + $0xa] sm:$0xff]
      %v1700 = vld [vmem:[%s1311 + $0x1a] sm:$0xff]
      %v1701 = vld [vmem:[%s1311 + $0x22] sm:$0xff]
      %v1702 = vld [vmem:[%s1311 + $0x32] sm:$0xff]
      %v1703 = vld [vmem:[%s1311 + $0x3a] sm:$0xff]
      %v1704 = vld [vmem:[%s1311 + $0x4a] sm:$0xff]
      %v1705 = vld [vmem:[%s1311 + $0x52] sm:$0xff]
      %v1706 = vld [vmem:[%s1311 + $0x62] sm:$0xff]
      %v1707 = vld [vmem:[%s1311 + $0x6a] sm:$0xff]
      %v1708 = vld [vmem:[%s1311 + $0x7a] sm:$0xff]
      %v1709 = vld [vmem:[%s1311 + $0x82] sm:$0xff]
      %v1710 = vld [vmem:[%s1311 + $0x92] sm:$0xff]
      %v1711 = vld [vmem:[%s1311 + $0x9a] sm:$0xff]
      %v1712 = vld [vmem:[%s1311 + $0xaa] sm:$0xff]
      %v1713 = vld [vmem:[%s1311 + $0xb2] sm:$0xff]
      %v1714 = vld [vmem:[%s1311 + $0xc2] sm:$0xff]
      %v1715 = vld [vmem:[%s1311 + $0xca] sm:$0xff]
      %v1716 = vld [vmem:[%s1311 + $0xda] sm:$0xff]
      %v1717 = vld [vmem:[%s1311 + $0xe2] sm:$0xff]
      %v1718 = vld [vmem:[%s1311 + $0xf2] sm:$0xff]
      %v1719 = vld [vmem:[%s1311 + $0xfa] sm:$0xff]
      %v1720 = vld [vmem:[%s1311 + $0x10a] sm:$0xff]
      %v1721 = vld [vmem:[%s1311 + $0x112] sm:$0xff]
      %v1722 = vld [vmem:[%s1311 + $0x122] sm:$0xff]
      %v1723 = vld [vmem:[%s1311 + $0x12a] sm:$0xff]
      %v1724 = vld [vmem:[%s1311 + $0x13a] sm:$0xff]
      %v1725 = vld [vmem:[%s1311 + $0x142] sm:$0xff]
      %v1726 = vld [vmem:[%s1311 + $0x152] sm:$0xff]
      %v1727 = vld [vmem:[%s1311 + $0x15a] sm:$0xff]
      %v1728 = vld [vmem:[%s1311 + $0x16a] sm:$0xff]
      %v1729 = vld [vmem:[%s1311 + $0x172] sm:$0xff]
      %1762 = vrot.lane.b32.xlu0 %v1698, 32
      %v1763 = vpop.permute.xlu0 %1762
      %1764 = vrot.lane.b32.xlu0 %v1699, 32
      %v1765 = vpop.permute.xlu0 %1764
      %1766 = vrot.lane.b32.xlu0 %v1700, 32
      %v1767 = vpop.permute.xlu0 %1766
      %1768 = vrot.lane.b32.xlu0 %v1701, 32
      %v1769 = vpop.permute.xlu0 %1768
      %1770 = vrot.lane.b32.xlu0 %v1702, 32
      %v1771 = vpop.permute.xlu0 %1770
      %1772 = vrot.lane.b32.xlu0 %v1703, 32
      %v1773 = vpop.permute.xlu0 %1772
      %1774 = vrot.lane.b32.xlu0 %v1704, 32
      %v1775 = vpop.permute.xlu0 %1774
      %1776 = vrot.lane.b32.xlu0 %v1705, 32
      %v1777 = vpop.permute.xlu0 %1776
      %1778 = vrot.lane.b32.xlu0 %v1706, 32
      %v1779 = vpop.permute.xlu0 %1778
      %1780 = vrot.lane.b32.xlu0 %v1707, 32
      %v1781 = vpop.permute.xlu0 %1780
      %1782 = vrot.lane.b32.xlu0 %v1708, 32
      %v1783 = vpop.permute.xlu0 %1782
      %1784 = vrot.lane.b32.xlu0 %v1709, 32
      %v1785 = vpop.permute.xlu0 %1784
      %1786 = vrot.lane.b32.xlu0 %v1710, 32
      %v1787 = vpop.permute.xlu0 %1786
      %1788 = vrot.lane.b32.xlu0 %v1711, 32
      %v1789 = vpop.permute.xlu0 %1788
      %1790 = vrot.lane.b32.xlu0 %v1712, 32
      %v1791 = vpop.permute.xlu0 %1790
      %1792 = vrot.lane.b32.xlu0 %v1713, 32
      %v1793 = vpop.permute.xlu0 %1792
      %1794 = vrot.lane.b32.xlu0 %v1714, 32
      %v1795 = vpop.permute.xlu0 %1794
      %1796 = vrot.lane.b32.xlu0 %v1715, 32
      %v1797 = vpop.permute.xlu0 %1796
      %1798 = vrot.lane.b32.xlu0 %v1716, 32
      %v1799 = vpop.permute.xlu0 %1798
      %1800 = vrot.lane.b32.xlu0 %v1717, 32
      %v1801 = vpop.permute.xlu0 %1800
      %1802 = vrot.lane.b32.xlu0 %v1718, 32
      %v1803 = vpop.permute.xlu0 %1802
      %1804 = vrot.lane.b32.xlu0 %v1719, 32
      %v1805 = vpop.permute.xlu0 %1804
      %1806 = vrot.lane.b32.xlu0 %v1720, 32
      %v1807 = vpop.permute.xlu0 %1806
      %1808 = vrot.lane.b32.xlu0 %v1721, 32
      %v1809 = vpop.permute.xlu0 %1808
      %1810 = vrot.lane.b32.xlu0 %v1722, 32
      %v1811 = vpop.permute.xlu0 %1810
      %1812 = vrot.lane.b32.xlu0 %v1723, 32
      %v1813 = vpop.permute.xlu0 %1812
      %1814 = vrot.lane.b32.xlu0 %v1724, 32
      %v1815 = vpop.permute.xlu0 %1814
      %1816 = vrot.lane.b32.xlu0 %v1725, 32
      %v1817 = vpop.permute.xlu0 %1816
      %1818 = vrot.lane.b32.xlu0 %v1726, 32
      %v1819 = vpop.permute.xlu0 %1818
      %1820 = vrot.lane.b32.xlu0 %v1727, 32
      %v1821 = vpop.permute.xlu0 %1820
      %1822 = vrot.lane.b32.xlu0 %v1728, 32
      %v1823 = vpop.permute.xlu0 %1822
      %1824 = vrot.lane.b32.xlu0 %v1729, 32
      %v1825 = vpop.permute.xlu0 %1824
      %vm1858 = vcmask 294144
      %1859 = vst.msk [vmem:[#allocation3] sm:$0xff] %vm1858, %v1763
      %1860 = vst.msk [vmem:[#allocation3 + $0x8] sm:$0xff] %vm1858, %v1765
      %1861 = vst.msk [vmem:[#allocation3 + $0x10] sm:$0xff] %vm1858, %v1767
      %1862 = vst.msk [vmem:[#allocation3 + $0x18] sm:$0xff] %vm1858, %v1769
      %1863 = vst.msk [vmem:[#allocation3 + $0x20] sm:$0xff] %vm1858, %v1771
      %1864 = vst.msk [vmem:[#allocation3 + $0x28] sm:$0xff] %vm1858, %v1773
      %1865 = vst.msk [vmem:[#allocation3 + $0x30] sm:$0xff] %vm1858, %v1775
      %1866 = vst.msk [vmem:[#allocation3 + $0x38] sm:$0xff] %vm1858, %v1777
      %1867 = vst.msk [vmem:[#allocation3 + $0x40] sm:$0xff] %vm1858, %v1779
      %1868 = vst.msk [vmem:[#allocation3 + $0x48] sm:$0xff] %vm1858, %v1781
      %1869 = vst.msk [vmem:[#allocation3 + $0x50] sm:$0xff] %vm1858, %v1783
      %1870 = vst.msk [vmem:[#allocation3 + $0x58] sm:$0xff] %vm1858, %v1785
      %1871 = vst.msk [vmem:[#allocation3 + $0x60] sm:$0xff] %vm1858, %v1787
      %1872 = vst.msk [vmem:[#allocation3 + $0x68] sm:$0xff] %vm1858, %v1789
      %1873 = vst.msk [vmem:[#allocation3 + $0x70] sm:$0xff] %vm1858, %v1791
      %1874 = vst.msk [vmem:[#allocation3 + $0x78] sm:$0xff] %vm1858, %v1793
      %1875 = vst.msk [vmem:[#allocation3 + $0x80] sm:$0xff] %vm1858, %v1795
      %1876 = vst.msk [vmem:[#allocation3 + $0x88] sm:$0xff] %vm1858, %v1797
      %1877 = vst.msk [vmem:[#allocation3 + $0x90] sm:$0xff] %vm1858, %v1799
      %1878 = vst.msk [vmem:[#allocation3 + $0x98] sm:$0xff] %vm1858, %v1801
      %1879 = vst.msk [vmem:[#allocation3 + $0xa0] sm:$0xff] %vm1858, %v1803
      %1880 = vst.msk [vmem:[#allocation3 + $0xa8] sm:$0xff] %vm1858, %v1805
      %1881 = vst.msk [vmem:[#allocation3 + $0xb0] sm:$0xff] %vm1858, %v1807
      %1882 = vst.msk [vmem:[#allocation3 + $0xb8] sm:$0xff] %vm1858, %v1809
      %1883 = vst.msk [vmem:[#allocation3 + $0xc0] sm:$0xff] %vm1858, %v1811
      %1884 = vst.msk [vmem:[#allocation3 + $0xc8] sm:$0xff] %vm1858, %v1813
      %1885 = vst.msk [vmem:[#allocation3 + $0xd0] sm:$0xff] %vm1858, %v1815
      %1886 = vst.msk [vmem:[#allocation3 + $0xd8] sm:$0xff] %vm1858, %v1817
      %1887 = vst.msk [vmem:[#allocation3 + $0xe0] sm:$0xff] %vm1858, %v1819
      %1888 = vst.msk [vmem:[#allocation3 + $0xe8] sm:$0xff] %vm1858, %v1821
      %1889 = vst.msk [vmem:[#allocation3 + $0xf0] sm:$0xff] %vm1858, %v1823
      %1890 = vst.msk [vmem:[#allocation3 + $0xf8] sm:$0xff] %vm1858, %v1825
      %v1891 = vld [vmem:[#allocation3] sm:$0xff]
      %v1892 = vld [vmem:[#allocation3 + $0x8] sm:$0xff]
      %v1893 = vld [vmem:[#allocation3 + $0x10] sm:$0xff]
      %v1894 = vld [vmem:[#allocation3 + $0x18] sm:$0xff]
      %v1895 = vld [vmem:[#allocation3 + $0x20] sm:$0xff]
      %v1896 = vld [vmem:[#allocation3 + $0x28] sm:$0xff]
      %v1897 = vld [vmem:[#allocation3 + $0x30] sm:$0xff]
      %v1898 = vld [vmem:[#allocation3 + $0x38] sm:$0xff]
      %v1899 = vld [vmem:[#allocation3 + $0x40] sm:$0xff]
      %v1900 = vld [vmem:[#allocation3 + $0x48] sm:$0xff]
      %v1901 = vld [vmem:[#allocation3 + $0x50] sm:$0xff]
      %v1902 = vld [vmem:[#allocation3 + $0x58] sm:$0xff]
      %v1903 = vld [vmem:[#allocation3 + $0x60] sm:$0xff]
      %v1904 = vld [vmem:[#allocation3 + $0x68] sm:$0xff]
      %v1905 = vld [vmem:[#allocation3 + $0x70] sm:$0xff]
      %v1906 = vld [vmem:[#allocation3 + $0x78] sm:$0xff]
      %v1907 = vld [vmem:[#allocation3 + $0x80] sm:$0xff]
      %v1908 = vld [vmem:[#allocation3 + $0x88] sm:$0xff]
      %v1909 = vld [vmem:[#allocation3 + $0x90] sm:$0xff]
      %v1910 = vld [vmem:[#allocation3 + $0x98] sm:$0xff]
      %v1911 = vld [vmem:[#allocation3 + $0xa0] sm:$0xff]
      %v1912 = vld [vmem:[#allocation3 + $0xa8] sm:$0xff]
      %v1913 = vld [vmem:[#allocation3 + $0xb0] sm:$0xff]
      %v1914 = vld [vmem:[#allocation3 + $0xb8] sm:$0xff]
      %v1915 = vld [vmem:[#allocation3 + $0xc0] sm:$0xff]
      %v1916 = vld [vmem:[#allocation3 + $0xc8] sm:$0xff]
      %v1917 = vld [vmem:[#allocation3 + $0xd0] sm:$0xff]
      %v1918 = vld [vmem:[#allocation3 + $0xd8] sm:$0xff]
      %v1919 = vld [vmem:[#allocation3 + $0xe0] sm:$0xff]
      %v1920 = vld [vmem:[#allocation3 + $0xe8] sm:$0xff]
      %v1921 = vld [vmem:[#allocation3 + $0xf0] sm:$0xff]
      %v1922 = vld [vmem:[#allocation3 + $0xf8] sm:$0xff]
      %v1923 = vld [vmem:[%s1] sm:$0xff]
      %v1924 = vld [vmem:[%s1 + $0x8] sm:$0xff]
      %v1925 = vld [vmem:[%s1 + $0x10] sm:$0xff]
      %v1926 = vld [vmem:[%s1 + $0x18] sm:$0xff]
      %v1927 = vld [vmem:[%s1 + $0x20] sm:$0xf]
      %vm1928 = vcmask 293888
      %v1930 = vsel %vm1928, %v1891, 0
      %v1933 = vsel %vm1928, %v1892, 0
      %v1936 = vsel %vm1928, %v1893, 0
      %v1939 = vsel %vm1928, %v1894, 0
      %v1942 = vsel %vm1928, %v1895, 0
      %v1945 = vsel %vm1928, %v1896, 0
      %v1948 = vsel %vm1928, %v1897, 0
      %v1951 = vsel %vm1928, %v1898, 0
      %v1954 = vsel %vm1928, %v1899, 0
      %v1957 = vsel %vm1928, %v1900, 0
      %v1960 = vsel %vm1928, %v1901, 0
      %v1963 = vsel %vm1928, %v1902, 0
      %v1966 = vsel %vm1928, %v1903, 0
      %v1969 = vsel %vm1928, %v1904, 0
      %v1972 = vsel %vm1928, %v1905, 0
      %v1975 = vsel %vm1928, %v1906, 0
      %v1978 = vsel %vm1928, %v1907, 0
      %v1981 = vsel %vm1928, %v1908, 0
      %v1984 = vsel %vm1928, %v1909, 0
      %v1987 = vsel %vm1928, %v1910, 0
      %v1990 = vsel %vm1928, %v1911, 0
      %v1993 = vsel %vm1928, %v1912, 0
      %v1996 = vsel %vm1928, %v1913, 0
      %v1999 = vsel %vm1928, %v1914, 0
      %v2002 = vsel %vm1928, %v1915, 0
      %v2005 = vsel %vm1928, %v1916, 0
      %v2008 = vsel %vm1928, %v1917, 0
      %v2011 = vsel %vm1928, %v1918, 0
      %v2014 = vsel %vm1928, %v1919, 0
      %v2017 = vsel %vm1928, %v1920, 0
      %v2020 = vsel %vm1928, %v1921, 0
      %v2023 = vsel %vm1928, %v1922, 0
      %vm2025 = vcmask 1043456
      %v2027 = vsel %vm2025, %v1927, 0
      %2029 = vmatpush.msra.mxu0 0.0
      %2030 = vmatpush.msra.mxu0 0.0
      %2031 = vmatpush.msra.mxu0 0.0
      %2032 = vmatpush.msra.mxu0 0.0
      %2033 = vmatpush.msra.mxu0 0.0
      %2034 = vmatpush.msra.mxu0 0.0
      %2035 = vmatpush.msra.mxu0 0.0
      %2036 = vmatpush.msra.mxu0 0.0
      %2037 = vmatpush.msra.mxu0 0.0
      %2038 = vmatpush.msra.mxu0 0.0
      %2039 = vmatpush.msra.mxu0 0.0
      %2040 = vmatpush.msra.mxu0 %v2027
      %2041 = vmatpush.msra.mxu0 %v1926
      %2042 = vmatpush.msra.mxu0 %v1925
      %2043 = vmatpush.msra.mxu0 %v1924
      %2044 = vmatpush.msra.mxu0 %v1923
      %2045 = vmatmul.f32.gmra.mxu0 %v1930
      %v2046 = vpop.f32.mrf.mxu0
      %v2047 = vadd.f32 0.0, %v2046
      %2048 = vmatmul.f32.gmra.mxu0 %v1933
      %v2049 = vpop.f32.mrf.mxu0
      %v2050 = vadd.f32 0.0, %v2049
      %2051 = vmatmul.f32.gmra.mxu0 %v1936
      %v2052 = vpop.f32.mrf.mxu0
      %v2053 = vadd.f32 0.0, %v2052
      %2054 = vmatmul.f32.gmra.mxu0 %v1939
      %v2055 = vpop.f32.mrf.mxu0
      %v2056 = vadd.f32 0.0, %v2055
      %2057 = vmatmul.f32.gmra.mxu0 %v1942
      %v2058 = vpop.f32.mrf.mxu0
      %v2059 = vadd.f32 0.0, %v2058
      %2060 = vmatmul.f32.gmra.mxu0 %v1945
      %v2061 = vpop.f32.mrf.mxu0
      %v2062 = vadd.f32 0.0, %v2061
      %2063 = vmatmul.f32.gmra.mxu0 %v1948
      %v2064 = vpop.f32.mrf.mxu0
      %v2065 = vadd.f32 0.0, %v2064
      %2066 = vmatmul.f32.gmra.mxu0 %v1951
      %v2067 = vpop.f32.mrf.mxu0
      %v2068 = vadd.f32 0.0, %v2067
      %2069 = vmatmul.f32.gmra.mxu0 %v1954
      %v2070 = vpop.f32.mrf.mxu0
      %v2071 = vadd.f32 0.0, %v2070
      %2072 = vmatmul.f32.gmra.mxu0 %v1957
      %v2073 = vpop.f32.mrf.mxu0
      %v2074 = vadd.f32 0.0, %v2073
      %2075 = vmatmul.f32.gmra.mxu0 %v1960
      %v2076 = vpop.f32.mrf.mxu0
      %v2077 = vadd.f32 0.0, %v2076
      %2078 = vmatmul.f32.gmra.mxu0 %v1963
      %v2079 = vpop.f32.mrf.mxu0
      %v2080 = vadd.f32 0.0, %v2079
      %2081 = vmatmul.f32.gmra.mxu0 %v1966
      %v2082 = vpop.f32.mrf.mxu0
      %v2083 = vadd.f32 0.0, %v2082
      %2084 = vmatmul.f32.gmra.mxu0 %v1969
      %v2085 = vpop.f32.mrf.mxu0
      %v2086 = vadd.f32 0.0, %v2085
      %2087 = vmatmul.f32.gmra.mxu0 %v1972
      %v2088 = vpop.f32.mrf.mxu0
      %v2089 = vadd.f32 0.0, %v2088
      %2090 = vmatmul.f32.gmra.mxu0 %v1975
      %v2091 = vpop.f32.mrf.mxu0
      %v2092 = vadd.f32 0.0, %v2091
      %2093 = vmatmul.f32.gmra.mxu0 %v1978
      %v2094 = vpop.f32.mrf.mxu0
      %v2095 = vadd.f32 0.0, %v2094
      %2096 = vmatmul.f32.gmra.mxu0 %v1981
      %v2097 = vpop.f32.mrf.mxu0
      %v2098 = vadd.f32 0.0, %v2097
      %2099 = vmatmul.f32.gmra.mxu0 %v1984
      %v2100 = vpop.f32.mrf.mxu0
      %v2101 = vadd.f32 0.0, %v2100
      %2102 = vmatmul.f32.gmra.mxu0 %v1987
      %v2103 = vpop.f32.mrf.mxu0
      %v2104 = vadd.f32 0.0, %v2103
      %2105 = vmatmul.f32.gmra.mxu0 %v1990
      %v2106 = vpop.f32.mrf.mxu0
      %v2107 = vadd.f32 0.0, %v2106
      %2108 = vmatmul.f32.gmra.mxu0 %v1993
      %v2109 = vpop.f32.mrf.mxu0
      %v2110 = vadd.f32 0.0, %v2109
      %2111 = vmatmul.f32.gmra.mxu0 %v1996
      %v2112 = vpop.f32.mrf.mxu0
      %v2113 = vadd.f32 0.0, %v2112
      %2114 = vmatmul.f32.gmra.mxu0 %v1999
      %v2115 = vpop.f32.mrf.mxu0
      %v2116 = vadd.f32 0.0, %v2115
      %2117 = vmatmul.f32.gmra.mxu0 %v2002
      %v2118 = vpop.f32.mrf.mxu0
      %v2119 = vadd.f32 0.0, %v2118
      %2120 = vmatmul.f32.gmra.mxu0 %v2005
      %v2121 = vpop.f32.mrf.mxu0
      %v2122 = vadd.f32 0.0, %v2121
      %2123 = vmatmul.f32.gmra.mxu0 %v2008
      %v2124 = vpop.f32.mrf.mxu0
      %v2125 = vadd.f32 0.0, %v2124
      %2126 = vmatmul.f32.gmra.mxu0 %v2011
      %v2127 = vpop.f32.mrf.mxu0
      %v2128 = vadd.f32 0.0, %v2127
      %2129 = vmatmul.f32.gmra.mxu0 %v2014
      %v2130 = vpop.f32.mrf.mxu0
      %v2131 = vadd.f32 0.0, %v2130
      %2132 = vmatmul.f32.gmra.mxu0 %v2017
      %v2133 = vpop.f32.mrf.mxu0
      %v2134 = vadd.f32 0.0, %v2133
      %2135 = vmatmul.f32.gmra.mxu0 %v2020
      %v2136 = vpop.f32.mrf.mxu0
      %v2137 = vadd.f32 0.0, %v2136
      %2138 = vmatmul.f32.gmra.mxu0 %v2023
      %v2139 = vpop.f32.mrf.mxu0
      %v2140 = vadd.f32 0.0, %v2139
      %2141 = vdwg.mxu0
      %v2142 = vsel %vm171, %v2047, 0.0
      %v2143 = vsel %vm171, %v2050, 0.0
      %v2144 = vadd.f32 %v2142, %v2143
      %v2145 = vsel %vm171, %v2053, 0.0
      %v2146 = vadd.f32 %v2144, %v2145
      %v2147 = vsel %vm171, %v2056, 0.0
      %v2148 = vadd.f32 %v2146, %v2147
      %v2149 = vsel %vm171, %v2059, 0.0
      %v2150 = vadd.f32 %v2148, %v2149
      %v2151 = vsel %vm171, %v2062, 0.0
      %v2152 = vadd.f32 %v2150, %v2151
      %v2153 = vsel %vm171, %v2065, 0.0
      %v2154 = vadd.f32 %v2152, %v2153
      %v2155 = vsel %vm171, %v2068, 0.0
      %v2156 = vadd.f32 %v2154, %v2155
      %v2157 = vsel %vm171, %v2071, 0.0
      %v2158 = vadd.f32 %v2156, %v2157
      %v2159 = vsel %vm171, %v2074, 0.0
      %v2160 = vadd.f32 %v2158, %v2159
      %v2161 = vsel %vm171, %v2077, 0.0
      %v2162 = vadd.f32 %v2160, %v2161
      %v2163 = vsel %vm171, %v2080, 0.0
      %v2164 = vadd.f32 %v2162, %v2163
      %v2165 = vsel %vm171, %v2083, 0.0
      %v2166 = vadd.f32 %v2164, %v2165
      %v2167 = vsel %vm171, %v2086, 0.0
      %v2168 = vadd.f32 %v2166, %v2167
      %v2169 = vsel %vm171, %v2089, 0.0
      %v2170 = vadd.f32 %v2168, %v2169
      %v2171 = vsel %vm171, %v2092, 0.0
      %v2172 = vadd.f32 %v2170, %v2171
      %v2173 = vsel %vm171, %v2095, 0.0
      %v2174 = vadd.f32 %v2172, %v2173
      %v2175 = vsel %vm171, %v2098, 0.0
      %v2176 = vadd.f32 %v2174, %v2175
      %v2177 = vsel %vm171, %v2101, 0.0
      %v2178 = vadd.f32 %v2176, %v2177
      %v2179 = vsel %vm171, %v2104, 0.0
      %v2180 = vadd.f32 %v2178, %v2179
      %v2181 = vsel %vm171, %v2107, 0.0
      %v2182 = vadd.f32 %v2180, %v2181
      %v2183 = vsel %vm171, %v2110, 0.0
      %v2184 = vadd.f32 %v2182, %v2183
      %v2185 = vsel %vm171, %v2113, 0.0
      %v2186 = vadd.f32 %v2184, %v2185
      %v2187 = vsel %vm171, %v2116, 0.0
      %v2188 = vadd.f32 %v2186, %v2187
      %v2189 = vsel %vm171, %v2119, 0.0
      %v2190 = vadd.f32 %v2188, %v2189
      %v2191 = vsel %vm171, %v2122, 0.0
      %v2192 = vadd.f32 %v2190, %v2191
      %v2193 = vsel %vm171, %v2125, 0.0
      %v2194 = vadd.f32 %v2192, %v2193
      %v2195 = vsel %vm171, %v2128, 0.0
      %v2196 = vadd.f32 %v2194, %v2195
      %v2197 = vsel %vm171, %v2131, 0.0
      %v2198 = vadd.f32 %v2196, %v2197
      %v2199 = vsel %vm171, %v2134, 0.0
      %v2200 = vadd.f32 %v2198, %v2199
      %v2201 = vsel %vm171, %v2137, 0.0
      %v2202 = vadd.f32 %v2200, %v2201
      %v2203 = vsel %vm171, %v2140, 0.0
      %v2204 = vadd.f32 %v2202, %v2203
      %v2205 = vrot.slane %v2204, 4
      %v2206 = vadd.f32 %v2204, %v2205
      %v2207 = vrot.slane %v2206, 2
      %v2208 = vadd.f32 %v2206, %v2207
      %v2209 = vrot.slane %v2208, 1
      %v2210 = vadd.f32 %v2208, %v2209
      %v2211 = vmul.f32 %v2210, 0.00390625
      %v2212 = vmul.f32 %v2047, %v2047
      %v2213 = vmul.f32 %v2050, %v2050
      %v2214 = vmul.f32 %v2053, %v2053
      %v2215 = vmul.f32 %v2056, %v2056
      %v2216 = vmul.f32 %v2059, %v2059
      %v2217 = vmul.f32 %v2062, %v2062
      %v2218 = vmul.f32 %v2065, %v2065
      %v2219 = vmul.f32 %v2068, %v2068
      %v2220 = vmul.f32 %v2071, %v2071
      %v2221 = vmul.f32 %v2074, %v2074
      %v2222 = vmul.f32 %v2077, %v2077
      %v2223 = vmul.f32 %v2080, %v2080
      %v2224 = vmul.f32 %v2083, %v2083
      %v2225 = vmul.f32 %v2086, %v2086
      %v2226 = vmul.f32 %v2089, %v2089
      %v2227 = vmul.f32 %v2092, %v2092
      %v2228 = vmul.f32 %v2095, %v2095
      %v2229 = vmul.f32 %v2098, %v2098
      %v2230 = vmul.f32 %v2101, %v2101
      %v2231 = vmul.f32 %v2104, %v2104
      %v2232 = vmul.f32 %v2107, %v2107
      %v2233 = vmul.f32 %v2110, %v2110
      %v2234 = vmul.f32 %v2113, %v2113
      %v2235 = vmul.f32 %v2116, %v2116
      %v2236 = vmul.f32 %v2119, %v2119
      %v2237 = vmul.f32 %v2122, %v2122
      %v2238 = vmul.f32 %v2125, %v2125
      %v2239 = vmul.f32 %v2128, %v2128
      %v2240 = vmul.f32 %v2131, %v2131
      %v2241 = vmul.f32 %v2134, %v2134
      %v2242 = vmul.f32 %v2137, %v2137
      %v2243 = vmul.f32 %v2140, %v2140
      %v2244 = vsel %vm171, %v2212, 0.0
      %v2245 = vsel %vm171, %v2213, 0.0
      %v2246 = vadd.f32 %v2244, %v2245
      %v2247 = vsel %vm171, %v2214, 0.0
      %v2248 = vadd.f32 %v2246, %v2247
      %v2249 = vsel %vm171, %v2215, 0.0
      %v2250 = vadd.f32 %v2248, %v2249
      %v2251 = vsel %vm171, %v2216, 0.0
      %v2252 = vadd.f32 %v2250, %v2251
      %v2253 = vsel %vm171, %v2217, 0.0
      %v2254 = vadd.f32 %v2252, %v2253
      %v2255 = vsel %vm171, %v2218, 0.0
      %v2256 = vadd.f32 %v2254, %v2255
      %v2257 = vsel %vm171, %v2219, 0.0
      %v2258 = vadd.f32 %v2256, %v2257
      %v2259 = vsel %vm171, %v2220, 0.0
      %v2260 = vadd.f32 %v2258, %v2259
      %v2261 = vsel %vm171, %v2221, 0.0
      %v2262 = vadd.f32 %v2260, %v2261
      %v2263 = vsel %vm171, %v2222, 0.0
      %v2264 = vadd.f32 %v2262, %v2263
      %v2265 = vsel %vm171, %v2223, 0.0
      %v2266 = vadd.f32 %v2264, %v2265
      %v2267 = vsel %vm171, %v2224, 0.0
      %v2268 = vadd.f32 %v2266, %v2267
      %v2269 = vsel %vm171, %v2225, 0.0
      %v2270 = vadd.f32 %v2268, %v2269
      %v2271 = vsel %vm171, %v2226, 0.0
      %v2272 = vadd.f32 %v2270, %v2271
      %v2273 = vsel %vm171, %v2227, 0.0
      %v2274 = vadd.f32 %v2272, %v2273
      %v2275 = vsel %vm171, %v2228, 0.0
      %v2276 = vadd.f32 %v2274, %v2275
      %v2277 = vsel %vm171, %v2229, 0.0
      %v2278 = vadd.f32 %v2276, %v2277
      %v2279 = vsel %vm171, %v2230, 0.0
      %v2280 = vadd.f32 %v2278, %v2279
      %v2281 = vsel %vm171, %v2231, 0.0
      %v2282 = vadd.f32 %v2280, %v2281
      %v2283 = vsel %vm171, %v2232, 0.0
      %v2284 = vadd.f32 %v2282, %v2283
      %v2285 = vsel %vm171, %v2233, 0.0
      %v2286 = vadd.f32 %v2284, %v2285
      %v2287 = vsel %vm171, %v2234, 0.0
      %v2288 = vadd.f32 %v2286, %v2287
      %v2289 = vsel %vm171, %v2235, 0.0
      %v2290 = vadd.f32 %v2288, %v2289
      %v2291 = vsel %vm171, %v2236, 0.0
      %v2292 = vadd.f32 %v2290, %v2291
      %v2293 = vsel %vm171, %v2237, 0.0
      %v2294 = vadd.f32 %v2292, %v2293
      %v2295 = vsel %vm171, %v2238, 0.0
      %v2296 = vadd.f32 %v2294, %v2295
      %v2297 = vsel %vm171, %v2239, 0.0
      %v2298 = vadd.f32 %v2296, %v2297
      %v2299 = vsel %vm171, %v2240, 0.0
      %v2300 = vadd.f32 %v2298, %v2299
      %v2301 = vsel %vm171, %v2241, 0.0
      %v2302 = vadd.f32 %v2300, %v2301
      %v2303 = vsel %vm171, %v2242, 0.0
      %v2304 = vadd.f32 %v2302, %v2303
      %v2305 = vsel %vm171, %v2243, 0.0
      %v2306 = vadd.f32 %v2304, %v2305
      %v2307 = vrot.slane %v2306, 4
      %v2308 = vadd.f32 %v2306, %v2307
      %v2309 = vrot.slane %v2308, 2
      %v2310 = vadd.f32 %v2308, %v2309
      %v2311 = vrot.slane %v2310, 1
      %v2312 = vadd.f32 %v2310, %v2311
      %v2313 = vmul.f32 %v2312, 0.00390625
      %v2314 = vmul.f32 %v2211, %v2211
      %v2315 = vsub.f32 %v2313, %v2314
      %v2316 = vmax.f32 %v2315, 0.0
      %v2317 = vsub.f32 %v2047, %v2211
      %v2318 = vsub.f32 %v2050, %v2211
      %v2319 = vsub.f32 %v2053, %v2211
      %v2320 = vsub.f32 %v2056, %v2211
      %v2321 = vsub.f32 %v2059, %v2211
      %v2322 = vsub.f32 %v2062, %v2211
      %v2323 = vsub.f32 %v2065, %v2211
      %v2324 = vsub.f32 %v2068, %v2211
      %v2325 = vsub.f32 %v2071, %v2211
      %v2326 = vsub.f32 %v2074, %v2211
      %v2327 = vsub.f32 %v2077, %v2211
      %v2328 = vsub.f32 %v2080, %v2211
      %v2329 = vsub.f32 %v2083, %v2211
      %v2330 = vsub.f32 %v2086, %v2211
      %v2331 = vsub.f32 %v2089, %v2211
      %v2332 = vsub.f32 %v2092, %v2211
      %v2333 = vsub.f32 %v2095, %v2211
      %v2334 = vsub.f32 %v2098, %v2211
      %v2335 = vsub.f32 %v2101, %v2211
      %v2336 = vsub.f32 %v2104, %v2211
      %v2337 = vsub.f32 %v2107, %v2211
      %v2338 = vsub.f32 %v2110, %v2211
      %v2339 = vsub.f32 %v2113, %v2211
      %v2340 = vsub.f32 %v2116, %v2211
      %v2341 = vsub.f32 %v2119, %v2211
      %v2342 = vsub.f32 %v2122, %v2211
      %v2343 = vsub.f32 %v2125, %v2211
      %v2344 = vsub.f32 %v2128, %v2211
      %v2345 = vsub.f32 %v2131, %v2211
      %v2346 = vsub.f32 %v2134, %v2211
      %v2347 = vsub.f32 %v2137, %v2211
      %v2348 = vsub.f32 %v2140, %v2211
      %v2349 = vadd.f32 %v2316, 1e-05
      %v2350 = vrsqrt.pop %v2349
      %v2351 = vmul.f32 %v2350, %v2349
      %v2352 = vmul.f32 %v2351, %v2350
      %v2353 = vmul.f32 0.5, %v2352
      %v2354 = vsub.f32 1.5, %v2353
      %v2355 = vmul.f32 %v2350, %v2354
      %vm2356 = vweird.f32 %v2349
      %vm2357 = vweird.f32 %v2350
      %vm2358 = vmor %vm2356, %vm2357
      %v2359 = vsel %vm2358, %v2350, %v2355
      %v2360 = vmul.f32 %v2317, %v2359
      %v2361 = vmul.f32 %v2318, %v2359
      %v2362 = vmul.f32 %v2319, %v2359
      %v2363 = vmul.f32 %v2320, %v2359
      %v2364 = vmul.f32 %v2321, %v2359
      %v2365 = vmul.f32 %v2322, %v2359
      %v2366 = vmul.f32 %v2323, %v2359
      %v2367 = vmul.f32 %v2324, %v2359
      %v2368 = vmul.f32 %v2325, %v2359
      %v2369 = vmul.f32 %v2326, %v2359
      %v2370 = vmul.f32 %v2327, %v2359
      %v2371 = vmul.f32 %v2328, %v2359
      %v2372 = vmul.f32 %v2329, %v2359
      %v2373 = vmul.f32 %v2330, %v2359
      %v2374 = vmul.f32 %v2331, %v2359
      %v2375 = vmul.f32 %v2332, %v2359
      %v2376 = vmul.f32 %v2333, %v2359
      %v2377 = vmul.f32 %v2334, %v2359
      %v2378 = vmul.f32 %v2335, %v2359
      %v2379 = vmul.f32 %v2336, %v2359
      %v2380 = vmul.f32 %v2337, %v2359
      %v2381 = vmul.f32 %v2338, %v2359
      %v2382 = vmul.f32 %v2339, %v2359
      %v2383 = vmul.f32 %v2340, %v2359
      %v2384 = vmul.f32 %v2341, %v2359
      %v2385 = vmul.f32 %v2342, %v2359
      %v2386 = vmul.f32 %v2343, %v2359
      %v2387 = vmul.f32 %v2344, %v2359
      %v2388 = vmul.f32 %v2345, %v2359
      %v2389 = vmul.f32 %v2346, %v2359
      %v2390 = vmul.f32 %v2347, %v2359
      %v2391 = vmul.f32 %v2348, %v2359
      %v2392 = vmax.f32 %v2360, 0.0
      %v2393 = vmax.f32 %v2361, 0.0
      %v2394 = vmax.f32 %v2362, 0.0
      %v2395 = vmax.f32 %v2363, 0.0
      %v2396 = vmax.f32 %v2364, 0.0
      %v2397 = vmax.f32 %v2365, 0.0
      %v2398 = vmax.f32 %v2366, 0.0
      %v2399 = vmax.f32 %v2367, 0.0
      %v2400 = vmax.f32 %v2368, 0.0
      %v2401 = vmax.f32 %v2369, 0.0
      %v2402 = vmax.f32 %v2370, 0.0
      %v2403 = vmax.f32 %v2371, 0.0
      %v2404 = vmax.f32 %v2372, 0.0
      %v2405 = vmax.f32 %v2373, 0.0
      %v2406 = vmax.f32 %v2374, 0.0
      %v2407 = vmax.f32 %v2375, 0.0
      %v2408 = vmax.f32 %v2376, 0.0
      %v2409 = vmax.f32 %v2377, 0.0
      %v2410 = vmax.f32 %v2378, 0.0
      %v2411 = vmax.f32 %v2379, 0.0
      %v2412 = vmax.f32 %v2380, 0.0
      %v2413 = vmax.f32 %v2381, 0.0
      %v2414 = vmax.f32 %v2382, 0.0
      %v2415 = vmax.f32 %v2383, 0.0
      %v2416 = vmax.f32 %v2384, 0.0
      %v2417 = vmax.f32 %v2385, 0.0
      %v2418 = vmax.f32 %v2386, 0.0
      %v2419 = vmax.f32 %v2387, 0.0
      %v2420 = vmax.f32 %v2388, 0.0
      %v2421 = vmax.f32 %v2389, 0.0
      %v2422 = vmax.f32 %v2390, 0.0
      %v2423 = vmax.f32 %v2391, 0.0
      %2424 = vst.msk [vmem:[%s249 + $0x1] sm:$0xff] %vm171, %v2392
      %2425 = vst.msk [vmem:[%s249 + $0x9] sm:$0xff] %vm171, %v2393
      %2426 = vst.msk [vmem:[%s249 + $0x19] sm:$0xff] %vm171, %v2394
      %2427 = vst.msk [vmem:[%s249 + $0x21] sm:$0xff] %vm171, %v2395
      %2428 = vst.msk [vmem:[%s249 + $0x31] sm:$0xff] %vm171, %v2396
      %2429 = vst.msk [vmem:[%s249 + $0x39] sm:$0xff] %vm171, %v2397
      %2430 = vst.msk [vmem:[%s249 + $0x49] sm:$0xff] %vm171, %v2398
      %2431 = vst.msk [vmem:[%s249 + $0x51] sm:$0xff] %vm171, %v2399
      %2432 = vst.msk [vmem:[%s249 + $0x61] sm:$0xff] %vm171, %v2400
      %2433 = vst.msk [vmem:[%s249 + $0x69] sm:$0xff] %vm171, %v2401
      %2434 = vst.msk [vmem:[%s249 + $0x79] sm:$0xff] %vm171, %v2402
      %2435 = vst.msk [vmem:[%s249 + $0x81] sm:$0xff] %vm171, %v2403
      %2436 = vst.msk [vmem:[%s249 + $0x91] sm:$0xff] %vm171, %v2404
      %2437 = vst.msk [vmem:[%s249 + $0x99] sm:$0xff] %vm171, %v2405
      %2438 = vst.msk [vmem:[%s249 + $0xa9] sm:$0xff] %vm171, %v2406
      %2439 = vst.msk [vmem:[%s249 + $0xb1] sm:$0xff] %vm171, %v2407
      %2440 = vst.msk [vmem:[%s249 + $0xc1] sm:$0xff] %vm171, %v2408
      %2441 = vst.msk [vmem:[%s249 + $0xc9] sm:$0xff] %vm171, %v2409
      %2442 = vst.msk [vmem:[%s249 + $0xd9] sm:$0xff] %vm171, %v2410
      %2443 = vst.msk [vmem:[%s249 + $0xe1] sm:$0xff] %vm171, %v2411
      %2444 = vst.msk [vmem:[%s249 + $0xf1] sm:$0xff] %vm171, %v2412
      %2445 = vst.msk [vmem:[%s249 + $0xf9] sm:$0xff] %vm171, %v2413
      %2446 = vst.msk [vmem:[%s249 + $0x109] sm:$0xff] %vm171, %v2414
      %2447 = vst.msk [vmem:[%s249 + $0x111] sm:$0xff] %vm171, %v2415
      %2448 = vst.msk [vmem:[%s249 + $0x121] sm:$0xff] %vm171, %v2416
      %2449 = vst.msk [vmem:[%s249 + $0x129] sm:$0xff] %vm171, %v2417
      %2450 = vst.msk [vmem:[%s249 + $0x139] sm:$0xff] %vm171, %v2418
      %2451 = vst.msk [vmem:[%s249 + $0x141] sm:$0xff] %vm171, %v2419
      %2452 = vst.msk [vmem:[%s249 + $0x151] sm:$0xff] %vm171, %v2420
      %2453 = vst.msk [vmem:[%s249 + $0x159] sm:$0xff] %vm171, %v2421
      %2454 = vst.msk [vmem:[%s249 + $0x169] sm:$0xff] %vm171, %v2422
      %2455 = vst.msk [vmem:[%s249 + $0x171] sm:$0xff] %vm171, %v2423
      %v2456 = vld [vmem:[#allocation2] sm:$0xff]
      %v2457 = vld [vmem:[#allocation2 + $0x8] sm:$0xff]
      %v2458 = vld [vmem:[#allocation2 + $0x18] sm:$0xff]
      %v2459 = vld [vmem:[#allocation2 + $0x20] sm:$0xff]
      %v2460 = vld [vmem:[#allocation2 + $0x30] sm:$0xff]
      %v2461 = vld [vmem:[#allocation2 + $0x38] sm:$0xff]
      %v2462 = vld [vmem:[#allocation2 + $0x48] sm:$0xff]
      %v2463 = vld [vmem:[#allocation2 + $0x50] sm:$0xff]
      %v2464 = vld [vmem:[#allocation2 + $0x60] sm:$0xff]
      %v2465 = vld [vmem:[#allocation2 + $0x68] sm:$0xff]
      %v2466 = vld [vmem:[#allocation2 + $0x78] sm:$0xff]
      %v2467 = vld [vmem:[#allocation2 + $0x80] sm:$0xff]
      %v2468 = vld [vmem:[#allocation2 + $0x90] sm:$0xff]
      %v2469 = vld [vmem:[#allocation2 + $0x98] sm:$0xff]
      %v2470 = vld [vmem:[#allocation2 + $0xa8] sm:$0xff]
      %v2471 = vld [vmem:[#allocation2 + $0xb0] sm:$0xff]
      %v2472 = vld [vmem:[#allocation2 + $0xc0] sm:$0xff]
      %v2473 = vld [vmem:[#allocation2 + $0xc8] sm:$0xff]
      %v2474 = vld [vmem:[#allocation2 + $0xd8] sm:$0xff]
      %v2475 = vld [vmem:[#allocation2 + $0xe0] sm:$0xff]
      %v2476 = vld [vmem:[#allocation2 + $0xf0] sm:$0xff]
      %v2477 = vld [vmem:[#allocation2 + $0xf8] sm:$0xff]
      %v2478 = vld [vmem:[#allocation2 + $0x108] sm:$0xff]
      %v2479 = vld [vmem:[#allocation2 + $0x110] sm:$0xff]
      %v2480 = vld [vmem:[#allocation2 + $0x120] sm:$0xff]
      %v2481 = vld [vmem:[#allocation2 + $0x128] sm:$0xff]
      %v2482 = vld [vmem:[#allocation2 + $0x138] sm:$0xff]
      %v2483 = vld [vmem:[#allocation2 + $0x140] sm:$0xff]
      %v2484 = vld [vmem:[#allocation2 + $0x150] sm:$0xff]
      %v2485 = vld [vmem:[#allocation2 + $0x158] sm:$0xff]
      %v2486 = vld [vmem:[#allocation2 + $0x168] sm:$0xff]
      %v2487 = vld [vmem:[#allocation2 + $0x170] sm:$0xff]
      %2488 = vst.msk [vmem:[#allocation3] sm:$0xff] %vm171, %v2456
      %2489 = vst.msk [vmem:[#allocation3 + $0x8] sm:$0xff] %vm171, %v2457
      %2490 = vst.msk [vmem:[#allocation3 + $0x10] sm:$0xff] %vm171, %v2458
      %2491 = vst.msk [vmem:[#allocation3 + $0x18] sm:$0xff] %vm171, %v2459
      %2492 = vst.msk [vmem:[#allocation3 + $0x20] sm:$0xff] %vm171, %v2460
      %2493 = vst.msk [vmem:[#allocation3 + $0x28] sm:$0xff] %vm171, %v2461
      %2494 = vst.msk [vmem:[#allocation3 + $0x30] sm:$0xff] %vm171, %v2462
      %2495 = vst.msk [vmem:[#allocation3 + $0x38] sm:$0xff] %vm171, %v2463
      %2496 = vst.msk [vmem:[#allocation3 + $0x40] sm:$0xff] %vm171, %v2464
      %2497 = vst.msk [vmem:[#allocation3 + $0x48] sm:$0xff] %vm171, %v2465
      %2498 = vst.msk [vmem:[#allocation3 + $0x50] sm:$0xff] %vm171, %v2466
      %2499 = vst.msk [vmem:[#allocation3 + $0x58] sm:$0xff] %vm171, %v2467
      %2500 = vst.msk [vmem:[#allocation3 + $0x60] sm:$0xff] %vm171, %v2468
      %2501 = vst.msk [vmem:[#allocation3 + $0x68] sm:$0xff] %vm171, %v2469
      %2502 = vst.msk [vmem:[#allocation3 + $0x70] sm:$0xff] %vm171, %v2470
      %2503 = vst.msk [vmem:[#allocation3 + $0x78] sm:$0xff] %vm171, %v2471
      %2504 = vst.msk [vmem:[#allocation3 + $0x80] sm:$0xff] %vm171, %v2472
      %2505 = vst.msk [vmem:[#allocation3 + $0x88] sm:$0xff] %vm171, %v2473
      %2506 = vst.msk [vmem:[#allocation3 + $0x90] sm:$0xff] %vm171, %v2474
      %2507 = vst.msk [vmem:[#allocation3 + $0x98] sm:$0xff] %vm171, %v2475
      %2508 = vst.msk [vmem:[#allocation3 + $0xa0] sm:$0xff] %vm171, %v2476
      %2509 = vst.msk [vmem:[#allocation3 + $0xa8] sm:$0xff] %vm171, %v2477
      %2510 = vst.msk [vmem:[#allocation3 + $0xb0] sm:$0xff] %vm171, %v2478
      %2511 = vst.msk [vmem:[#allocation3 + $0xb8] sm:$0xff] %vm171, %v2479
      %2512 = vst.msk [vmem:[#allocation3 + $0xc0] sm:$0xff] %vm171, %v2480
      %2513 = vst.msk [vmem:[#allocation3 + $0xc8] sm:$0xff] %vm171, %v2481
      %2514 = vst.msk [vmem:[#allocation3 + $0xd0] sm:$0xff] %vm171, %v2482
      %2515 = vst.msk [vmem:[#allocation3 + $0xd8] sm:$0xff] %vm171, %v2483
      %2516 = vst.msk [vmem:[#allocation3 + $0xe0] sm:$0xff] %vm171, %v2484
      %2517 = vst.msk [vmem:[#allocation3 + $0xe8] sm:$0xff] %vm171, %v2485
      %2518 = vst.msk [vmem:[#allocation3 + $0xf0] sm:$0xff] %vm171, %v2486
      %2519 = vst.msk [vmem:[#allocation3 + $0xf8] sm:$0xff] %vm171, %v2487
      %v2520 = vld [vmem:[#allocation2 + $0x1] sm:$0xff]
      %v2521 = vld [vmem:[#allocation2 + $0x9] sm:$0xff]
      %v2522 = vld [vmem:[#allocation2 + $0x19] sm:$0xff]
      %v2523 = vld [vmem:[#allocation2 + $0x21] sm:$0xff]
      %v2524 = vld [vmem:[#allocation2 + $0x31] sm:$0xff]
      %v2525 = vld [vmem:[#allocation2 + $0x39] sm:$0xff]
      %v2526 = vld [vmem:[#allocation2 + $0x49] sm:$0xff]
      %v2527 = vld [vmem:[#allocation2 + $0x51] sm:$0xff]
      %v2528 = vld [vmem:[#allocation2 + $0x61] sm:$0xff]
      %v2529 = vld [vmem:[#allocation2 + $0x69] sm:$0xff]
      %v2530 = vld [vmem:[#allocation2 + $0x79] sm:$0xff]
      %v2531 = vld [vmem:[#allocation2 + $0x81] sm:$0xff]
      %v2532 = vld [vmem:[#allocation2 + $0x91] sm:$0xff]
      %v2533 = vld [vmem:[#allocation2 + $0x99] sm:$0xff]
      %v2534 = vld [vmem:[#allocation2 + $0xa9] sm:$0xff]
      %v2535 = vld [vmem:[#allocation2 + $0xb1] sm:$0xff]
      %v2536 = vld [vmem:[#allocation2 + $0xc1] sm:$0xff]
      %v2537 = vld [vmem:[#allocation2 + $0xc9] sm:$0xff]
      %v2538 = vld [vmem:[#allocation2 + $0xd9] sm:$0xff]
      %v2539 = vld [vmem:[#allocation2 + $0xe1] sm:$0xff]
      %v2540 = vld [vmem:[#allocation2 + $0xf1] sm:$0xff]
      %v2541 = vld [vmem:[#allocation2 + $0xf9] sm:$0xff]
      %v2542 = vld [vmem:[#allocation2 + $0x109] sm:$0xff]
      %v2543 = vld [vmem:[#allocation2 + $0x111] sm:$0xff]
      %v2544 = vld [vmem:[#allocation2 + $0x121] sm:$0xff]
      %v2545 = vld [vmem:[#allocation2 + $0x129] sm:$0xff]
      %v2546 = vld [vmem:[#allocation2 + $0x139] sm:$0xff]
      %v2547 = vld [vmem:[#allocation2 + $0x141] sm:$0xff]
      %v2548 = vld [vmem:[#allocation2 + $0x151] sm:$0xff]
      %v2549 = vld [vmem:[#allocation2 + $0x159] sm:$0xff]
      %v2550 = vld [vmem:[#allocation2 + $0x169] sm:$0xff]
      %v2551 = vld [vmem:[#allocation2 + $0x171] sm:$0xff]
      %2584 = vrot.lane.b32.xlu0 %v2520, 4
      %v2585 = vpop.permute.xlu0 %2584
      %2586 = vrot.lane.b32.xlu0 %v2521, 4
      %v2587 = vpop.permute.xlu0 %2586
      %2588 = vrot.lane.b32.xlu0 %v2522, 4
      %v2589 = vpop.permute.xlu0 %2588
      %2590 = vrot.lane.b32.xlu0 %v2523, 4
      %v2591 = vpop.permute.xlu0 %2590
      %2592 = vrot.lane.b32.xlu0 %v2524, 4
      %v2593 = vpop.permute.xlu0 %2592
      %2594 = vrot.lane.b32.xlu0 %v2525, 4
      %v2595 = vpop.permute.xlu0 %2594
      %2596 = vrot.lane.b32.xlu0 %v2526, 4
      %v2597 = vpop.permute.xlu0 %2596
      %2598 = vrot.lane.b32.xlu0 %v2527, 4
      %v2599 = vpop.permute.xlu0 %2598
      %2600 = vrot.lane.b32.xlu0 %v2528, 4
      %v2601 = vpop.permute.xlu0 %2600
      %2602 = vrot.lane.b32.xlu0 %v2529, 4
      %v2603 = vpop.permute.xlu0 %2602
      %2604 = vrot.lane.b32.xlu0 %v2530, 4
      %v2605 = vpop.permute.xlu0 %2604
      %2606 = vrot.lane.b32.xlu0 %v2531, 4
      %v2607 = vpop.permute.xlu0 %2606
      %2608 = vrot.lane.b32.xlu0 %v2532, 4
      %v2609 = vpop.permute.xlu0 %2608
      %2610 = vrot.lane.b32.xlu0 %v2533, 4
      %v2611 = vpop.permute.xlu0 %2610
      %2612 = vrot.lane.b32.xlu0 %v2534, 4
      %v2613 = vpop.permute.xlu0 %2612
      %2614 = vrot.lane.b32.xlu0 %v2535, 4
      %v2615 = vpop.permute.xlu0 %2614
      %2616 = vrot.lane.b32.xlu0 %v2536, 4
      %v2617 = vpop.permute.xlu0 %2616
      %2618 = vrot.lane.b32.xlu0 %v2537, 4
      %v2619 = vpop.permute.xlu0 %2618
      %2620 = vrot.lane.b32.xlu0 %v2538, 4
      %v2621 = vpop.permute.xlu0 %2620
      %2622 = vrot.lane.b32.xlu0 %v2539, 4
      %v2623 = vpop.permute.xlu0 %2622
      %2624 = vrot.lane.b32.xlu0 %v2540, 4
      %v2625 = vpop.permute.xlu0 %2624
      %2626 = vrot.lane.b32.xlu0 %v2541, 4
      %v2627 = vpop.permute.xlu0 %2626
      %2628 = vrot.lane.b32.xlu0 %v2542, 4
      %v2629 = vpop.permute.xlu0 %2628
      %2630 = vrot.lane.b32.xlu0 %v2543, 4
      %v2631 = vpop.permute.xlu0 %2630
      %2632 = vrot.lane.b32.xlu0 %v2544, 4
      %v2633 = vpop.permute.xlu0 %2632
      %2634 = vrot.lane.b32.xlu0 %v2545, 4
      %v2635 = vpop.permute.xlu0 %2634
      %2636 = vrot.lane.b32.xlu0 %v2546, 4
      %v2637 = vpop.permute.xlu0 %2636
      %2638 = vrot.lane.b32.xlu0 %v2547, 4
      %v2639 = vpop.permute.xlu0 %2638
      %2640 = vrot.lane.b32.xlu0 %v2548, 4
      %v2641 = vpop.permute.xlu0 %2640
      %2642 = vrot.lane.b32.xlu0 %v2549, 4
      %v2643 = vpop.permute.xlu0 %2642
      %2644 = vrot.lane.b32.xlu0 %v2550, 4
      %v2645 = vpop.permute.xlu0 %2644
      %2646 = vrot.lane.b32.xlu0 %v2551, 4
      %v2647 = vpop.permute.xlu0 %2646
      %2680 = vst.msk [vmem:[#allocation3] sm:$0xff] %vm506, %v2585
      %2681 = vst.msk [vmem:[#allocation3 + $0x8] sm:$0xff] %vm506, %v2587
      %2682 = vst.msk [vmem:[#allocation3 + $0x10] sm:$0xff] %vm506, %v2589
      %2683 = vst.msk [vmem:[#allocation3 + $0x18] sm:$0xff] %vm506, %v2591
      %2684 = vst.msk [vmem:[#allocation3 + $0x20] sm:$0xff] %vm506, %v2593
      %2685 = vst.msk [vmem:[#allocation3 + $0x28] sm:$0xff] %vm506, %v2595
      %2686 = vst.msk [vmem:[#allocation3 + $0x30] sm:$0xff] %vm506, %v2597
      %2687 = vst.msk [vmem:[#allocation3 + $0x38] sm:$0xff] %vm506, %v2599
      %2688 = vst.msk [vmem:[#allocation3 + $0x40] sm:$0xff] %vm506, %v2601
      %2689 = vst.msk [vmem:[#allocation3 + $0x48] sm:$0xff] %vm506, %v2603
      %2690 = vst.msk [vmem:[#allocation3 + $0x50] sm:$0xff] %vm506, %v2605
      %2691 = vst.msk [vmem:[#allocation3 + $0x58] sm:$0xff] %vm506, %v2607
      %2692 = vst.msk [vmem:[#allocation3 + $0x60] sm:$0xff] %vm506, %v2609
      %2693 = vst.msk [vmem:[#allocation3 + $0x68] sm:$0xff] %vm506, %v2611
      %2694 = vst.msk [vmem:[#allocation3 + $0x70] sm:$0xff] %vm506, %v2613
      %2695 = vst.msk [vmem:[#allocation3 + $0x78] sm:$0xff] %vm506, %v2615
      %2696 = vst.msk [vmem:[#allocation3 + $0x80] sm:$0xff] %vm506, %v2617
      %2697 = vst.msk [vmem:[#allocation3 + $0x88] sm:$0xff] %vm506, %v2619
      %2698 = vst.msk [vmem:[#allocation3 + $0x90] sm:$0xff] %vm506, %v2621
      %2699 = vst.msk [vmem:[#allocation3 + $0x98] sm:$0xff] %vm506, %v2623
      %2700 = vst.msk [vmem:[#allocation3 + $0xa0] sm:$0xff] %vm506, %v2625
      %2701 = vst.msk [vmem:[#allocation3 + $0xa8] sm:$0xff] %vm506, %v2627
      %2702 = vst.msk [vmem:[#allocation3 + $0xb0] sm:$0xff] %vm506, %v2629
      %2703 = vst.msk [vmem:[#allocation3 + $0xb8] sm:$0xff] %vm506, %v2631
      %2704 = vst.msk [vmem:[#allocation3 + $0xc0] sm:$0xff] %vm506, %v2633
      %2705 = vst.msk [vmem:[#allocation3 + $0xc8] sm:$0xff] %vm506, %v2635
      %2706 = vst.msk [vmem:[#allocation3 + $0xd0] sm:$0xff] %vm506, %v2637
      %2707 = vst.msk [vmem:[#allocation3 + $0xd8] sm:$0xff] %vm506, %v2639
      %2708 = vst.msk [vmem:[#allocation3 + $0xe0] sm:$0xff] %vm506, %v2641
      %2709 = vst.msk [vmem:[#allocation3 + $0xe8] sm:$0xff] %vm506, %v2643
      %2710 = vst.msk [vmem:[#allocation3 + $0xf0] sm:$0xff] %vm506, %v2645
      %2711 = vst.msk [vmem:[#allocation3 + $0xf8] sm:$0xff] %vm506, %v2647
      %v2712 = vld [vmem:[#allocation2 + $0x2] sm:$0xff]
      %v2713 = vld [vmem:[#allocation2 + $0xa] sm:$0xff]
      %v2714 = vld [vmem:[#allocation2 + $0x1a] sm:$0xff]
      %v2715 = vld [vmem:[#allocation2 + $0x22] sm:$0xff]
      %v2716 = vld [vmem:[#allocation2 + $0x32] sm:$0xff]
      %v2717 = vld [vmem:[#allocation2 + $0x3a] sm:$0xff]
      %v2718 = vld [vmem:[#allocation2 + $0x4a] sm:$0xff]
      %v2719 = vld [vmem:[#allocation2 + $0x52] sm:$0xff]
      %v2720 = vld [vmem:[#allocation2 + $0x62] sm:$0xff]
      %v2721 = vld [vmem:[#allocation2 + $0x6a] sm:$0xff]
      %v2722 = vld [vmem:[#allocation2 + $0x7a] sm:$0xff]
      %v2723 = vld [vmem:[#allocation2 + $0x82] sm:$0xff]
      %v2724 = vld [vmem:[#allocation2 + $0x92] sm:$0xff]
      %v2725 = vld [vmem:[#allocation2 + $0x9a] sm:$0xff]
      %v2726 = vld [vmem:[#allocation2 + $0xaa] sm:$0xff]
      %v2727 = vld [vmem:[#allocation2 + $0xb2] sm:$0xff]
      %v2728 = vld [vmem:[#allocation2 + $0xc2] sm:$0xff]
      %v2729 = vld [vmem:[#allocation2 + $0xca] sm:$0xff]
      %v2730 = vld [vmem:[#allocation2 + $0xda] sm:$0xff]
      %v2731 = vld [vmem:[#allocation2 + $0xe2] sm:$0xff]
      %v2732 = vld [vmem:[#allocation2 + $0xf2] sm:$0xff]
      %v2733 = vld [vmem:[#allocation2 + $0xfa] sm:$0xff]
      %v2734 = vld [vmem:[#allocation2 + $0x10a] sm:$0xff]
      %v2735 = vld [vmem:[#allocation2 + $0x112] sm:$0xff]
      %v2736 = vld [vmem:[#allocation2 + $0x122] sm:$0xff]
      %v2737 = vld [vmem:[#allocation2 + $0x12a] sm:$0xff]
      %v2738 = vld [vmem:[#allocation2 + $0x13a] sm:$0xff]
      %v2739 = vld [vmem:[#allocation2 + $0x142] sm:$0xff]
      %v2740 = vld [vmem:[#allocation2 + $0x152] sm:$0xff]
      %v2741 = vld [vmem:[#allocation2 + $0x15a] sm:$0xff]
      %v2742 = vld [vmem:[#allocation2 + $0x16a] sm:$0xff]
      %v2743 = vld [vmem:[#allocation2 + $0x172] sm:$0xff]
      %2776 = vrot.lane.b32.xlu0 %v2712, 8
      %v2777 = vpop.permute.xlu0 %2776
      %2778 = vrot.lane.b32.xlu0 %v2713, 8
      %v2779 = vpop.permute.xlu0 %2778
      %2780 = vrot.lane.b32.xlu0 %v2714, 8
      %v2781 = vpop.permute.xlu0 %2780
      %2782 = vrot.lane.b32.xlu0 %v2715, 8
      %v2783 = vpop.permute.xlu0 %2782
      %2784 = vrot.lane.b32.xlu0 %v2716, 8
      %v2785 = vpop.permute.xlu0 %2784
      %2786 = vrot.lane.b32.xlu0 %v2717, 8
      %v2787 = vpop.permute.xlu0 %2786
      %2788 = vrot.lane.b32.xlu0 %v2718, 8
      %v2789 = vpop.permute.xlu0 %2788
      %2790 = vrot.lane.b32.xlu0 %v2719, 8
      %v2791 = vpop.permute.xlu0 %2790
      %2792 = vrot.lane.b32.xlu0 %v2720, 8
      %v2793 = vpop.permute.xlu0 %2792
      %2794 = vrot.lane.b32.xlu0 %v2721, 8
      %v2795 = vpop.permute.xlu0 %2794
      %2796 = vrot.lane.b32.xlu0 %v2722, 8
      %v2797 = vpop.permute.xlu0 %2796
      %2798 = vrot.lane.b32.xlu0 %v2723, 8
      %v2799 = vpop.permute.xlu0 %2798
      %2800 = vrot.lane.b32.xlu0 %v2724, 8
      %v2801 = vpop.permute.xlu0 %2800
      %2802 = vrot.lane.b32.xlu0 %v2725, 8
      %v2803 = vpop.permute.xlu0 %2802
      %2804 = vrot.lane.b32.xlu0 %v2726, 8
      %v2805 = vpop.permute.xlu0 %2804
      %2806 = vrot.lane.b32.xlu0 %v2727, 8
      %v2807 = vpop.permute.xlu0 %2806
      %2808 = vrot.lane.b32.xlu0 %v2728, 8
      %v2809 = vpop.permute.xlu0 %2808
      %2810 = vrot.lane.b32.xlu0 %v2729, 8
      %v2811 = vpop.permute.xlu0 %2810
      %2812 = vrot.lane.b32.xlu0 %v2730, 8
      %v2813 = vpop.permute.xlu0 %2812
      %2814 = vrot.lane.b32.xlu0 %v2731, 8
      %v2815 = vpop.permute.xlu0 %2814
      %2816 = vrot.lane.b32.xlu0 %v2732, 8
      %v2817 = vpop.permute.xlu0 %2816
      %2818 = vrot.lane.b32.xlu0 %v2733, 8
      %v2819 = vpop.permute.xlu0 %2818
      %2820 = vrot.lane.b32.xlu0 %v2734, 8
      %v2821 = vpop.permute.xlu0 %2820
      %2822 = vrot.lane.b32.xlu0 %v2735, 8
      %v2823 = vpop.permute.xlu0 %2822
      %2824 = vrot.lane.b32.xlu0 %v2736, 8
      %v2825 = vpop.permute.xlu0 %2824
      %2826 = vrot.lane.b32.xlu0 %v2737, 8
      %v2827 = vpop.permute.xlu0 %2826
      %2828 = vrot.lane.b32.xlu0 %v2738, 8
      %v2829 = vpop.permute.xlu0 %2828
      %2830 = vrot.lane.b32.xlu0 %v2739, 8
      %v2831 = vpop.permute.xlu0 %2830
      %2832 = vrot.lane.b32.xlu0 %v2740, 8
      %v2833 = vpop.permute.xlu0 %2832
      %2834 = vrot.lane.b32.xlu0 %v2741, 8
      %v2835 = vpop.permute.xlu0 %2834
      %2836 = vrot.lane.b32.xlu0 %v2742, 8
      %v2837 = vpop.permute.xlu0 %2836
      %2838 = vrot.lane.b32.xlu0 %v2743, 8
      %v2839 = vpop.permute.xlu0 %2838
      %2872 = vst.msk [vmem:[#allocation3] sm:$0xff] %vm699, %v2777
      %2873 = vst.msk [vmem:[#allocation3 + $0x8] sm:$0xff] %vm699, %v2779
      %2874 = vst.msk [vmem:[#allocation3 + $0x10] sm:$0xff] %vm699, %v2781
      %2875 = vst.msk [vmem:[#allocation3 + $0x18] sm:$0xff] %vm699, %v2783
      %2876 = vst.msk [vmem:[#allocation3 + $0x20] sm:$0xff] %vm699, %v2785
      %2877 = vst.msk [vmem:[#allocation3 + $0x28] sm:$0xff] %vm699, %v2787
      %2878 = vst.msk [vmem:[#allocation3 + $0x30] sm:$0xff] %vm699, %v2789
      %2879 = vst.msk [vmem:[#allocation3 + $0x38] sm:$0xff] %vm699, %v2791
      %2880 = vst.msk [vmem:[#allocation3 + $0x40] sm:$0xff] %vm699, %v2793
      %2881 = vst.msk [vmem:[#allocation3 + $0x48] sm:$0xff] %vm699, %v2795
      %2882 = vst.msk [vmem:[#allocation3 + $0x50] sm:$0xff] %vm699, %v2797
      %2883 = vst.msk [vmem:[#allocation3 + $0x58] sm:$0xff] %vm699, %v2799
      %2884 = vst.msk [vmem:[#allocation3 + $0x60] sm:$0xff] %vm699, %v2801
      %2885 = vst.msk [vmem:[#allocation3 + $0x68] sm:$0xff] %vm699, %v2803
      %2886 = vst.msk [vmem:[#allocation3 + $0x70] sm:$0xff] %vm699, %v2805
      %2887 = vst.msk [vmem:[#allocation3 + $0x78] sm:$0xff] %vm699, %v2807
      %2888 = vst.msk [vmem:[#allocation3 + $0x80] sm:$0xff] %vm699, %v2809
      %2889 = vst.msk [vmem:[#allocation3 + $0x88] sm:$0xff] %vm699, %v2811
      %2890 = vst.msk [vmem:[#allocation3 + $0x90] sm:$0xff] %vm699, %v2813
      %2891 = vst.msk [vmem:[#allocation3 + $0x98] sm:$0xff] %vm699, %v2815
      %2892 = vst.msk [vmem:[#allocation3 + $0xa0] sm:$0xff] %vm699, %v2817
      %2893 = vst.msk [vmem:[#allocation3 + $0xa8] sm:$0xff] %vm699, %v2819
      %2894 = vst.msk [vmem:[#allocation3 + $0xb0] sm:$0xff] %vm699, %v2821
      %2895 = vst.msk [vmem:[#allocation3 + $0xb8] sm:$0xff] %vm699, %v2823
      %2896 = vst.msk [vmem:[#allocation3 + $0xc0] sm:$0xff] %vm699, %v2825
      %2897 = vst.msk [vmem:[#allocation3 + $0xc8] sm:$0xff] %vm699, %v2827
      %2898 = vst.msk [vmem:[#allocation3 + $0xd0] sm:$0xff] %vm699, %v2829
      %2899 = vst.msk [vmem:[#allocation3 + $0xd8] sm:$0xff] %vm699, %v2831
      %2900 = vst.msk [vmem:[#allocation3 + $0xe0] sm:$0xff] %vm699, %v2833
      %2901 = vst.msk [vmem:[#allocation3 + $0xe8] sm:$0xff] %vm699, %v2835
      %2902 = vst.msk [vmem:[#allocation3 + $0xf0] sm:$0xff] %vm699, %v2837
      %2903 = vst.msk [vmem:[#allocation3 + $0xf8] sm:$0xff] %vm699, %v2839
      %v2904 = vld [vmem:[%s249] sm:$0xff]
      %v2905 = vld [vmem:[%s249 + $0x8] sm:$0xff]
      %v2906 = vld [vmem:[%s249 + $0x18] sm:$0xff]
      %v2907 = vld [vmem:[%s249 + $0x20] sm:$0xff]
      %v2908 = vld [vmem:[%s249 + $0x30] sm:$0xff]
      %v2909 = vld [vmem:[%s249 + $0x38] sm:$0xff]
      %v2910 = vld [vmem:[%s249 + $0x48] sm:$0xff]
      %v2911 = vld [vmem:[%s249 + $0x50] sm:$0xff]
      %v2912 = vld [vmem:[%s249 + $0x60] sm:$0xff]
      %v2913 = vld [vmem:[%s249 + $0x68] sm:$0xff]
      %v2914 = vld [vmem:[%s249 + $0x78] sm:$0xff]
      %v2915 = vld [vmem:[%s249 + $0x80] sm:$0xff]
      %v2916 = vld [vmem:[%s249 + $0x90] sm:$0xff]
      %v2917 = vld [vmem:[%s249 + $0x98] sm:$0xff]
      %v2918 = vld [vmem:[%s249 + $0xa8] sm:$0xff]
      %v2919 = vld [vmem:[%s249 + $0xb0] sm:$0xff]
      %v2920 = vld [vmem:[%s249 + $0xc0] sm:$0xff]
      %v2921 = vld [vmem:[%s249 + $0xc8] sm:$0xff]
      %v2922 = vld [vmem:[%s249 + $0xd8] sm:$0xff]
      %v2923 = vld [vmem:[%s249 + $0xe0] sm:$0xff]
      %v2924 = vld [vmem:[%s249 + $0xf0] sm:$0xff]
      %v2925 = vld [vmem:[%s249 + $0xf8] sm:$0xff]
      %v2926 = vld [vmem:[%s249 + $0x108] sm:$0xff]
      %v2927 = vld [vmem:[%s249 + $0x110] sm:$0xff]
      %v2928 = vld [vmem:[%s249 + $0x120] sm:$0xff]
      %v2929 = vld [vmem:[%s249 + $0x128] sm:$0xff]
      %v2930 = vld [vmem:[%s249 + $0x138] sm:$0xff]
      %v2931 = vld [vmem:[%s249 + $0x140] sm:$0xff]
      %v2932 = vld [vmem:[%s249 + $0x150] sm:$0xff]
      %v2933 = vld [vmem:[%s249 + $0x158] sm:$0xff]
      %v2934 = vld [vmem:[%s249 + $0x168] sm:$0xff]
      %v2935 = vld [vmem:[%s249 + $0x170] sm:$0xff]
      %2968 = vrot.lane.b32.xlu0 %v2904, 12
      %v2969 = vpop.permute.xlu0 %2968
      %2970 = vrot.lane.b32.xlu0 %v2905, 12
      %v2971 = vpop.permute.xlu0 %2970
      %2972 = vrot.lane.b32.xlu0 %v2906, 12
      %v2973 = vpop.permute.xlu0 %2972
      %2974 = vrot.lane.b32.xlu0 %v2907, 12
      %v2975 = vpop.permute.xlu0 %2974
      %2976 = vrot.lane.b32.xlu0 %v2908, 12
      %v2977 = vpop.permute.xlu0 %2976
      %2978 = vrot.lane.b32.xlu0 %v2909, 12
      %v2979 = vpop.permute.xlu0 %2978
      %2980 = vrot.lane.b32.xlu0 %v2910, 12
      %v2981 = vpop.permute.xlu0 %2980
      %2982 = vrot.lane.b32.xlu0 %v2911, 12
      %v2983 = vpop.permute.xlu0 %2982
      %2984 = vrot.lane.b32.xlu0 %v2912, 12
      %v2985 = vpop.permute.xlu0 %2984
      %2986 = vrot.lane.b32.xlu0 %v2913, 12
      %v2987 = vpop.permute.xlu0 %2986
      %2988 = vrot.lane.b32.xlu0 %v2914, 12
      %v2989 = vpop.permute.xlu0 %2988
      %2990 = vrot.lane.b32.xlu0 %v2915, 12
      %v2991 = vpop.permute.xlu0 %2990
      %2992 = vrot.lane.b32.xlu0 %v2916, 12
      %v2993 = vpop.permute.xlu0 %2992
      %2994 = vrot.lane.b32.xlu0 %v2917, 12
      %v2995 = vpop.permute.xlu0 %2994
      %2996 = vrot.lane.b32.xlu0 %v2918, 12
      %v2997 = vpop.permute.xlu0 %2996
      %2998 = vrot.lane.b32.xlu0 %v2919, 12
      %v2999 = vpop.permute.xlu0 %2998
      %3000 = vrot.lane.b32.xlu0 %v2920, 12
      %v3001 = vpop.permute.xlu0 %3000
      %3002 = vrot.lane.b32.xlu0 %v2921, 12
      %v3003 = vpop.permute.xlu0 %3002
      %3004 = vrot.lane.b32.xlu0 %v2922, 12
      %v3005 = vpop.permute.xlu0 %3004
      %3006 = vrot.lane.b32.xlu0 %v2923, 12
      %v3007 = vpop.permute.xlu0 %3006
      %3008 = vrot.lane.b32.xlu0 %v2924, 12
      %v3009 = vpop.permute.xlu0 %3008
      %3010 = vrot.lane.b32.xlu0 %v2925, 12
      %v3011 = vpop.permute.xlu0 %3010
      %3012 = vrot.lane.b32.xlu0 %v2926, 12
      %v3013 = vpop.permute.xlu0 %3012
      %3014 = vrot.lane.b32.xlu0 %v2927, 12
      %v3015 = vpop.permute.xlu0 %3014
      %3016 = vrot.lane.b32.xlu0 %v2928, 12
      %v3017 = vpop.permute.xlu0 %3016
      %3018 = vrot.lane.b32.xlu0 %v2929, 12
      %v3019 = vpop.permute.xlu0 %3018
      %3020 = vrot.lane.b32.xlu0 %v2930, 12
      %v3021 = vpop.permute.xlu0 %3020
      %3022 = vrot.lane.b32.xlu0 %v2931, 12
      %v3023 = vpop.permute.xlu0 %3022
      %3024 = vrot.lane.b32.xlu0 %v2932, 12
      %v3025 = vpop.permute.xlu0 %3024
      %3026 = vrot.lane.b32.xlu0 %v2933, 12
      %v3027 = vpop.permute.xlu0 %3026
      %3028 = vrot.lane.b32.xlu0 %v2934, 12
      %v3029 = vpop.permute.xlu0 %3028
      %3030 = vrot.lane.b32.xlu0 %v2935, 12
      %v3031 = vpop.permute.xlu0 %3030
      %3064 = vst.msk [vmem:[#allocation3] sm:$0xff] %vm892, %v2969
      %3065 = vst.msk [vmem:[#allocation3 + $0x8] sm:$0xff] %vm892, %v2971
      %3066 = vst.msk [vmem:[#allocation3 + $0x10] sm:$0xff] %vm892, %v2973
      %3067 = vst.msk [vmem:[#allocation3 + $0x18] sm:$0xff] %vm892, %v2975
      %3068 = vst.msk [vmem:[#allocation3 + $0x20] sm:$0xff] %vm892, %v2977
      %3069 = vst.msk [vmem:[#allocation3 + $0x28] sm:$0xff] %vm892, %v2979
      %3070 = vst.msk [vmem:[#allocation3 + $0x30] sm:$0xff] %vm892, %v2981
      %3071 = vst.msk [vmem:[#allocation3 + $0x38] sm:$0xff] %vm892, %v2983
      %3072 = vst.msk [vmem:[#allocation3 + $0x40] sm:$0xff] %vm892, %v2985
      %3073 = vst.msk [vmem:[#allocation3 + $0x48] sm:$0xff] %vm892, %v2987
      %3074 = vst.msk [vmem:[#allocation3 + $0x50] sm:$0xff] %vm892, %v2989
      %3075 = vst.msk [vmem:[#allocation3 + $0x58] sm:$0xff] %vm892, %v2991
      %3076 = vst.msk [vmem:[#allocation3 + $0x60] sm:$0xff] %vm892, %v2993
      %3077 = vst.msk [vmem:[#allocation3 + $0x68] sm:$0xff] %vm892, %v2995
      %3078 = vst.msk [vmem:[#allocation3 + $0x70] sm:$0xff] %vm892, %v2997
      %3079 = vst.msk [vmem:[#allocation3 + $0x78] sm:$0xff] %vm892, %v2999
      %3080 = vst.msk [vmem:[#allocation3 + $0x80] sm:$0xff] %vm892, %v3001
      %3081 = vst.msk [vmem:[#allocation3 + $0x88] sm:$0xff] %vm892, %v3003
      %3082 = vst.msk [vmem:[#allocation3 + $0x90] sm:$0xff] %vm892, %v3005
      %3083 = vst.msk [vmem:[#allocation3 + $0x98] sm:$0xff] %vm892, %v3007
      %3084 = vst.msk [vmem:[#allocation3 + $0xa0] sm:$0xff] %vm892, %v3009
      %3085 = vst.msk [vmem:[#allocation3 + $0xa8] sm:$0xff] %vm892, %v3011
      %3086 = vst.msk [vmem:[#allocation3 + $0xb0] sm:$0xff] %vm892, %v3013
      %3087 = vst.msk [vmem:[#allocation3 + $0xb8] sm:$0xff] %vm892, %v3015
      %3088 = vst.msk [vmem:[#allocation3 + $0xc0] sm:$0xff] %vm892, %v3017
      %3089 = vst.msk [vmem:[#allocation3 + $0xc8] sm:$0xff] %vm892, %v3019
      %3090 = vst.msk [vmem:[#allocation3 + $0xd0] sm:$0xff] %vm892, %v3021
      %3091 = vst.msk [vmem:[#allocation3 + $0xd8] sm:$0xff] %vm892, %v3023
      %3092 = vst.msk [vmem:[#allocation3 + $0xe0] sm:$0xff] %vm892, %v3025
      %3093 = vst.msk [vmem:[#allocation3 + $0xe8] sm:$0xff] %vm892, %v3027
      %3094 = vst.msk [vmem:[#allocation3 + $0xf0] sm:$0xff] %vm892, %v3029
      %3095 = vst.msk [vmem:[#allocation3 + $0xf8] sm:$0xff] %vm892, %v3031
      %v3096 = vld [vmem:[%s249 + $0x1] sm:$0xff]
      %v3097 = vld [vmem:[%s249 + $0x9] sm:$0xff]
      %v3098 = vld [vmem:[%s249 + $0x19] sm:$0xff]
      %v3099 = vld [vmem:[%s249 + $0x21] sm:$0xff]
      %v3100 = vld [vmem:[%s249 + $0x31] sm:$0xff]
      %v3101 = vld [vmem:[%s249 + $0x39] sm:$0xff]
      %v3102 = vld [vmem:[%s249 + $0x49] sm:$0xff]
      %v3103 = vld [vmem:[%s249 + $0x51] sm:$0xff]
      %v3104 = vld [vmem:[%s249 + $0x61] sm:$0xff]
      %v3105 = vld [vmem:[%s249 + $0x69] sm:$0xff]
      %v3106 = vld [vmem:[%s249 + $0x79] sm:$0xff]
      %v3107 = vld [vmem:[%s249 + $0x81] sm:$0xff]
      %v3108 = vld [vmem:[%s249 + $0x91] sm:$0xff]
      %v3109 = vld [vmem:[%s249 + $0x99] sm:$0xff]
      %v3110 = vld [vmem:[%s249 + $0xa9] sm:$0xff]
      %v3111 = vld [vmem:[%s249 + $0xb1] sm:$0xff]
      %v3112 = vld [vmem:[%s249 + $0xc1] sm:$0xff]
      %v3113 = vld [vmem:[%s249 + $0xc9] sm:$0xff]
      %v3114 = vld [vmem:[%s249 + $0xd9] sm:$0xff]
      %v3115 = vld [vmem:[%s249 + $0xe1] sm:$0xff]
      %v3116 = vld [vmem:[%s249 + $0xf1] sm:$0xff]
      %v3117 = vld [vmem:[%s249 + $0xf9] sm:$0xff]
      %v3118 = vld [vmem:[%s249 + $0x109] sm:$0xff]
      %v3119 = vld [vmem:[%s249 + $0x111] sm:$0xff]
      %v3120 = vld [vmem:[%s249 + $0x121] sm:$0xff]
      %v3121 = vld [vmem:[%s249 + $0x129] sm:$0xff]
      %v3122 = vld [vmem:[%s249 + $0x139] sm:$0xff]
      %v3123 = vld [vmem:[%s249 + $0x141] sm:$0xff]
      %v3124 = vld [vmem:[%s249 + $0x151] sm:$0xff]
      %v3125 = vld [vmem:[%s249 + $0x159] sm:$0xff]
      %v3126 = vld [vmem:[%s249 + $0x169] sm:$0xff]
      %v3127 = vld [vmem:[%s249 + $0x171] sm:$0xff]
      %3160 = vrot.lane.b32.xlu0 %v3096, 16
      %v3161 = vpop.permute.xlu0 %3160
      %3162 = vrot.lane.b32.xlu0 %v3097, 16
      %v3163 = vpop.permute.xlu0 %3162
      %3164 = vrot.lane.b32.xlu0 %v3098, 16
      %v3165 = vpop.permute.xlu0 %3164
      %3166 = vrot.lane.b32.xlu0 %v3099, 16
      %v3167 = vpop.permute.xlu0 %3166
      %3168 = vrot.lane.b32.xlu0 %v3100, 16
      %v3169 = vpop.permute.xlu0 %3168
      %3170 = vrot.lane.b32.xlu0 %v3101, 16
      %v3171 = vpop.permute.xlu0 %3170
      %3172 = vrot.lane.b32.xlu0 %v3102, 16
      %v3173 = vpop.permute.xlu0 %3172
      %3174 = vrot.lane.b32.xlu0 %v3103, 16
      %v3175 = vpop.permute.xlu0 %3174
      %3176 = vrot.lane.b32.xlu0 %v3104, 16
      %v3177 = vpop.permute.xlu0 %3176
      %3178 = vrot.lane.b32.xlu0 %v3105, 16
      %v3179 = vpop.permute.xlu0 %3178
      %3180 = vrot.lane.b32.xlu0 %v3106, 16
      %v3181 = vpop.permute.xlu0 %3180
      %3182 = vrot.lane.b32.xlu0 %v3107, 16
      %v3183 = vpop.permute.xlu0 %3182
      %3184 = vrot.lane.b32.xlu0 %v3108, 16
      %v3185 = vpop.permute.xlu0 %3184
      %3186 = vrot.lane.b32.xlu0 %v3109, 16
      %v3187 = vpop.permute.xlu0 %3186
      %3188 = vrot.lane.b32.xlu0 %v3110, 16
      %v3189 = vpop.permute.xlu0 %3188
      %3190 = vrot.lane.b32.xlu0 %v3111, 16
      %v3191 = vpop.permute.xlu0 %3190
      %3192 = vrot.lane.b32.xlu0 %v3112, 16
      %v3193 = vpop.permute.xlu0 %3192
      %3194 = vrot.lane.b32.xlu0 %v3113, 16
      %v3195 = vpop.permute.xlu0 %3194
      %3196 = vrot.lane.b32.xlu0 %v3114, 16
      %v3197 = vpop.permute.xlu0 %3196
      %3198 = vrot.lane.b32.xlu0 %v3115, 16
      %v3199 = vpop.permute.xlu0 %3198
      %3200 = vrot.lane.b32.xlu0 %v3116, 16
      %v3201 = vpop.permute.xlu0 %3200
      %3202 = vrot.lane.b32.xlu0 %v3117, 16
      %v3203 = vpop.permute.xlu0 %3202
      %3204 = vrot.lane.b32.xlu0 %v3118, 16
      %v3205 = vpop.permute.xlu0 %3204
      %3206 = vrot.lane.b32.xlu0 %v3119, 16
      %v3207 = vpop.permute.xlu0 %3206
      %3208 = vrot.lane.b32.xlu0 %v3120, 16
      %v3209 = vpop.permute.xlu0 %3208
      %3210 = vrot.lane.b32.xlu0 %v3121, 16
      %v3211 = vpop.permute.xlu0 %3210
      %3212 = vrot.lane.b32.xlu0 %v3122, 16
      %v3213 = vpop.permute.xlu0 %3212
      %3214 = vrot.lane.b32.xlu0 %v3123, 16
      %v3215 = vpop.permute.xlu0 %3214
      %3216 = vrot.lane.b32.xlu0 %v3124, 16
      %v3217 = vpop.permute.xlu0 %3216
      %3218 = vrot.lane.b32.xlu0 %v3125, 16
      %v3219 = vpop.permute.xlu0 %3218
      %3220 = vrot.lane.b32.xlu0 %v3126, 16
      %v3221 = vpop.permute.xlu0 %3220
      %3222 = vrot.lane.b32.xlu0 %v3127, 16
      %v3223 = vpop.permute.xlu0 %3222
      %3256 = vst.msk [vmem:[#allocation3] sm:$0xff] %vm1085, %v3161
      %3257 = vst.msk [vmem:[#allocation3 + $0x8] sm:$0xff] %vm1085, %v3163
      %3258 = vst.msk [vmem:[#allocation3 + $0x10] sm:$0xff] %vm1085, %v3165
      %3259 = vst.msk [vmem:[#allocation3 + $0x18] sm:$0xff] %vm1085, %v3167
      %3260 = vst.msk [vmem:[#allocation3 + $0x20] sm:$0xff] %vm1085, %v3169
      %3261 = vst.msk [vmem:[#allocation3 + $0x28] sm:$0xff] %vm1085, %v3171
      %3262 = vst.msk [vmem:[#allocation3 + $0x30] sm:$0xff] %vm1085, %v3173
      %3263 = vst.msk [vmem:[#allocation3 + $0x38] sm:$0xff] %vm1085, %v3175
      %3264 = vst.msk [vmem:[#allocation3 + $0x40] sm:$0xff] %vm1085, %v3177
      %3265 = vst.msk [vmem:[#allocation3 + $0x48] sm:$0xff] %vm1085, %v3179
      %3266 = vst.msk [vmem:[#allocation3 + $0x50] sm:$0xff] %vm1085, %v3181
      %3267 = vst.msk [vmem:[#allocation3 + $0x58] sm:$0xff] %vm1085, %v3183
      %3268 = vst.msk [vmem:[#allocation3 + $0x60] sm:$0xff] %vm1085, %v3185
      %3269 = vst.msk [vmem:[#allocation3 + $0x68] sm:$0xff] %vm1085, %v3187
      %3270 = vst.msk [vmem:[#allocation3 + $0x70] sm:$0xff] %vm1085, %v3189
      %3271 = vst.msk [vmem:[#allocation3 + $0x78] sm:$0xff] %vm1085, %v3191
      %3272 = vst.msk [vmem:[#allocation3 + $0x80] sm:$0xff] %vm1085, %v3193
      %3273 = vst.msk [vmem:[#allocation3 + $0x88] sm:$0xff] %vm1085, %v3195
      %3274 = vst.msk [vmem:[#allocation3 + $0x90] sm:$0xff] %vm1085, %v3197
      %3275 = vst.msk [vmem:[#allocation3 + $0x98] sm:$0xff] %vm1085, %v3199
      %3276 = vst.msk [vmem:[#allocation3 + $0xa0] sm:$0xff] %vm1085, %v3201
      %3277 = vst.msk [vmem:[#allocation3 + $0xa8] sm:$0xff] %vm1085, %v3203
      %3278 = vst.msk [vmem:[#allocation3 + $0xb0] sm:$0xff] %vm1085, %v3205
      %3279 = vst.msk [vmem:[#allocation3 + $0xb8] sm:$0xff] %vm1085, %v3207
      %3280 = vst.msk [vmem:[#allocation3 + $0xc0] sm:$0xff] %vm1085, %v3209
      %3281 = vst.msk [vmem:[#allocation3 + $0xc8] sm:$0xff] %vm1085, %v3211
      %3282 = vst.msk [vmem:[#allocation3 + $0xd0] sm:$0xff] %vm1085, %v3213
      %3283 = vst.msk [vmem:[#allocation3 + $0xd8] sm:$0xff] %vm1085, %v3215
      %3284 = vst.msk [vmem:[#allocation3 + $0xe0] sm:$0xff] %vm1085, %v3217
      %3285 = vst.msk [vmem:[#allocation3 + $0xe8] sm:$0xff] %vm1085, %v3219
      %3286 = vst.msk [vmem:[#allocation3 + $0xf0] sm:$0xff] %vm1085, %v3221
      %3287 = vst.msk [vmem:[#allocation3 + $0xf8] sm:$0xff] %vm1085, %v3223
      %v3288 = vld [vmem:[%s249 + $0x2] sm:$0xff]
      %v3289 = vld [vmem:[%s249 + $0xa] sm:$0xff]
      %v3290 = vld [vmem:[%s249 + $0x1a] sm:$0xff]
      %v3291 = vld [vmem:[%s249 + $0x22] sm:$0xff]
      %v3292 = vld [vmem:[%s249 + $0x32] sm:$0xff]
      %v3293 = vld [vmem:[%s249 + $0x3a] sm:$0xff]
      %v3294 = vld [vmem:[%s249 + $0x4a] sm:$0xff]
      %v3295 = vld [vmem:[%s249 + $0x52] sm:$0xff]
      %v3296 = vld [vmem:[%s249 + $0x62] sm:$0xff]
      %v3297 = vld [vmem:[%s249 + $0x6a] sm:$0xff]
      %v3298 = vld [vmem:[%s249 + $0x7a] sm:$0xff]
      %v3299 = vld [vmem:[%s249 + $0x82] sm:$0xff]
      %v3300 = vld [vmem:[%s249 + $0x92] sm:$0xff]
      %v3301 = vld [vmem:[%s249 + $0x9a] sm:$0xff]
      %v3302 = vld [vmem:[%s249 + $0xaa] sm:$0xff]
      %v3303 = vld [vmem:[%s249 + $0xb2] sm:$0xff]
      %v3304 = vld [vmem:[%s249 + $0xc2] sm:$0xff]
      %v3305 = vld [vmem:[%s249 + $0xca] sm:$0xff]
      %v3306 = vld [vmem:[%s249 + $0xda] sm:$0xff]
      %v3307 = vld [vmem:[%s249 + $0xe2] sm:$0xff]
      %v3308 = vld [vmem:[%s249 + $0xf2] sm:$0xff]
      %v3309 = vld [vmem:[%s249 + $0xfa] sm:$0xff]
      %v3310 = vld [vmem:[%s249 + $0x10a] sm:$0xff]
      %v3311 = vld [vmem:[%s249 + $0x112] sm:$0xff]
      %v3312 = vld [vmem:[%s249 + $0x122] sm:$0xff]
      %v3313 = vld [vmem:[%s249 + $0x12a] sm:$0xff]
      %v3314 = vld [vmem:[%s249 + $0x13a] sm:$0xff]
      %v3315 = vld [vmem:[%s249 + $0x142] sm:$0xff]
      %v3316 = vld [vmem:[%s249 + $0x152] sm:$0xff]
      %v3317 = vld [vmem:[%s249 + $0x15a] sm:$0xff]
      %v3318 = vld [vmem:[%s249 + $0x16a] sm:$0xff]
      %v3319 = vld [vmem:[%s249 + $0x172] sm:$0xff]
      %3352 = vrot.lane.b32.xlu0 %v3288, 20
      %v3353 = vpop.permute.xlu0 %3352
      %3354 = vrot.lane.b32.xlu0 %v3289, 20
      %v3355 = vpop.permute.xlu0 %3354
      %3356 = vrot.lane.b32.xlu0 %v3290, 20
      %v3357 = vpop.permute.xlu0 %3356
      %3358 = vrot.lane.b32.xlu0 %v3291, 20
      %v3359 = vpop.permute.xlu0 %3358
      %3360 = vrot.lane.b32.xlu0 %v3292, 20
      %v3361 = vpop.permute.xlu0 %3360
      %3362 = vrot.lane.b32.xlu0 %v3293, 20
      %v3363 = vpop.permute.xlu0 %3362
      %3364 = vrot.lane.b32.xlu0 %v3294, 20
      %v3365 = vpop.permute.xlu0 %3364
      %3366 = vrot.lane.b32.xlu0 %v3295, 20
      %v3367 = vpop.permute.xlu0 %3366
      %3368 = vrot.lane.b32.xlu0 %v3296, 20
      %v3369 = vpop.permute.xlu0 %3368
      %3370 = vrot.lane.b32.xlu0 %v3297, 20
      %v3371 = vpop.permute.xlu0 %3370
      %3372 = vrot.lane.b32.xlu0 %v3298, 20
      %v3373 = vpop.permute.xlu0 %3372
      %3374 = vrot.lane.b32.xlu0 %v3299, 20
      %v3375 = vpop.permute.xlu0 %3374
      %3376 = vrot.lane.b32.xlu0 %v3300, 20
      %v3377 = vpop.permute.xlu0 %3376
      %3378 = vrot.lane.b32.xlu0 %v3301, 20
      %v3379 = vpop.permute.xlu0 %3378
      %3380 = vrot.lane.b32.xlu0 %v3302, 20
      %v3381 = vpop.permute.xlu0 %3380
      %3382 = vrot.lane.b32.xlu0 %v3303, 20
      %v3383 = vpop.permute.xlu0 %3382
      %3384 = vrot.lane.b32.xlu0 %v3304, 20
      %v3385 = vpop.permute.xlu0 %3384
      %3386 = vrot.lane.b32.xlu0 %v3305, 20
      %v3387 = vpop.permute.xlu0 %3386
      %3388 = vrot.lane.b32.xlu0 %v3306, 20
      %v3389 = vpop.permute.xlu0 %3388
      %3390 = vrot.lane.b32.xlu0 %v3307, 20
      %v3391 = vpop.permute.xlu0 %3390
      %3392 = vrot.lane.b32.xlu0 %v3308, 20
      %v3393 = vpop.permute.xlu0 %3392
      %3394 = vrot.lane.b32.xlu0 %v3309, 20
      %v3395 = vpop.permute.xlu0 %3394
      %3396 = vrot.lane.b32.xlu0 %v3310, 20
      %v3397 = vpop.permute.xlu0 %3396
      %3398 = vrot.lane.b32.xlu0 %v3311, 20
      %v3399 = vpop.permute.xlu0 %3398
      %3400 = vrot.lane.b32.xlu0 %v3312, 20
      %v3401 = vpop.permute.xlu0 %3400
      %3402 = vrot.lane.b32.xlu0 %v3313, 20
      %v3403 = vpop.permute.xlu0 %3402
      %3404 = vrot.lane.b32.xlu0 %v3314, 20
      %v3405 = vpop.permute.xlu0 %3404
      %3406 = vrot.lane.b32.xlu0 %v3315, 20
      %v3407 = vpop.permute.xlu0 %3406
      %3408 = vrot.lane.b32.xlu0 %v3316, 20
      %v3409 = vpop.permute.xlu0 %3408
      %3410 = vrot.lane.b32.xlu0 %v3317, 20
      %v3411 = vpop.permute.xlu0 %3410
      %3412 = vrot.lane.b32.xlu0 %v3318, 20
      %v3413 = vpop.permute.xlu0 %3412
      %3414 = vrot.lane.b32.xlu0 %v3319, 20
      %v3415 = vpop.permute.xlu0 %3414
      %3448 = vst.msk [vmem:[#allocation3] sm:$0xff] %vm1278, %v3353
      %3449 = vst.msk [vmem:[#allocation3 + $0x8] sm:$0xff] %vm1278, %v3355
      %3450 = vst.msk [vmem:[#allocation3 + $0x10] sm:$0xff] %vm1278, %v3357
      %3451 = vst.msk [vmem:[#allocation3 + $0x18] sm:$0xff] %vm1278, %v3359
      %3452 = vst.msk [vmem:[#allocation3 + $0x20] sm:$0xff] %vm1278, %v3361
      %3453 = vst.msk [vmem:[#allocation3 + $0x28] sm:$0xff] %vm1278, %v3363
      %3454 = vst.msk [vmem:[#allocation3 + $0x30] sm:$0xff] %vm1278, %v3365
      %3455 = vst.msk [vmem:[#allocation3 + $0x38] sm:$0xff] %vm1278, %v3367
      %3456 = vst.msk [vmem:[#allocation3 + $0x40] sm:$0xff] %vm1278, %v3369
      %3457 = vst.msk [vmem:[#allocation3 + $0x48] sm:$0xff] %vm1278, %v3371
      %3458 = vst.msk [vmem:[#allocation3 + $0x50] sm:$0xff] %vm1278, %v3373
      %3459 = vst.msk [vmem:[#allocation3 + $0x58] sm:$0xff] %vm1278, %v3375
      %3460 = vst.msk [vmem:[#allocation3 + $0x60] sm:$0xff] %vm1278, %v3377
      %3461 = vst.msk [vmem:[#allocation3 + $0x68] sm:$0xff] %vm1278, %v3379
      %3462 = vst.msk [vmem:[#allocation3 + $0x70] sm:$0xff] %vm1278, %v3381
      %3463 = vst.msk [vmem:[#allocation3 + $0x78] sm:$0xff] %vm1278, %v3383
      %3464 = vst.msk [vmem:[#allocation3 + $0x80] sm:$0xff] %vm1278, %v3385
      %3465 = vst.msk [vmem:[#allocation3 + $0x88] sm:$0xff] %vm1278, %v3387
      %3466 = vst.msk [vmem:[#allocation3 + $0x90] sm:$0xff] %vm1278, %v3389
      %3467 = vst.msk [vmem:[#allocation3 + $0x98] sm:$0xff] %vm1278, %v3391
      %3468 = vst.msk [vmem:[#allocation3 + $0xa0] sm:$0xff] %vm1278, %v3393
      %3469 = vst.msk [vmem:[#allocation3 + $0xa8] sm:$0xff] %vm1278, %v3395
      %3470 = vst.msk [vmem:[#allocation3 + $0xb0] sm:$0xff] %vm1278, %v3397
      %3471 = vst.msk [vmem:[#allocation3 + $0xb8] sm:$0xff] %vm1278, %v3399
      %3472 = vst.msk [vmem:[#allocation3 + $0xc0] sm:$0xff] %vm1278, %v3401
      %3473 = vst.msk [vmem:[#allocation3 + $0xc8] sm:$0xff] %vm1278, %v3403
      %3474 = vst.msk [vmem:[#allocation3 + $0xd0] sm:$0xff] %vm1278, %v3405
      %3475 = vst.msk [vmem:[#allocation3 + $0xd8] sm:$0xff] %vm1278, %v3407
      %3476 = vst.msk [vmem:[#allocation3 + $0xe0] sm:$0xff] %vm1278, %v3409
      %3477 = vst.msk [vmem:[#allocation3 + $0xe8] sm:$0xff] %vm1278, %v3411
      %3478 = vst.msk [vmem:[#allocation3 + $0xf0] sm:$0xff] %vm1278, %v3413
      %3479 = vst.msk [vmem:[#allocation3 + $0xf8] sm:$0xff] %vm1278, %v3415
      %v3480 = vld [vmem:[%s1311] sm:$0xff]
      %v3481 = vld [vmem:[%s1311 + $0x8] sm:$0xff]
      %v3482 = vld [vmem:[%s1311 + $0x18] sm:$0xff]
      %v3483 = vld [vmem:[%s1311 + $0x20] sm:$0xff]
      %v3484 = vld [vmem:[%s1311 + $0x30] sm:$0xff]
      %v3485 = vld [vmem:[%s1311 + $0x38] sm:$0xff]
      %v3486 = vld [vmem:[%s1311 + $0x48] sm:$0xff]
      %v3487 = vld [vmem:[%s1311 + $0x50] sm:$0xff]
      %v3488 = vld [vmem:[%s1311 + $0x60] sm:$0xff]
      %v3489 = vld [vmem:[%s1311 + $0x68] sm:$0xff]
      %v3490 = vld [vmem:[%s1311 + $0x78] sm:$0xff]
      %v3491 = vld [vmem:[%s1311 + $0x80] sm:$0xff]
      %v3492 = vld [vmem:[%s1311 + $0x90] sm:$0xff]
      %v3493 = vld [vmem:[%s1311 + $0x98] sm:$0xff]
      %v3494 = vld [vmem:[%s1311 + $0xa8] sm:$0xff]
      %v3495 = vld [vmem:[%s1311 + $0xb0] sm:$0xff]
      %v3496 = vld [vmem:[%s1311 + $0xc0] sm:$0xff]
      %v3497 = vld [vmem:[%s1311 + $0xc8] sm:$0xff]
      %v3498 = vld [vmem:[%s1311 + $0xd8] sm:$0xff]
      %v3499 = vld [vmem:[%s1311 + $0xe0] sm:$0xff]
      %v3500 = vld [vmem:[%s1311 + $0xf0] sm:$0xff]
      %v3501 = vld [vmem:[%s1311 + $0xf8] sm:$0xff]
      %v3502 = vld [vmem:[%s1311 + $0x108] sm:$0xff]
      %v3503 = vld [vmem:[%s1311 + $0x110] sm:$0xff]
      %v3504 = vld [vmem:[%s1311 + $0x120] sm:$0xff]
      %v3505 = vld [vmem:[%s1311 + $0x128] sm:$0xff]
      %v3506 = vld [vmem:[%s1311 + $0x138] sm:$0xff]
      %v3507 = vld [vmem:[%s1311 + $0x140] sm:$0xff]
      %v3508 = vld [vmem:[%s1311 + $0x150] sm:$0xff]
      %v3509 = vld [vmem:[%s1311 + $0x158] sm:$0xff]
      %v3510 = vld [vmem:[%s1311 + $0x168] sm:$0xff]
      %v3511 = vld [vmem:[%s1311 + $0x170] sm:$0xff]
      %3544 = vrot.lane.b32.xlu0 %v3480, 24
      %v3545 = vpop.permute.xlu0 %3544
      %3546 = vrot.lane.b32.xlu0 %v3481, 24
      %v3547 = vpop.permute.xlu0 %3546
      %3548 = vrot.lane.b32.xlu0 %v3482, 24
      %v3549 = vpop.permute.xlu0 %3548
      %3550 = vrot.lane.b32.xlu0 %v3483, 24
      %v3551 = vpop.permute.xlu0 %3550
      %3552 = vrot.lane.b32.xlu0 %v3484, 24
      %v3553 = vpop.permute.xlu0 %3552
      %3554 = vrot.lane.b32.xlu0 %v3485, 24
      %v3555 = vpop.permute.xlu0 %3554
      %3556 = vrot.lane.b32.xlu0 %v3486, 24
      %v3557 = vpop.permute.xlu0 %3556
      %3558 = vrot.lane.b32.xlu0 %v3487, 24
      %v3559 = vpop.permute.xlu0 %3558
      %3560 = vrot.lane.b32.xlu0 %v3488, 24
      %v3561 = vpop.permute.xlu0 %3560
      %3562 = vrot.lane.b32.xlu0 %v3489, 24
      %v3563 = vpop.permute.xlu0 %3562
      %3564 = vrot.lane.b32.xlu0 %v3490, 24
      %v3565 = vpop.permute.xlu0 %3564
      %3566 = vrot.lane.b32.xlu0 %v3491, 24
      %v3567 = vpop.permute.xlu0 %3566
      %3568 = vrot.lane.b32.xlu0 %v3492, 24
      %v3569 = vpop.permute.xlu0 %3568
      %3570 = vrot.lane.b32.xlu0 %v3493, 24
      %v3571 = vpop.permute.xlu0 %3570
      %3572 = vrot.lane.b32.xlu0 %v3494, 24
      %v3573 = vpop.permute.xlu0 %3572
      %3574 = vrot.lane.b32.xlu0 %v3495, 24
      %v3575 = vpop.permute.xlu0 %3574
      %3576 = vrot.lane.b32.xlu0 %v3496, 24
      %v3577 = vpop.permute.xlu0 %3576
      %3578 = vrot.lane.b32.xlu0 %v3497, 24
      %v3579 = vpop.permute.xlu0 %3578
      %3580 = vrot.lane.b32.xlu0 %v3498, 24
      %v3581 = vpop.permute.xlu0 %3580
      %3582 = vrot.lane.b32.xlu0 %v3499, 24
      %v3583 = vpop.permute.xlu0 %3582
      %3584 = vrot.lane.b32.xlu0 %v3500, 24
      %v3585 = vpop.permute.xlu0 %3584
      %3586 = vrot.lane.b32.xlu0 %v3501, 24
      %v3587 = vpop.permute.xlu0 %3586
      %3588 = vrot.lane.b32.xlu0 %v3502, 24
      %v3589 = vpop.permute.xlu0 %3588
      %3590 = vrot.lane.b32.xlu0 %v3503, 24
      %v3591 = vpop.permute.xlu0 %3590
      %3592 = vrot.lane.b32.xlu0 %v3504, 24
      %v3593 = vpop.permute.xlu0 %3592
      %3594 = vrot.lane.b32.xlu0 %v3505, 24
      %v3595 = vpop.permute.xlu0 %3594
      %3596 = vrot.lane.b32.xlu0 %v3506, 24
      %v3597 = vpop.permute.xlu0 %3596
      %3598 = vrot.lane.b32.xlu0 %v3507, 24
      %v3599 = vpop.permute.xlu0 %3598
      %3600 = vrot.lane.b32.xlu0 %v3508, 24
      %v3601 = vpop.permute.xlu0 %3600
      %3602 = vrot.lane.b32.xlu0 %v3509, 24
      %v3603 = vpop.permute.xlu0 %3602
      %3604 = vrot.lane.b32.xlu0 %v3510, 24
      %v3605 = vpop.permute.xlu0 %3604
      %3606 = vrot.lane.b32.xlu0 %v3511, 24
      %v3607 = vpop.permute.xlu0 %3606
      %3640 = vst.msk [vmem:[#allocation3] sm:$0xff] %vm1472, %v3545
      %3641 = vst.msk [vmem:[#allocation3 + $0x8] sm:$0xff] %vm1472, %v3547
      %3642 = vst.msk [vmem:[#allocation3 + $0x10] sm:$0xff] %vm1472, %v3549
      %3643 = vst.msk [vmem:[#allocation3 + $0x18] sm:$0xff] %vm1472, %v3551
      %3644 = vst.msk [vmem:[#allocation3 + $0x20] sm:$0xff] %vm1472, %v3553
      %3645 = vst.msk [vmem:[#allocation3 + $0x28] sm:$0xff] %vm1472, %v3555
      %3646 = vst.msk [vmem:[#allocation3 + $0x30] sm:$0xff] %vm1472, %v3557
      %3647 = vst.msk [vmem:[#allocation3 + $0x38] sm:$0xff] %vm1472, %v3559
      %3648 = vst.msk [vmem:[#allocation3 + $0x40] sm:$0xff] %vm1472, %v3561
      %3649 = vst.msk [vmem:[#allocation3 + $0x48] sm:$0xff] %vm1472, %v3563
      %3650 = vst.msk [vmem:[#allocation3 + $0x50] sm:$0xff] %vm1472, %v3565
      %3651 = vst.msk [vmem:[#allocation3 + $0x58] sm:$0xff] %vm1472, %v3567
      %3652 = vst.msk [vmem:[#allocation3 + $0x60] sm:$0xff] %vm1472, %v3569
      %3653 = vst.msk [vmem:[#allocation3 + $0x68] sm:$0xff] %vm1472, %v3571
      %3654 = vst.msk [vmem:[#allocation3 + $0x70] sm:$0xff] %vm1472, %v3573
      %3655 = vst.msk [vmem:[#allocation3 + $0x78] sm:$0xff] %vm1472, %v3575
      %3656 = vst.msk [vmem:[#allocation3 + $0x80] sm:$0xff] %vm1472, %v3577
      %3657 = vst.msk [vmem:[#allocation3 + $0x88] sm:$0xff] %vm1472, %v3579
      %3658 = vst.msk [vmem:[#allocation3 + $0x90] sm:$0xff] %vm1472, %v3581
      %3659 = vst.msk [vmem:[#allocation3 + $0x98] sm:$0xff] %vm1472, %v3583
      %3660 = vst.msk [vmem:[#allocation3 + $0xa0] sm:$0xff] %vm1472, %v3585
      %3661 = vst.msk [vmem:[#allocation3 + $0xa8] sm:$0xff] %vm1472, %v3587
      %3662 = vst.msk [vmem:[#allocation3 + $0xb0] sm:$0xff] %vm1472, %v3589
      %3663 = vst.msk [vmem:[#allocation3 + $0xb8] sm:$0xff] %vm1472, %v3591
      %3664 = vst.msk [vmem:[#allocation3 + $0xc0] sm:$0xff] %vm1472, %v3593
      %3665 = vst.msk [vmem:[#allocation3 + $0xc8] sm:$0xff] %vm1472, %v3595
      %3666 = vst.msk [vmem:[#allocation3 + $0xd0] sm:$0xff] %vm1472, %v3597
      %3667 = vst.msk [vmem:[#allocation3 + $0xd8] sm:$0xff] %vm1472, %v3599
      %3668 = vst.msk [vmem:[#allocation3 + $0xe0] sm:$0xff] %vm1472, %v3601
      %3669 = vst.msk [vmem:[#allocation3 + $0xe8] sm:$0xff] %vm1472, %v3603
      %3670 = vst.msk [vmem:[#allocation3 + $0xf0] sm:$0xff] %vm1472, %v3605
      %3671 = vst.msk [vmem:[#allocation3 + $0xf8] sm:$0xff] %vm1472, %v3607
      %v3672 = vld [vmem:[%s1311 + $0x1] sm:$0xff]
      %v3673 = vld [vmem:[%s1311 + $0x9] sm:$0xff]
      %v3674 = vld [vmem:[%s1311 + $0x19] sm:$0xff]
      %v3675 = vld [vmem:[%s1311 + $0x21] sm:$0xff]
      %v3676 = vld [vmem:[%s1311 + $0x31] sm:$0xff]
      %v3677 = vld [vmem:[%s1311 + $0x39] sm:$0xff]
      %v3678 = vld [vmem:[%s1311 + $0x49] sm:$0xff]
      %v3679 = vld [vmem:[%s1311 + $0x51] sm:$0xff]
      %v3680 = vld [vmem:[%s1311 + $0x61] sm:$0xff]
      %v3681 = vld [vmem:[%s1311 + $0x69] sm:$0xff]
      %v3682 = vld [vmem:[%s1311 + $0x79] sm:$0xff]
      %v3683 = vld [vmem:[%s1311 + $0x81] sm:$0xff]
      %v3684 = vld [vmem:[%s1311 + $0x91] sm:$0xff]
      %v3685 = vld [vmem:[%s1311 + $0x99] sm:$0xff]
      %v3686 = vld [vmem:[%s1311 + $0xa9] sm:$0xff]
      %v3687 = vld [vmem:[%s1311 + $0xb1] sm:$0xff]
      %v3688 = vld [vmem:[%s1311 + $0xc1] sm:$0xff]
      %v3689 = vld [vmem:[%s1311 + $0xc9] sm:$0xff]
      %v3690 = vld [vmem:[%s1311 + $0xd9] sm:$0xff]
      %v3691 = vld [vmem:[%s1311 + $0xe1] sm:$0xff]
      %v3692 = vld [vmem:[%s1311 + $0xf1] sm:$0xff]
      %v3693 = vld [vmem:[%s1311 + $0xf9] sm:$0xff]
      %v3694 = vld [vmem:[%s1311 + $0x109] sm:$0xff]
      %v3695 = vld [vmem:[%s1311 + $0x111] sm:$0xff]
      %v3696 = vld [vmem:[%s1311 + $0x121] sm:$0xff]
      %v3697 = vld [vmem:[%s1311 + $0x129] sm:$0xff]
      %v3698 = vld [vmem:[%s1311 + $0x139] sm:$0xff]
      %v3699 = vld [vmem:[%s1311 + $0x141] sm:$0xff]
      %v3700 = vld [vmem:[%s1311 + $0x151] sm:$0xff]
      %v3701 = vld [vmem:[%s1311 + $0x159] sm:$0xff]
      %v3702 = vld [vmem:[%s1311 + $0x169] sm:$0xff]
      %v3703 = vld [vmem:[%s1311 + $0x171] sm:$0xff]
      %3736 = vrot.lane.b32.xlu0 %v3672, 28
      %v3737 = vpop.permute.xlu0 %3736
      %3738 = vrot.lane.b32.xlu0 %v3673, 28
      %v3739 = vpop.permute.xlu0 %3738
      %3740 = vrot.lane.b32.xlu0 %v3674, 28
      %v3741 = vpop.permute.xlu0 %3740
      %3742 = vrot.lane.b32.xlu0 %v3675, 28
      %v3743 = vpop.permute.xlu0 %3742
      %3744 = vrot.lane.b32.xlu0 %v3676, 28
      %v3745 = vpop.permute.xlu0 %3744
      %3746 = vrot.lane.b32.xlu0 %v3677, 28
      %v3747 = vpop.permute.xlu0 %3746
      %3748 = vrot.lane.b32.xlu0 %v3678, 28
      %v3749 = vpop.permute.xlu0 %3748
      %3750 = vrot.lane.b32.xlu0 %v3679, 28
      %v3751 = vpop.permute.xlu0 %3750
      %3752 = vrot.lane.b32.xlu0 %v3680, 28
      %v3753 = vpop.permute.xlu0 %3752
      %3754 = vrot.lane.b32.xlu0 %v3681, 28
      %v3755 = vpop.permute.xlu0 %3754
      %3756 = vrot.lane.b32.xlu0 %v3682, 28
      %v3757 = vpop.permute.xlu0 %3756
      %3758 = vrot.lane.b32.xlu0 %v3683, 28
      %v3759 = vpop.permute.xlu0 %3758
      %3760 = vrot.lane.b32.xlu0 %v3684, 28
      %v3761 = vpop.permute.xlu0 %3760
      %3762 = vrot.lane.b32.xlu0 %v3685, 28
      %v3763 = vpop.permute.xlu0 %3762
      %3764 = vrot.lane.b32.xlu0 %v3686, 28
      %v3765 = vpop.permute.xlu0 %3764
      %3766 = vrot.lane.b32.xlu0 %v3687, 28
      %v3767 = vpop.permute.xlu0 %3766
      %3768 = vrot.lane.b32.xlu0 %v3688, 28
      %v3769 = vpop.permute.xlu0 %3768
      %3770 = vrot.lane.b32.xlu0 %v3689, 28
      %v3771 = vpop.permute.xlu0 %3770
      %3772 = vrot.lane.b32.xlu0 %v3690, 28
      %v3773 = vpop.permute.xlu0 %3772
      %3774 = vrot.lane.b32.xlu0 %v3691, 28
      %v3775 = vpop.permute.xlu0 %3774
      %3776 = vrot.lane.b32.xlu0 %v3692, 28
      %v3777 = vpop.permute.xlu0 %3776
      %3778 = vrot.lane.b32.xlu0 %v3693, 28
      %v3779 = vpop.permute.xlu0 %3778
      %3780 = vrot.lane.b32.xlu0 %v3694, 28
      %v3781 = vpop.permute.xlu0 %3780
      %3782 = vrot.lane.b32.xlu0 %v3695, 28
      %v3783 = vpop.permute.xlu0 %3782
      %3784 = vrot.lane.b32.xlu0 %v3696, 28
      %v3785 = vpop.permute.xlu0 %3784
      %3786 = vrot.lane.b32.xlu0 %v3697, 28
      %v3787 = vpop.permute.xlu0 %3786
      %3788 = vrot.lane.b32.xlu0 %v3698, 28
      %v3789 = vpop.permute.xlu0 %3788
      %3790 = vrot.lane.b32.xlu0 %v3699, 28
      %v3791 = vpop.permute.xlu0 %3790
      %3792 = vrot.lane.b32.xlu0 %v3700, 28
      %v3793 = vpop.permute.xlu0 %3792
      %3794 = vrot.lane.b32.xlu0 %v3701, 28
      %v3795 = vpop.permute.xlu0 %3794
      %3796 = vrot.lane.b32.xlu0 %v3702, 28
      %v3797 = vpop.permute.xlu0 %3796
      %3798 = vrot.lane.b32.xlu0 %v3703, 28
      %v3799 = vpop.permute.xlu0 %3798
      %3832 = vst.msk [vmem:[#allocation3] sm:$0xff] %vm1665, %v3737
      %3833 = vst.msk [vmem:[#allocation3 + $0x8] sm:$0xff] %vm1665, %v3739
      %3834 = vst.msk [vmem:[#allocation3 + $0x10] sm:$0xff] %vm1665, %v3741
      %3835 = vst.msk [vmem:[#allocation3 + $0x18] sm:$0xff] %vm1665, %v3743
      %3836 = vst.msk [vmem:[#allocation3 + $0x20] sm:$0xff] %vm1665, %v3745
      %3837 = vst.msk [vmem:[#allocation3 + $0x28] sm:$0xff] %vm1665, %v3747
      %3838 = vst.msk [vmem:[#allocation3 + $0x30] sm:$0xff] %vm1665, %v3749
      %3839 = vst.msk [vmem:[#allocation3 + $0x38] sm:$0xff] %vm1665, %v3751
      %3840 = vst.msk [vmem:[#allocation3 + $0x40] sm:$0xff] %vm1665, %v3753
      %3841 = vst.msk [vmem:[#allocation3 + $0x48] sm:$0xff] %vm1665, %v3755
      %3842 = vst.msk [vmem:[#allocation3 + $0x50] sm:$0xff] %vm1665, %v3757
      %3843 = vst.msk [vmem:[#allocation3 + $0x58] sm:$0xff] %vm1665, %v3759
      %3844 = vst.msk [vmem:[#allocation3 + $0x60] sm:$0xff] %vm1665, %v3761
      %3845 = vst.msk [vmem:[#allocation3 + $0x68] sm:$0xff] %vm1665, %v3763
      %3846 = vst.msk [vmem:[#allocation3 + $0x70] sm:$0xff] %vm1665, %v3765
      %3847 = vst.msk [vmem:[#allocation3 + $0x78] sm:$0xff] %vm1665, %v3767
      %3848 = vst.msk [vmem:[#allocation3 + $0x80] sm:$0xff] %vm1665, %v3769
      %3849 = vst.msk [vmem:[#allocation3 + $0x88] sm:$0xff] %vm1665, %v3771
      %3850 = vst.msk [vmem:[#allocation3 + $0x90] sm:$0xff] %vm1665, %v3773
      %3851 = vst.msk [vmem:[#allocation3 + $0x98] sm:$0xff] %vm1665, %v3775
      %3852 = vst.msk [vmem:[#allocation3 + $0xa0] sm:$0xff] %vm1665, %v3777
      %3853 = vst.msk [vmem:[#allocation3 + $0xa8] sm:$0xff] %vm1665, %v3779
      %3854 = vst.msk [vmem:[#allocation3 + $0xb0] sm:$0xff] %vm1665, %v3781
      %3855 = vst.msk [vmem:[#allocation3 + $0xb8] sm:$0xff] %vm1665, %v3783
      %3856 = vst.msk [vmem:[#allocation3 + $0xc0] sm:$0xff] %vm1665, %v3785
      %3857 = vst.msk [vmem:[#allocation3 + $0xc8] sm:$0xff] %vm1665, %v3787
      %3858 = vst.msk [vmem:[#allocation3 + $0xd0] sm:$0xff] %vm1665, %v3789
      %3859 = vst.msk [vmem:[#allocation3 + $0xd8] sm:$0xff] %vm1665, %v3791
      %3860 = vst.msk [vmem:[#allocation3 + $0xe0] sm:$0xff] %vm1665, %v3793
      %3861 = vst.msk [vmem:[#allocation3 + $0xe8] sm:$0xff] %vm1665, %v3795
      %3862 = vst.msk [vmem:[#allocation3 + $0xf0] sm:$0xff] %vm1665, %v3797
      %3863 = vst.msk [vmem:[#allocation3 + $0xf8] sm:$0xff] %vm1665, %v3799
      %v3864 = vld [vmem:[%s1311 + $0x2] sm:$0xff]
      %v3865 = vld [vmem:[%s1311 + $0xa] sm:$0xff]
      %v3866 = vld [vmem:[%s1311 + $0x1a] sm:$0xff]
      %v3867 = vld [vmem:[%s1311 + $0x22] sm:$0xff]
      %v3868 = vld [vmem:[%s1311 + $0x32] sm:$0xff]
      %v3869 = vld [vmem:[%s1311 + $0x3a] sm:$0xff]
      %v3870 = vld [vmem:[%s1311 + $0x4a] sm:$0xff]
      %v3871 = vld [vmem:[%s1311 + $0x52] sm:$0xff]
      %v3872 = vld [vmem:[%s1311 + $0x62] sm:$0xff]
      %v3873 = vld [vmem:[%s1311 + $0x6a] sm:$0xff]
      %v3874 = vld [vmem:[%s1311 + $0x7a] sm:$0xff]
      %v3875 = vld [vmem:[%s1311 + $0x82] sm:$0xff]
      %v3876 = vld [vmem:[%s1311 + $0x92] sm:$0xff]
      %v3877 = vld [vmem:[%s1311 + $0x9a] sm:$0xff]
      %v3878 = vld [vmem:[%s1311 + $0xaa] sm:$0xff]
      %v3879 = vld [vmem:[%s1311 + $0xb2] sm:$0xff]
      %v3880 = vld [vmem:[%s1311 + $0xc2] sm:$0xff]
      %v3881 = vld [vmem:[%s1311 + $0xca] sm:$0xff]
      %v3882 = vld [vmem:[%s1311 + $0xda] sm:$0xff]
      %v3883 = vld [vmem:[%s1311 + $0xe2] sm:$0xff]
      %v3884 = vld [vmem:[%s1311 + $0xf2] sm:$0xff]
      %v3885 = vld [vmem:[%s1311 + $0xfa] sm:$0xff]
      %v3886 = vld [vmem:[%s1311 + $0x10a] sm:$0xff]
      %v3887 = vld [vmem:[%s1311 + $0x112] sm:$0xff]
      %v3888 = vld [vmem:[%s1311 + $0x122] sm:$0xff]
      %v3889 = vld [vmem:[%s1311 + $0x12a] sm:$0xff]
      %v3890 = vld [vmem:[%s1311 + $0x13a] sm:$0xff]
      %v3891 = vld [vmem:[%s1311 + $0x142] sm:$0xff]
      %v3892 = vld [vmem:[%s1311 + $0x152] sm:$0xff]
      %v3893 = vld [vmem:[%s1311 + $0x15a] sm:$0xff]
      %v3894 = vld [vmem:[%s1311 + $0x16a] sm:$0xff]
      %v3895 = vld [vmem:[%s1311 + $0x172] sm:$0xff]
      %3928 = vrot.lane.b32.xlu0 %v3864, 32
      %v3929 = vpop.permute.xlu0 %3928
      %3930 = vrot.lane.b32.xlu0 %v3865, 32
      %v3931 = vpop.permute.xlu0 %3930
      %3932 = vrot.lane.b32.xlu0 %v3866, 32
      %v3933 = vpop.permute.xlu0 %3932
      %3934 = vrot.lane.b32.xlu0 %v3867, 32
      %v3935 = vpop.permute.xlu0 %3934
      %3936 = vrot.lane.b32.xlu0 %v3868, 32
      %v3937 = vpop.permute.xlu0 %3936
      %3938 = vrot.lane.b32.xlu0 %v3869, 32
      %v3939 = vpop.permute.xlu0 %3938
      %3940 = vrot.lane.b32.xlu0 %v3870, 32
      %v3941 = vpop.permute.xlu0 %3940
      %3942 = vrot.lane.b32.xlu0 %v3871, 32
      %v3943 = vpop.permute.xlu0 %3942
      %3944 = vrot.lane.b32.xlu0 %v3872, 32
      %v3945 = vpop.permute.xlu0 %3944
      %3946 = vrot.lane.b32.xlu0 %v3873, 32
      %v3947 = vpop.permute.xlu0 %3946
      %3948 = vrot.lane.b32.xlu0 %v3874, 32
      %v3949 = vpop.permute.xlu0 %3948
      %3950 = vrot.lane.b32.xlu0 %v3875, 32
      %v3951 = vpop.permute.xlu0 %3950
      %3952 = vrot.lane.b32.xlu0 %v3876, 32
      %v3953 = vpop.permute.xlu0 %3952
      %3954 = vrot.lane.b32.xlu0 %v3877, 32
      %v3955 = vpop.permute.xlu0 %3954
      %3956 = vrot.lane.b32.xlu0 %v3878, 32
      %v3957 = vpop.permute.xlu0 %3956
      %3958 = vrot.lane.b32.xlu0 %v3879, 32
      %v3959 = vpop.permute.xlu0 %3958
      %3960 = vrot.lane.b32.xlu0 %v3880, 32
      %v3961 = vpop.permute.xlu0 %3960
      %3962 = vrot.lane.b32.xlu0 %v3881, 32
      %v3963 = vpop.permute.xlu0 %3962
      %3964 = vrot.lane.b32.xlu0 %v3882, 32
      %v3965 = vpop.permute.xlu0 %3964
      %3966 = vrot.lane.b32.xlu0 %v3883, 32
      %v3967 = vpop.permute.xlu0 %3966
      %3968 = vrot.lane.b32.xlu0 %v3884, 32
      %v3969 = vpop.permute.xlu0 %3968
      %3970 = vrot.lane.b32.xlu0 %v3885, 32
      %v3971 = vpop.permute.xlu0 %3970
      %3972 = vrot.lane.b32.xlu0 %v3886, 32
      %v3973 = vpop.permute.xlu0 %3972
      %3974 = vrot.lane.b32.xlu0 %v3887, 32
      %v3975 = vpop.permute.xlu0 %3974
      %3976 = vrot.lane.b32.xlu0 %v3888, 32
      %v3977 = vpop.permute.xlu0 %3976
      %3978 = vrot.lane.b32.xlu0 %v3889, 32
      %v3979 = vpop.permute.xlu0 %3978
      %3980 = vrot.lane.b32.xlu0 %v3890, 32
      %v3981 = vpop.permute.xlu0 %3980
      %3982 = vrot.lane.b32.xlu0 %v3891, 32
      %v3983 = vpop.permute.xlu0 %3982
      %3984 = vrot.lane.b32.xlu0 %v3892, 32
      %v3985 = vpop.permute.xlu0 %3984
      %3986 = vrot.lane.b32.xlu0 %v3893, 32
      %v3987 = vpop.permute.xlu0 %3986
      %3988 = vrot.lane.b32.xlu0 %v3894, 32
      %v3989 = vpop.permute.xlu0 %3988
      %3990 = vrot.lane.b32.xlu0 %v3895, 32
      %v3991 = vpop.permute.xlu0 %3990
      %4024 = vst.msk [vmem:[#allocation3] sm:$0xff] %vm1858, %v3929
      %4025 = vst.msk [vmem:[#allocation3 + $0x8] sm:$0xff] %vm1858, %v3931
      %4026 = vst.msk [vmem:[#allocation3 + $0x10] sm:$0xff] %vm1858, %v3933
      %4027 = vst.msk [vmem:[#allocation3 + $0x18] sm:$0xff] %vm1858, %v3935
      %4028 = vst.msk [vmem:[#allocation3 + $0x20] sm:$0xff] %vm1858, %v3937
      %4029 = vst.msk [vmem:[#allocation3 + $0x28] sm:$0xff] %vm1858, %v3939
      %4030 = vst.msk [vmem:[#allocation3 + $0x30] sm:$0xff] %vm1858, %v3941
      %4031 = vst.msk [vmem:[#allocation3 + $0x38] sm:$0xff] %vm1858, %v3943
      %4032 = vst.msk [vmem:[#allocation3 + $0x40] sm:$0xff] %vm1858, %v3945
      %4033 = vst.msk [vmem:[#allocation3 + $0x48] sm:$0xff] %vm1858, %v3947
      %4034 = vst.msk [vmem:[#allocation3 + $0x50] sm:$0xff] %vm1858, %v3949
      %4035 = vst.msk [vmem:[#allocation3 + $0x58] sm:$0xff] %vm1858, %v3951
      %4036 = vst.msk [vmem:[#allocation3 + $0x60] sm:$0xff] %vm1858, %v3953
      %4037 = vst.msk [vmem:[#allocation3 + $0x68] sm:$0xff] %vm1858, %v3955
      %4038 = vst.msk [vmem:[#allocation3 + $0x70] sm:$0xff] %vm1858, %v3957
      %4039 = vst.msk [vmem:[#allocation3 + $0x78] sm:$0xff] %vm1858, %v3959
      %4040 = vst.msk [vmem:[#allocation3 + $0x80] sm:$0xff] %vm1858, %v3961
      %4041 = vst.msk [vmem:[#allocation3 + $0x88] sm:$0xff] %vm1858, %v3963
      %4042 = vst.msk [vmem:[#allocation3 + $0x90] sm:$0xff] %vm1858, %v3965
      %4043 = vst.msk [vmem:[#allocation3 + $0x98] sm:$0xff] %vm1858, %v3967
      %4044 = vst.msk [vmem:[#allocation3 + $0xa0] sm:$0xff] %vm1858, %v3969
      %4045 = vst.msk [vmem:[#allocation3 + $0xa8] sm:$0xff] %vm1858, %v3971
      %4046 = vst.msk [vmem:[#allocation3 + $0xb0] sm:$0xff] %vm1858, %v3973
      %4047 = vst.msk [vmem:[#allocation3 + $0xb8] sm:$0xff] %vm1858, %v3975
      %4048 = vst.msk [vmem:[#allocation3 + $0xc0] sm:$0xff] %vm1858, %v3977
      %4049 = vst.msk [vmem:[#allocation3 + $0xc8] sm:$0xff] %vm1858, %v3979
      %4050 = vst.msk [vmem:[#allocation3 + $0xd0] sm:$0xff] %vm1858, %v3981
      %4051 = vst.msk [vmem:[#allocation3 + $0xd8] sm:$0xff] %vm1858, %v3983
      %4052 = vst.msk [vmem:[#allocation3 + $0xe0] sm:$0xff] %vm1858, %v3985
      %4053 = vst.msk [vmem:[#allocation3 + $0xe8] sm:$0xff] %vm1858, %v3987
      %4054 = vst.msk [vmem:[#allocation3 + $0xf0] sm:$0xff] %vm1858, %v3989
      %4055 = vst.msk [vmem:[#allocation3 + $0xf8] sm:$0xff] %vm1858, %v3991
      %v4056 = vld [vmem:[#allocation3] sm:$0xff]
      %v4057 = vld [vmem:[#allocation3 + $0x8] sm:$0xff]
      %v4058 = vld [vmem:[#allocation3 + $0x10] sm:$0xff]
      %v4059 = vld [vmem:[#allocation3 + $0x18] sm:$0xff]
      %v4060 = vld [vmem:[#allocation3 + $0x20] sm:$0xff]
      %v4061 = vld [vmem:[#allocation3 + $0x28] sm:$0xff]
      %v4062 = vld [vmem:[#allocation3 + $0x30] sm:$0xff]
      %v4063 = vld [vmem:[#allocation3 + $0x38] sm:$0xff]
      %v4064 = vld [vmem:[#allocation3 + $0x40] sm:$0xff]
      %v4065 = vld [vmem:[#allocation3 + $0x48] sm:$0xff]
      %v4066 = vld [vmem:[#allocation3 + $0x50] sm:$0xff]
      %v4067 = vld [vmem:[#allocation3 + $0x58] sm:$0xff]
      %v4068 = vld [vmem:[#allocation3 + $0x60] sm:$0xff]
      %v4069 = vld [vmem:[#allocation3 + $0x68] sm:$0xff]
      %v4070 = vld [vmem:[#allocation3 + $0x70] sm:$0xff]
      %v4071 = vld [vmem:[#allocation3 + $0x78] sm:$0xff]
      %v4072 = vld [vmem:[#allocation3 + $0x80] sm:$0xff]
      %v4073 = vld [vmem:[#allocation3 + $0x88] sm:$0xff]
      %v4074 = vld [vmem:[#allocation3 + $0x90] sm:$0xff]
      %v4075 = vld [vmem:[#allocation3 + $0x98] sm:$0xff]
      %v4076 = vld [vmem:[#allocation3 + $0xa0] sm:$0xff]
      %v4077 = vld [vmem:[#allocation3 + $0xa8] sm:$0xff]
      %v4078 = vld [vmem:[#allocation3 + $0xb0] sm:$0xff]
      %v4079 = vld [vmem:[#allocation3 + $0xb8] sm:$0xff]
      %v4080 = vld [vmem:[#allocation3 + $0xc0] sm:$0xff]
      %v4081 = vld [vmem:[#allocation3 + $0xc8] sm:$0xff]
      %v4082 = vld [vmem:[#allocation3 + $0xd0] sm:$0xff]
      %v4083 = vld [vmem:[#allocation3 + $0xd8] sm:$0xff]
      %v4084 = vld [vmem:[#allocation3 + $0xe0] sm:$0xff]
      %v4085 = vld [vmem:[#allocation3 + $0xe8] sm:$0xff]
      %v4086 = vld [vmem:[#allocation3 + $0xf0] sm:$0xff]
      %v4087 = vld [vmem:[#allocation3 + $0xf8] sm:$0xff]
      %v4088 = vld [vmem:[%s2] sm:$0xff]
      %v4089 = vld [vmem:[%s2 + $0x8] sm:$0xff]
      %v4090 = vld [vmem:[%s2 + $0x10] sm:$0xff]
      %v4091 = vld [vmem:[%s2 + $0x18] sm:$0xff]
      %v4092 = vld [vmem:[%s2 + $0x20] sm:$0xf]
      %v4094 = vsel %vm1928, %v4056, 0
      %v4097 = vsel %vm1928, %v4057, 0
      %v4100 = vsel %vm1928, %v4058, 0
      %v4103 = vsel %vm1928, %v4059, 0
      %v4106 = vsel %vm1928, %v4060, 0
      %v4109 = vsel %vm1928, %v4061, 0
      %v4112 = vsel %vm1928, %v4062, 0
      %v4115 = vsel %vm1928, %v4063, 0
      %v4118 = vsel %vm1928, %v4064, 0
      %v4121 = vsel %vm1928, %v4065, 0
      %v4124 = vsel %vm1928, %v4066, 0
      %v4127 = vsel %vm1928, %v4067, 0
      %v4130 = vsel %vm1928, %v4068, 0
      %v4133 = vsel %vm1928, %v4069, 0
      %v4136 = vsel %vm1928, %v4070, 0
      %v4139 = vsel %vm1928, %v4071, 0
      %v4142 = vsel %vm1928, %v4072, 0
      %v4145 = vsel %vm1928, %v4073, 0
      %v4148 = vsel %vm1928, %v4074, 0
      %v4151 = vsel %vm1928, %v4075, 0
      %v4154 = vsel %vm1928, %v4076, 0
      %v4157 = vsel %vm1928, %v4077, 0
      %v4160 = vsel %vm1928, %v4078, 0
      %v4163 = vsel %vm1928, %v4079, 0
      %v4166 = vsel %vm1928, %v4080, 0
      %v4169 = vsel %vm1928, %v4081, 0
      %v4172 = vsel %vm1928, %v4082, 0
      %v4175 = vsel %vm1928, %v4083, 0
      %v4178 = vsel %vm1928, %v4084, 0
      %v4181 = vsel %vm1928, %v4085, 0
      %v4184 = vsel %vm1928, %v4086, 0
      %v4187 = vsel %vm1928, %v4087, 0
      %v4190 = vsel %vm2025, %v4092, 0
      %4192 = vmatpush.msra.mxu0 0.0
      %4193 = vmatpush.msra.mxu0 0.0
      %4194 = vmatpush.msra.mxu0 0.0
      %4195 = vmatpush.msra.mxu0 0.0
      %4196 = vmatpush.msra.mxu0 0.0
      %4197 = vmatpush.msra.mxu0 0.0
      %4198 = vmatpush.msra.mxu0 0.0
      %4199 = vmatpush.msra.mxu0 0.0
      %4200 = vmatpush.msra.mxu0 0.0
      %4201 = vmatpush.msra.mxu0 0.0
      %4202 = vmatpush.msra.mxu0 0.0
      %4203 = vmatpush.msra.mxu0 %v4190
      %4204 = vmatpush.msra.mxu0 %v4091
      %4205 = vmatpush.msra.mxu0 %v4090
      %4206 = vmatpush.msra.mxu0 %v4089
      %4207 = vmatpush.msra.mxu0 %v4088
      %4208 = vmatmul.f32.gmra.mxu0 %v4094
      %v4209 = vpop.f32.mrf.mxu0
      %v4210 = vadd.f32 0.0, %v4209
      %4211 = vmatmul.f32.gmra.mxu0 %v4097
      %v4212 = vpop.f32.mrf.mxu0
      %v4213 = vadd.f32 0.0, %v4212
      %4214 = vmatmul.f32.gmra.mxu0 %v4100
      %v4215 = vpop.f32.mrf.mxu0
      %v4216 = vadd.f32 0.0, %v4215
      %4217 = vmatmul.f32.gmra.mxu0 %v4103
      %v4218 = vpop.f32.mrf.mxu0
      %v4219 = vadd.f32 0.0, %v4218
      %4220 = vmatmul.f32.gmra.mxu0 %v4106
      %v4221 = vpop.f32.mrf.mxu0
      %v4222 = vadd.f32 0.0, %v4221
      %4223 = vmatmul.f32.gmra.mxu0 %v4109
      %v4224 = vpop.f32.mrf.mxu0
      %v4225 = vadd.f32 0.0, %v4224
      %4226 = vmatmul.f32.gmra.mxu0 %v4112
      %v4227 = vpop.f32.mrf.mxu0
      %v4228 = vadd.f32 0.0, %v4227
      %4229 = vmatmul.f32.gmra.mxu0 %v4115
      %v4230 = vpop.f32.mrf.mxu0
      %v4231 = vadd.f32 0.0, %v4230
      %4232 = vmatmul.f32.gmra.mxu0 %v4118
      %v4233 = vpop.f32.mrf.mxu0
      %v4234 = vadd.f32 0.0, %v4233
      %4235 = vmatmul.f32.gmra.mxu0 %v4121
      %v4236 = vpop.f32.mrf.mxu0
      %v4237 = vadd.f32 0.0, %v4236
      %4238 = vmatmul.f32.gmra.mxu0 %v4124
      %v4239 = vpop.f32.mrf.mxu0
      %v4240 = vadd.f32 0.0, %v4239
      %4241 = vmatmul.f32.gmra.mxu0 %v4127
      %v4242 = vpop.f32.mrf.mxu0
      %v4243 = vadd.f32 0.0, %v4242
      %4244 = vmatmul.f32.gmra.mxu0 %v4130
      %v4245 = vpop.f32.mrf.mxu0
      %v4246 = vadd.f32 0.0, %v4245
      %4247 = vmatmul.f32.gmra.mxu0 %v4133
      %v4248 = vpop.f32.mrf.mxu0
      %v4249 = vadd.f32 0.0, %v4248
      %4250 = vmatmul.f32.gmra.mxu0 %v4136
      %v4251 = vpop.f32.mrf.mxu0
      %v4252 = vadd.f32 0.0, %v4251
      %4253 = vmatmul.f32.gmra.mxu0 %v4139
      %v4254 = vpop.f32.mrf.mxu0
      %v4255 = vadd.f32 0.0, %v4254
      %4256 = vmatmul.f32.gmra.mxu0 %v4142
      %v4257 = vpop.f32.mrf.mxu0
      %v4258 = vadd.f32 0.0, %v4257
      %4259 = vmatmul.f32.gmra.mxu0 %v4145
      %v4260 = vpop.f32.mrf.mxu0
      %v4261 = vadd.f32 0.0, %v4260
      %4262 = vmatmul.f32.gmra.mxu0 %v4148
      %v4263 = vpop.f32.mrf.mxu0
      %v4264 = vadd.f32 0.0, %v4263
      %4265 = vmatmul.f32.gmra.mxu0 %v4151
      %v4266 = vpop.f32.mrf.mxu0
      %v4267 = vadd.f32 0.0, %v4266
      %4268 = vmatmul.f32.gmra.mxu0 %v4154
      %v4269 = vpop.f32.mrf.mxu0
      %v4270 = vadd.f32 0.0, %v4269
      %4271 = vmatmul.f32.gmra.mxu0 %v4157
      %v4272 = vpop.f32.mrf.mxu0
      %v4273 = vadd.f32 0.0, %v4272
      %4274 = vmatmul.f32.gmra.mxu0 %v4160
      %v4275 = vpop.f32.mrf.mxu0
      %v4276 = vadd.f32 0.0, %v4275
      %4277 = vmatmul.f32.gmra.mxu0 %v4163
      %v4278 = vpop.f32.mrf.mxu0
      %v4279 = vadd.f32 0.0, %v4278
      %4280 = vmatmul.f32.gmra.mxu0 %v4166
      %v4281 = vpop.f32.mrf.mxu0
      %v4282 = vadd.f32 0.0, %v4281
      %4283 = vmatmul.f32.gmra.mxu0 %v4169
      %v4284 = vpop.f32.mrf.mxu0
      %v4285 = vadd.f32 0.0, %v4284
      %4286 = vmatmul.f32.gmra.mxu0 %v4172
      %v4287 = vpop.f32.mrf.mxu0
      %v4288 = vadd.f32 0.0, %v4287
      %4289 = vmatmul.f32.gmra.mxu0 %v4175
      %v4290 = vpop.f32.mrf.mxu0
      %v4291 = vadd.f32 0.0, %v4290
      %4292 = vmatmul.f32.gmra.mxu0 %v4178
      %v4293 = vpop.f32.mrf.mxu0
      %v4294 = vadd.f32 0.0, %v4293
      %4295 = vmatmul.f32.gmra.mxu0 %v4181
      %v4296 = vpop.f32.mrf.mxu0
      %v4297 = vadd.f32 0.0, %v4296
      %4298 = vmatmul.f32.gmra.mxu0 %v4184
      %v4299 = vpop.f32.mrf.mxu0
      %v4300 = vadd.f32 0.0, %v4299
      %4301 = vmatmul.f32.gmra.mxu0 %v4187
      %v4302 = vpop.f32.mrf.mxu0
      %v4303 = vadd.f32 0.0, %v4302
      %4304 = vdwg.mxu0
      %v4305 = vsel %vm171, %v4210, 0.0
      %v4306 = vsel %vm171, %v4213, 0.0
      %v4307 = vadd.f32 %v4305, %v4306
      %v4308 = vsel %vm171, %v4216, 0.0
      %v4309 = vadd.f32 %v4307, %v4308
      %v4310 = vsel %vm171, %v4219, 0.0
      %v4311 = vadd.f32 %v4309, %v4310
      %v4312 = vsel %vm171, %v4222, 0.0
      %v4313 = vadd.f32 %v4311, %v4312
      %v4314 = vsel %vm171, %v4225, 0.0
      %v4315 = vadd.f32 %v4313, %v4314
      %v4316 = vsel %vm171, %v4228, 0.0
      %v4317 = vadd.f32 %v4315, %v4316
      %v4318 = vsel %vm171, %v4231, 0.0
      %v4319 = vadd.f32 %v4317, %v4318
      %v4320 = vsel %vm171, %v4234, 0.0
      %v4321 = vadd.f32 %v4319, %v4320
      %v4322 = vsel %vm171, %v4237, 0.0
      %v4323 = vadd.f32 %v4321, %v4322
      %v4324 = vsel %vm171, %v4240, 0.0
      %v4325 = vadd.f32 %v4323, %v4324
      %v4326 = vsel %vm171, %v4243, 0.0
      %v4327 = vadd.f32 %v4325, %v4326
      %v4328 = vsel %vm171, %v4246, 0.0
      %v4329 = vadd.f32 %v4327, %v4328
      %v4330 = vsel %vm171, %v4249, 0.0
      %v4331 = vadd.f32 %v4329, %v4330
      %v4332 = vsel %vm171, %v4252, 0.0
      %v4333 = vadd.f32 %v4331, %v4332
      %v4334 = vsel %vm171, %v4255, 0.0
      %v4335 = vadd.f32 %v4333, %v4334
      %v4336 = vsel %vm171, %v4258, 0.0
      %v4337 = vadd.f32 %v4335, %v4336
      %v4338 = vsel %vm171, %v4261, 0.0
      %v4339 = vadd.f32 %v4337, %v4338
      %v4340 = vsel %vm171, %v4264, 0.0
      %v4341 = vadd.f32 %v4339, %v4340
      %v4342 = vsel %vm171, %v4267, 0.0
      %v4343 = vadd.f32 %v4341, %v4342
      %v4344 = vsel %vm171, %v4270, 0.0
      %v4345 = vadd.f32 %v4343, %v4344
      %v4346 = vsel %vm171, %v4273, 0.0
      %v4347 = vadd.f32 %v4345, %v4346
      %v4348 = vsel %vm171, %v4276, 0.0
      %v4349 = vadd.f32 %v4347, %v4348
      %v4350 = vsel %vm171, %v4279, 0.0
      %v4351 = vadd.f32 %v4349, %v4350
      %v4352 = vsel %vm171, %v4282, 0.0
      %v4353 = vadd.f32 %v4351, %v4352
      %v4354 = vsel %vm171, %v4285, 0.0
      %v4355 = vadd.f32 %v4353, %v4354
      %v4356 = vsel %vm171, %v4288, 0.0
      %v4357 = vadd.f32 %v4355, %v4356
      %v4358 = vsel %vm171, %v4291, 0.0
      %v4359 = vadd.f32 %v4357, %v4358
      %v4360 = vsel %vm171, %v4294, 0.0
      %v4361 = vadd.f32 %v4359, %v4360
      %v4362 = vsel %vm171, %v4297, 0.0
      %v4363 = vadd.f32 %v4361, %v4362
      %v4364 = vsel %vm171, %v4300, 0.0
      %v4365 = vadd.f32 %v4363, %v4364
      %v4366 = vsel %vm171, %v4303, 0.0
      %v4367 = vadd.f32 %v4365, %v4366
      %v4368 = vrot.slane %v4367, 4
      %v4369 = vadd.f32 %v4367, %v4368
      %v4370 = vrot.slane %v4369, 2
      %v4371 = vadd.f32 %v4369, %v4370
      %v4372 = vrot.slane %v4371, 1
      %v4373 = vadd.f32 %v4371, %v4372
      %v4374 = vmul.f32 %v4373, 0.00390625
      %v4375 = vmul.f32 %v4210, %v4210
      %v4376 = vmul.f32 %v4213, %v4213
      %v4377 = vmul.f32 %v4216, %v4216
      %v4378 = vmul.f32 %v4219, %v4219
      %v4379 = vmul.f32 %v4222, %v4222
      %v4380 = vmul.f32 %v4225, %v4225
      %v4381 = vmul.f32 %v4228, %v4228
      %v4382 = vmul.f32 %v4231, %v4231
      %v4383 = vmul.f32 %v4234, %v4234
      %v4384 = vmul.f32 %v4237, %v4237
      %v4385 = vmul.f32 %v4240, %v4240
      %v4386 = vmul.f32 %v4243, %v4243
      %v4387 = vmul.f32 %v4246, %v4246
      %v4388 = vmul.f32 %v4249, %v4249
      %v4389 = vmul.f32 %v4252, %v4252
      %v4390 = vmul.f32 %v4255, %v4255
      %v4391 = vmul.f32 %v4258, %v4258
      %v4392 = vmul.f32 %v4261, %v4261
      %v4393 = vmul.f32 %v4264, %v4264
      %v4394 = vmul.f32 %v4267, %v4267
      %v4395 = vmul.f32 %v4270, %v4270
      %v4396 = vmul.f32 %v4273, %v4273
      %v4397 = vmul.f32 %v4276, %v4276
      %v4398 = vmul.f32 %v4279, %v4279
      %v4399 = vmul.f32 %v4282, %v4282
      %v4400 = vmul.f32 %v4285, %v4285
      %v4401 = vmul.f32 %v4288, %v4288
      %v4402 = vmul.f32 %v4291, %v4291
      %v4403 = vmul.f32 %v4294, %v4294
      %v4404 = vmul.f32 %v4297, %v4297
      %v4405 = vmul.f32 %v4300, %v4300
      %v4406 = vmul.f32 %v4303, %v4303
      %v4407 = vsel %vm171, %v4375, 0.0
      %v4408 = vsel %vm171, %v4376, 0.0
      %v4409 = vadd.f32 %v4407, %v4408
      %v4410 = vsel %vm171, %v4377, 0.0
      %v4411 = vadd.f32 %v4409, %v4410
      %v4412 = vsel %vm171, %v4378, 0.0
      %v4413 = vadd.f32 %v4411, %v4412
      %v4414 = vsel %vm171, %v4379, 0.0
      %v4415 = vadd.f32 %v4413, %v4414
      %v4416 = vsel %vm171, %v4380, 0.0
      %v4417 = vadd.f32 %v4415, %v4416
      %v4418 = vsel %vm171, %v4381, 0.0
      %v4419 = vadd.f32 %v4417, %v4418
      %v4420 = vsel %vm171, %v4382, 0.0
      %v4421 = vadd.f32 %v4419, %v4420
      %v4422 = vsel %vm171, %v4383, 0.0
      %v4423 = vadd.f32 %v4421, %v4422
      %v4424 = vsel %vm171, %v4384, 0.0
      %v4425 = vadd.f32 %v4423, %v4424
      %v4426 = vsel %vm171, %v4385, 0.0
      %v4427 = vadd.f32 %v4425, %v4426
      %v4428 = vsel %vm171, %v4386, 0.0
      %v4429 = vadd.f32 %v4427, %v4428
      %v4430 = vsel %vm171, %v4387, 0.0
      %v4431 = vadd.f32 %v4429, %v4430
      %v4432 = vsel %vm171, %v4388, 0.0
      %v4433 = vadd.f32 %v4431, %v4432
      %v4434 = vsel %vm171, %v4389, 0.0
      %v4435 = vadd.f32 %v4433, %v4434
      %v4436 = vsel %vm171, %v4390, 0.0
      %v4437 = vadd.f32 %v4435, %v4436
      %v4438 = vsel %vm171, %v4391, 0.0
      %v4439 = vadd.f32 %v4437, %v4438
      %v4440 = vsel %vm171, %v4392, 0.0
      %v4441 = vadd.f32 %v4439, %v4440
      %v4442 = vsel %vm171, %v4393, 0.0
      %v4443 = vadd.f32 %v4441, %v4442
      %v4444 = vsel %vm171, %v4394, 0.0
      %v4445 = vadd.f32 %v4443, %v4444
      %v4446 = vsel %vm171, %v4395, 0.0
      %v4447 = vadd.f32 %v4445, %v4446
      %v4448 = vsel %vm171, %v4396, 0.0
      %v4449 = vadd.f32 %v4447, %v4448
      %v4450 = vsel %vm171, %v4397, 0.0
      %v4451 = vadd.f32 %v4449, %v4450
      %v4452 = vsel %vm171, %v4398, 0.0
      %v4453 = vadd.f32 %v4451, %v4452
      %v4454 = vsel %vm171, %v4399, 0.0
      %v4455 = vadd.f32 %v4453, %v4454
      %v4456 = vsel %vm171, %v4400, 0.0
      %v4457 = vadd.f32 %v4455, %v4456
      %v4458 = vsel %vm171, %v4401, 0.0
      %v4459 = vadd.f32 %v4457, %v4458
      %v4460 = vsel %vm171, %v4402, 0.0
      %v4461 = vadd.f32 %v4459, %v4460
      %v4462 = vsel %vm171, %v4403, 0.0
      %v4463 = vadd.f32 %v4461, %v4462
      %v4464 = vsel %vm171, %v4404, 0.0
      %v4465 = vadd.f32 %v4463, %v4464
      %v4466 = vsel %vm171, %v4405, 0.0
      %v4467 = vadd.f32 %v4465, %v4466
      %v4468 = vsel %vm171, %v4406, 0.0
      %v4469 = vadd.f32 %v4467, %v4468
      %v4470 = vrot.slane %v4469, 4
      %v4471 = vadd.f32 %v4469, %v4470
      %v4472 = vrot.slane %v4471, 2
      %v4473 = vadd.f32 %v4471, %v4472
      %v4474 = vrot.slane %v4473, 1
      %v4475 = vadd.f32 %v4473, %v4474
      %v4476 = vmul.f32 %v4475, 0.00390625
      %v4477 = vmul.f32 %v4374, %v4374
      %v4478 = vsub.f32 %v4476, %v4477
      %v4479 = vmax.f32 %v4478, 0.0
      %v4480 = vsub.f32 %v4210, %v4374
      %v4481 = vsub.f32 %v4213, %v4374
      %v4482 = vsub.f32 %v4216, %v4374
      %v4483 = vsub.f32 %v4219, %v4374
      %v4484 = vsub.f32 %v4222, %v4374
      %v4485 = vsub.f32 %v4225, %v4374
      %v4486 = vsub.f32 %v4228, %v4374
      %v4487 = vsub.f32 %v4231, %v4374
      %v4488 = vsub.f32 %v4234, %v4374
      %v4489 = vsub.f32 %v4237, %v4374
      %v4490 = vsub.f32 %v4240, %v4374
      %v4491 = vsub.f32 %v4243, %v4374
      %v4492 = vsub.f32 %v4246, %v4374
      %v4493 = vsub.f32 %v4249, %v4374
      %v4494 = vsub.f32 %v4252, %v4374
      %v4495 = vsub.f32 %v4255, %v4374
      %v4496 = vsub.f32 %v4258, %v4374
      %v4497 = vsub.f32 %v4261, %v4374
      %v4498 = vsub.f32 %v4264, %v4374
      %v4499 = vsub.f32 %v4267, %v4374
      %v4500 = vsub.f32 %v4270, %v4374
      %v4501 = vsub.f32 %v4273, %v4374
      %v4502 = vsub.f32 %v4276, %v4374
      %v4503 = vsub.f32 %v4279, %v4374
      %v4504 = vsub.f32 %v4282, %v4374
      %v4505 = vsub.f32 %v4285, %v4374
      %v4506 = vsub.f32 %v4288, %v4374
      %v4507 = vsub.f32 %v4291, %v4374
      %v4508 = vsub.f32 %v4294, %v4374
      %v4509 = vsub.f32 %v4297, %v4374
      %v4510 = vsub.f32 %v4300, %v4374
      %v4511 = vsub.f32 %v4303, %v4374
      %v4512 = vadd.f32 %v4479, 1e-05
      %v4513 = vrsqrt.pop %v4512
      %v4514 = vmul.f32 %v4513, %v4512
      %v4515 = vmul.f32 %v4514, %v4513
      %v4516 = vmul.f32 0.5, %v4515
      %v4517 = vsub.f32 1.5, %v4516
      %v4518 = vmul.f32 %v4513, %v4517
      %vm4519 = vweird.f32 %v4512
      %vm4520 = vweird.f32 %v4513
      %vm4521 = vmor %vm4519, %vm4520
      %v4522 = vsel %vm4521, %v4513, %v4518
      %v4523 = vmul.f32 %v4480, %v4522
      %v4524 = vmul.f32 %v4481, %v4522
      %v4525 = vmul.f32 %v4482, %v4522
      %v4526 = vmul.f32 %v4483, %v4522
      %v4527 = vmul.f32 %v4484, %v4522
      %v4528 = vmul.f32 %v4485, %v4522
      %v4529 = vmul.f32 %v4486, %v4522
      %v4530 = vmul.f32 %v4487, %v4522
      %v4531 = vmul.f32 %v4488, %v4522
      %v4532 = vmul.f32 %v4489, %v4522
      %v4533 = vmul.f32 %v4490, %v4522
      %v4534 = vmul.f32 %v4491, %v4522
      %v4535 = vmul.f32 %v4492, %v4522
      %v4536 = vmul.f32 %v4493, %v4522
      %v4537 = vmul.f32 %v4494, %v4522
      %v4538 = vmul.f32 %v4495, %v4522
      %v4539 = vmul.f32 %v4496, %v4522
      %v4540 = vmul.f32 %v4497, %v4522
      %v4541 = vmul.f32 %v4498, %v4522
      %v4542 = vmul.f32 %v4499, %v4522
      %v4543 = vmul.f32 %v4500, %v4522
      %v4544 = vmul.f32 %v4501, %v4522
      %v4545 = vmul.f32 %v4502, %v4522
      %v4546 = vmul.f32 %v4503, %v4522
      %v4547 = vmul.f32 %v4504, %v4522
      %v4548 = vmul.f32 %v4505, %v4522
      %v4549 = vmul.f32 %v4506, %v4522
      %v4550 = vmul.f32 %v4507, %v4522
      %v4551 = vmul.f32 %v4508, %v4522
      %v4552 = vmul.f32 %v4509, %v4522
      %v4553 = vmul.f32 %v4510, %v4522
      %v4554 = vmul.f32 %v4511, %v4522
      %v4555 = vld [vmem:[%s165] sm:$0xff]
      %v4556 = vld [vmem:[%s165 + $0x8] sm:$0xff]
      %v4557 = vld [vmem:[%s165 + $0x10] sm:$0xff]
      %v4558 = vld [vmem:[%s165 + $0x18] sm:$0xff]
      %v4559 = vld [vmem:[%s165 + $0x20] sm:$0xff]
      %v4560 = vld [vmem:[%s165 + $0x28] sm:$0xff]
      %v4561 = vld [vmem:[%s165 + $0x30] sm:$0xff]
      %v4562 = vld [vmem:[%s165 + $0x38] sm:$0xff]
      %v4563 = vld [vmem:[%s165 + $0x40] sm:$0xff]
      %v4564 = vld [vmem:[%s165 + $0x48] sm:$0xff]
      %v4565 = vld [vmem:[%s165 + $0x50] sm:$0xff]
      %v4566 = vld [vmem:[%s165 + $0x58] sm:$0xff]
      %v4567 = vld [vmem:[%s165 + $0x60] sm:$0xff]
      %v4568 = vld [vmem:[%s165 + $0x68] sm:$0xff]
      %v4569 = vld [vmem:[%s165 + $0x70] sm:$0xff]
      %v4570 = vld [vmem:[%s165 + $0x78] sm:$0xff]
      %v4571 = vld [vmem:[%s165 + $0x80] sm:$0xff]
      %v4572 = vld [vmem:[%s165 + $0x88] sm:$0xff]
      %v4573 = vld [vmem:[%s165 + $0x90] sm:$0xff]
      %v4574 = vld [vmem:[%s165 + $0x98] sm:$0xff]
      %v4575 = vld [vmem:[%s165 + $0xa0] sm:$0xff]
      %v4576 = vld [vmem:[%s165 + $0xa8] sm:$0xff]
      %v4577 = vld [vmem:[%s165 + $0xb0] sm:$0xff]
      %v4578 = vld [vmem:[%s165 + $0xb8] sm:$0xff]
      %v4579 = vld [vmem:[%s165 + $0xc0] sm:$0xff]
      %v4580 = vld [vmem:[%s165 + $0xc8] sm:$0xff]
      %v4581 = vld [vmem:[%s165 + $0xd0] sm:$0xff]
      %v4582 = vld [vmem:[%s165 + $0xd8] sm:$0xff]
      %v4583 = vld [vmem:[%s165 + $0xe0] sm:$0xff]
      %v4584 = vld [vmem:[%s165 + $0xe8] sm:$0xff]
      %v4585 = vld [vmem:[%s165 + $0xf0] sm:$0xff]
      %v4586 = vld [vmem:[%s165 + $0xf8] sm:$0xff]
      %v4587 = vadd.f32 %v4523, %v4555
      %v4588 = vadd.f32 %v4524, %v4556
      %v4589 = vadd.f32 %v4525, %v4557
      %v4590 = vadd.f32 %v4526, %v4558
      %v4591 = vadd.f32 %v4527, %v4559
      %v4592 = vadd.f32 %v4528, %v4560
      %v4593 = vadd.f32 %v4529, %v4561
      %v4594 = vadd.f32 %v4530, %v4562
      %v4595 = vadd.f32 %v4531, %v4563
      %v4596 = vadd.f32 %v4532, %v4564
      %v4597 = vadd.f32 %v4533, %v4565
      %v4598 = vadd.f32 %v4534, %v4566
      %v4599 = vadd.f32 %v4535, %v4567
      %v4600 = vadd.f32 %v4536, %v4568
      %v4601 = vadd.f32 %v4537, %v4569
      %v4602 = vadd.f32 %v4538, %v4570
      %v4603 = vadd.f32 %v4539, %v4571
      %v4604 = vadd.f32 %v4540, %v4572
      %v4605 = vadd.f32 %v4541, %v4573
      %v4606 = vadd.f32 %v4542, %v4574
      %v4607 = vadd.f32 %v4543, %v4575
      %v4608 = vadd.f32 %v4544, %v4576
      %v4609 = vadd.f32 %v4545, %v4577
      %v4610 = vadd.f32 %v4546, %v4578
      %v4611 = vadd.f32 %v4547, %v4579
      %v4612 = vadd.f32 %v4548, %v4580
      %v4613 = vadd.f32 %v4549, %v4581
      %v4614 = vadd.f32 %v4550, %v4582
      %v4615 = vadd.f32 %v4551, %v4583
      %v4616 = vadd.f32 %v4552, %v4584
      %v4617 = vadd.f32 %v4553, %v4585
      %v4618 = vadd.f32 %v4554, %v4586
      %v4619 = vmax.f32 %v4587, 0.0
      %v4620 = vmax.f32 %v4588, 0.0
      %v4621 = vmax.f32 %v4589, 0.0
      %v4622 = vmax.f32 %v4590, 0.0
      %v4623 = vmax.f32 %v4591, 0.0
      %v4624 = vmax.f32 %v4592, 0.0
      %v4625 = vmax.f32 %v4593, 0.0
      %v4626 = vmax.f32 %v4594, 0.0
      %v4627 = vmax.f32 %v4595, 0.0
      %v4628 = vmax.f32 %v4596, 0.0
      %v4629 = vmax.f32 %v4597, 0.0
      %v4630 = vmax.f32 %v4598, 0.0
      %v4631 = vmax.f32 %v4599, 0.0
      %v4632 = vmax.f32 %v4600, 0.0
      %v4633 = vmax.f32 %v4601, 0.0
      %v4634 = vmax.f32 %v4602, 0.0
      %v4635 = vmax.f32 %v4603, 0.0
      %v4636 = vmax.f32 %v4604, 0.0
      %v4637 = vmax.f32 %v4605, 0.0
      %v4638 = vmax.f32 %v4606, 0.0
      %v4639 = vmax.f32 %v4607, 0.0
      %v4640 = vmax.f32 %v4608, 0.0
      %v4641 = vmax.f32 %v4609, 0.0
      %v4642 = vmax.f32 %v4610, 0.0
      %v4643 = vmax.f32 %v4611, 0.0
      %v4644 = vmax.f32 %v4612, 0.0
      %v4645 = vmax.f32 %v4613, 0.0
      %v4646 = vmax.f32 %v4614, 0.0
      %v4647 = vmax.f32 %v4615, 0.0
      %v4648 = vmax.f32 %v4616, 0.0
      %v4649 = vmax.f32 %v4617, 0.0
      %v4650 = vmax.f32 %v4618, 0.0
      %4651 = vst.msk [vmem:[%s170] sm:$0xff] %vm171, %v4619
      %4652 = vst.msk [vmem:[%s170 + $0x8] sm:$0xff] %vm171, %v4620
      %4653 = vst.msk [vmem:[%s170 + $0x10] sm:$0xff] %vm171, %v4621
      %4654 = vst.msk [vmem:[%s170 + $0x18] sm:$0xff] %vm171, %v4622
      %4655 = vst.msk [vmem:[%s170 + $0x20] sm:$0xff] %vm171, %v4623
      %4656 = vst.msk [vmem:[%s170 + $0x28] sm:$0xff] %vm171, %v4624
      %4657 = vst.msk [vmem:[%s170 + $0x30] sm:$0xff] %vm171, %v4625
      %4658 = vst.msk [vmem:[%s170 + $0x38] sm:$0xff] %vm171, %v4626
      %4659 = vst.msk [vmem:[%s170 + $0x40] sm:$0xff] %vm171, %v4627
      %4660 = vst.msk [vmem:[%s170 + $0x48] sm:$0xff] %vm171, %v4628
      %4661 = vst.msk [vmem:[%s170 + $0x50] sm:$0xff] %vm171, %v4629
      %4662 = vst.msk [vmem:[%s170 + $0x58] sm:$0xff] %vm171, %v4630
      %4663 = vst.msk [vmem:[%s170 + $0x60] sm:$0xff] %vm171, %v4631
      %4664 = vst.msk [vmem:[%s170 + $0x68] sm:$0xff] %vm171, %v4632
      %4665 = vst.msk [vmem:[%s170 + $0x70] sm:$0xff] %vm171, %v4633
      %4666 = vst.msk [vmem:[%s170 + $0x78] sm:$0xff] %vm171, %v4634
      %4667 = vst.msk [vmem:[%s170 + $0x80] sm:$0xff] %vm171, %v4635
      %4668 = vst.msk [vmem:[%s170 + $0x88] sm:$0xff] %vm171, %v4636
      %4669 = vst.msk [vmem:[%s170 + $0x90] sm:$0xff] %vm171, %v4637
      %4670 = vst.msk [vmem:[%s170 + $0x98] sm:$0xff] %vm171, %v4638
      %4671 = vst.msk [vmem:[%s170 + $0xa0] sm:$0xff] %vm171, %v4639
      %4672 = vst.msk [vmem:[%s170 + $0xa8] sm:$0xff] %vm171, %v4640
      %4673 = vst.msk [vmem:[%s170 + $0xb0] sm:$0xff] %vm171, %v4641
      %4674 = vst.msk [vmem:[%s170 + $0xb8] sm:$0xff] %vm171, %v4642
      %4675 = vst.msk [vmem:[%s170 + $0xc0] sm:$0xff] %vm171, %v4643
      %4676 = vst.msk [vmem:[%s170 + $0xc8] sm:$0xff] %vm171, %v4644
      %4677 = vst.msk [vmem:[%s170 + $0xd0] sm:$0xff] %vm171, %v4645
      %4678 = vst.msk [vmem:[%s170 + $0xd8] sm:$0xff] %vm171, %v4646
      %4679 = vst.msk [vmem:[%s170 + $0xe0] sm:$0xff] %vm171, %v4647
      %4680 = vst.msk [vmem:[%s170 + $0xe8] sm:$0xff] %vm171, %v4648
      %4681 = vst.msk [vmem:[%s170 + $0xf0] sm:$0xff] %vm171, %v4649
      %4682 = vst.msk [vmem:[%s170 + $0xf8] sm:$0xff] %vm171, %v4650
      %p4683 = scmp.lt.s32.totalorder %s14, 1
      %s4684 = scalar_select %p4683, %s14, 1
      %s4685 = smul.addr %s4684, 32
      %s4686 = smul.addr %s4685, 8
      %s4687 = scalar_lea.vmem %s3, %s4686
      // Predicated region
      $region33: #{tpu_custom_call.1} parent=31 // pred_check
        %p4688 = pneg %p100
      $region34: #{tpu_custom_call.1} parent=31 // pred_check_branch
        %4690 = sbr.rel (%p4688) target = $region36
      $region35: #{tpu_custom_call.1} parent=31 // pred_region
        _
      $region36: #{tpu_custom_call.1} parent=31 // pred_fallthru
        _
    $region32: #{tpu_custom_call.1} parent=5 // pred_fallthru
      _
    %p4691 = scmp.le.s32.totalorder 2, %s9
    // Predicated region
    $region37: #{tpu_custom_call.1} parent=5 // pred_check
      %p4692 = pneg %p4691
    $region38: #{tpu_custom_call.1} parent=5 // pred_check_branch
      %4694 = sbr.rel (%p4692) target = $region40
    $region39: #{tpu_custom_call.1} parent=5 // pred_region
      %s4695 = ssub.s32 %s9, 2
      // Predicated region
      $region41: #{tpu_custom_call.1} parent=39 // pred_check
        %p4696 = pneg %p106
      $region42: #{tpu_custom_call.1} parent=39 // pred_check_branch
        %4698 = sbr.rel (%p4696) target = $region44
      $region43: #{tpu_custom_call.1} parent=39 // pred_region
        %p4699 = scmp.lt.s32.totalorder %s15, 1
        %s4700 = scalar_select %p4699, %s15, 1
        %s4701 = smul.addr %s4700, 32
        %s4702 = smul.addr %s4701, 8
        %s4703 = scalar_lea.vmem %s3, %s4702
      $region44: #{tpu_custom_call.1} parent=39 // pred_fallthru
        _
    $region40: #{tpu_custom_call.1} parent=5 // pred_fallthru
      _
  $region6: #{tpu_custom_call.1} parent=0 // loop_footer
    %s13 = sadd.s32 1, %s9
  $region7: #{tpu_custom_call.1} parent=0 // loop_footer_branch
    %8 = sbr.rel target = $region3
  $region8: #{tpu_custom_call.1} parent=0 // loop_exit
    _

</llo_original>
